<compile_context>
chip_gen: v5e
topology: v5e:2x2
jax: 0.10.0
libtpu: 0.0.40
codegen_flags: <defaults>
</compile_context>

<pallas_src>
import functools

import jax
import jax.numpy as jnp
from jax import lax
from jax.experimental import pallas as pl
from jax.experimental.pallas import tpu as pltpu

N_EMBD = 384
N_HEAD = 6
HEAD_SIZE = N_EMBD // N_HEAD          # 64
ACT_BIT = 8
WEIGHT_BIT = 8
BIAS_BIT = 32
SOFTMAX_OUT_BIT = 8
_SM_SCALE = 1.0 / (2.0 ** SOFTMAX_OUT_BIT)


def _round_up(x, m):
    return (x + m - 1) // m * m


# ----------------------------------------------------------------------------
# QuantLinear kernel (shared by fused-QKV and output projection):
#   out = ((x * inv_prev_scale) @ W_int^T + b_int) * out_scale_per_column
# Tiled over M; weights / bias / scales stay resident across grid steps.
# ----------------------------------------------------------------------------
def _quant_linear_kernel(inv_scale_ref, x_ref, wt_ref, b_ref, oscale_ref, o_ref,
                         *, mxu_dtype):
    inv_x_scale = inv_scale_ref[0]                       # scalar from SMEM
    x_int = (x_ref[...] * inv_x_scale).astype(mxu_dtype)  # int8-range ints: exact in bf16
    w = wt_ref[...].astype(mxu_dtype)
    acc = jnp.dot(x_int, w, preferred_element_type=jnp.float32)
    o_ref[...] = (acc + b_ref[...]) * oscale_ref[...]


def _quant_linear_call(x2d, wt, b_int, out_scale_row, inv_scale, *, mxu_dtype,
                       tile_m=512):
    M, K = x2d.shape
    N = wt.shape[1]
    tm = min(tile_m, _round_up(M, 8))
    kernel = functools.partial(_quant_linear_kernel, mxu_dtype=mxu_dtype)
    return pl.pallas_call(
        kernel,
        grid=(pl.cdiv(M, tm),),
        in_specs=[
            pl.BlockSpec(memory_space=pltpu.MemorySpace.SMEM),   # inv prev scale (1,)
            pl.BlockSpec((tm, K), lambda i: (i, 0)),             # activations tile
            pl.BlockSpec((K, N), lambda i: (0, 0)),              # W_int^T (resident, bf16)
            pl.BlockSpec((1, N), lambda i: (0, 0)),              # b_int   (resident)
            pl.BlockSpec((1, N), lambda i: (0, 0)),              # per-column out scale
        ],
        out_specs=pl.BlockSpec((tm, N), lambda i: (i, 0)),
        out_shape=jax.ShapeDtypeStruct((M, N), jnp.float32),
        compiler_params=pltpu.CompilerParams(
            dimension_semantics=("parallel",),
            vmem_limit_bytes=32 * 1024 * 1024),
    )(inv_scale, x2d, wt, b_int, out_scale_row)


# ----------------------------------------------------------------------------
# Attention kernel: one grid step = 2 heads (128 lanes), reading q/k/v column
# blocks straight out of the fused (B, T, 3*C) projection output (layout [k|q|v])
# and writing directly into the (B, T, C) concatenated-head output layout.
# ----------------------------------------------------------------------------
def _mha_heads_kernel(q_ref, k_ref, v_ref, o_ref):
    n_act = float(2 ** (ACT_BIT - 1) - 1)
    inv_sqrt_hs = float(HEAD_SIZE) ** -0.5
    sm_levels = float(2 ** SOFTMAX_OUT_BIT)
    sm_scale = 1.0 / sm_levels

    qb = q_ref[...]
    kb = k_ref[...]
    vb = v_ref[...]

    T = qb.shape[1]
    row = lax.broadcasted_iota(jnp.int32, (T, T), 0)
    col = lax.broadcasted_iota(jnp.int32, (T, T), 1)
    causal = (col <= row)[None, :, :]

    def quant_act_int(xx):
        # QuantAct (symmetric, 8-bit): dynamic per-(head, tensor) requantization.
        m = jnp.maximum(jnp.max(jnp.abs(xx)), 1e-8)
        s = m / n_act
        x_int = jnp.clip(jnp.round(xx * (n_act / m)), -n_act, n_act)
        return x_int.astype(jnp.bfloat16), s            # |int| <= 127: exact in bf16

    outs = []
    for hh in range(2):                                  # two heads per 128-lane block
        d0 = hh * HEAD_SIZE
        q_int, q_s = quant_act_int(qb[:, :, d0:d0 + HEAD_SIZE])
        k_int, k_s = quant_act_int(kb[:, :, d0:d0 + HEAD_SIZE])
        v_int, v_s = quant_act_int(vb[:, :, d0:d0 + HEAD_SIZE])

        # wei = (q_int*q_s) @ (k_int*k_s)^T * head_size**-0.5 (int matmul on the MXU,
        # dequant scales applied once to the (T,T) score tile).
        wei = jnp.einsum("btd,bsd->bts", q_int, k_int,
                         preferred_element_type=jnp.float32)
        wei = wei * (q_s * k_s * inv_sqrt_hs)
        wei = jnp.where(causal, wei, -jnp.inf)

        # TODO(synk): I-BERT IntSoftmax integer-polynomial exp internals were not
        # provided; approximated as float softmax floor-quantized to 1/2^8 levels
        # (returned scale = 1/2^8, matching the reference).
        mx = jnp.max(wei, axis=-1, keepdims=True)
        e = jnp.exp(wei - mx)
        p = e * (1.0 / jnp.sum(e, axis=-1, keepdims=True))
        p_int = jnp.floor(p * sm_levels).astype(jnp.bfloat16)   # ints in [0, 256]

        out = jnp.einsum("bts,bsd->btd", p_int, v_int,
                         preferred_element_type=jnp.float32)
        # sm_scale: softmax dequant; v_s: v dequant; second sm_scale: the module's
        # verbatim `out * wei_scaling_factor` in Head.forward.
        outs.append(out * (v_s * sm_scale * sm_scale))

    o_ref[...] = jnp.concatenate(outs, axis=-1)


def _mha_heads_call(kqv):
    # kqv: (B, T, 3*N_EMBD), columns laid out [k | q | v]
    B, T, _ = kqv.shape
    blk = 2 * HEAD_SIZE                      # 128 lanes = 2 heads per block
    n_pairs = N_HEAD // 2                    # 3 grid steps
    k_spec = pl.BlockSpec((B, T, blk), lambda h: (0, 0, h))
    q_spec = pl.BlockSpec((B, T, blk), lambda h: (0, 0, n_pairs + h))
    v_spec = pl.BlockSpec((B, T, blk), lambda h: (0, 0, 2 * n_pairs + h))
    return pl.pallas_call(
        _mha_heads_kernel,
        grid=(n_pairs,),
        in_specs=[q_spec, k_spec, v_spec],
        out_specs=pl.BlockSpec((B, T, blk), lambda h: (0, 0, h)),
        out_shape=jax.ShapeDtypeStruct((B, T, N_EMBD), jnp.float32),
        compiler_params=pltpu.CompilerParams(
            dimension_semantics=("parallel",),
            vmem_limit_bytes=32 * 1024 * 1024),
    )(kqv, kqv, kqv)


# ----------------------------------------------------------------------------
# One-time parameter preparation (weight quantization hoisted out of forward).
# ----------------------------------------------------------------------------
def prepare_params(params):
    n_w = 2 ** (WEIGHT_BIT - 1) - 1

    def quant_w(w):
        w_scale = jnp.maximum(jnp.max(jnp.abs(w)), 1e-8) / n_w
        w_int = jnp.clip(jnp.round(w / w_scale), -n_w, n_w)
        return w_int, w_scale.astype(jnp.float32)

    wk_int, sk = quant_w(params["key"][0])
    wq_int, sq = quant_w(params["query"][0])
    wv_int, sv = quant_w(params["value"][0])
    wp_int, sp = quant_w(params["proj"][0])

    kqv_wt = jnp.concatenate([wk_int.T, wq_int.T, wv_int.T], axis=1).astype(jnp.bfloat16)
    kqv_b = jnp.concatenate(
        [params["key"][1], params["query"][1], params["value"][1]]
    ).astype(jnp.float32).reshape(1, -1)
    kqv_w_scale_cols = jnp.concatenate([
        jnp.broadcast_to(sk, (N_EMBD,)),
        jnp.broadcast_to(sq, (N_EMBD,)),
        jnp.broadcast_to(sv, (N_EMBD,)),
    ]).astype(jnp.float32).reshape(1, -1)

    return {
        "kqv_wt": kqv_wt,                                   # (384, 1152) bf16, [k|q|v]
        "kqv_b": kqv_b,                                     # (1, 1152) f32
        "kqv_w_scale_cols": kqv_w_scale_cols,               # (1, 1152) f32
        "proj_wt": wp_int.T.astype(jnp.bfloat16),           # (384, 384) bf16 (exact ints)
        "proj_b": params["proj"][1].astype(jnp.float32).reshape(1, -1),
        "proj_w_scale": sp,                                 # scalar f32
    }


# ----------------------------------------------------------------------------
# MultiHeadAttention forward
# ----------------------------------------------------------------------------
def multi_head_attention(prep, x, x_scaling_factor):
    B, T, C = x.shape
    x_scale = jnp.asarray(x_scaling_factor, jnp.float32)
    n_b = 2.0 ** (BIAS_BIT - 1) - 1

    # --- fused key/query/value QuantLinear (one kernel, per-column scales) ---
    kqv_out_scale = prep["kqv_w_scale_cols"] * x_scale                 # (1, 1152)
    kqv_b_int = jnp.clip(jnp.round(prep["kqv_b"] / kqv_out_scale), -n_b, n_b)
    inv_x_scale = (1.0 / x_scale).reshape(1)
    kqv = _quant_linear_call(
        x.reshape(B * T, C).astype(jnp.float32),
        prep["kqv_wt"], kqv_b_int, kqv_out_scale, inv_x_scale,
        mxu_dtype=jnp.bfloat16,            # int8-range operands: exact in bf16
    ).reshape(B, T, 3 * C)

    # --- per-head quantized attention (output already in concat-head layout) ---
    heads_out = _mha_heads_call(kqv)                                    # (B, T, C)

    # net_scaling_factor = mean of per-head softmax scales (all equal 1/2^8)
    overall_mean = jnp.asarray(_SM_SCALE, jnp.float32)

    # --- output projection QuantLinear (f32 matmul: its input is not integer) ---
    proj_out_scale = prep["proj_w_scale"] * overall_mean                # scalar
    proj_b_int = jnp.clip(jnp.round(prep["proj_b"] / proj_out_scale), -n_b, n_b)
    out2d = _quant_linear_call(
        heads_out.reshape(B * T, C),
        prep["proj_wt"], proj_b_int,
        jnp.broadcast_to(proj_out_scale, (1, N_EMBD)).astype(jnp.float32),
        (1.0 / overall_mean).reshape(1),
        mxu_dtype=jnp.float32,
    )
    # TODO(synk): nn.Dropout(0.2) -> identity (inference/eval semantics).
    return out2d.reshape(B, T, N_EMBD), proj_out_scale


# ----------------------------------------------------------------------------
# Deterministic parameter init (nn.Linear default: U(-1/sqrt(in), 1/sqrt(in)))
# ----------------------------------------------------------------------------
def init_linear_params(key, in_f, out_f):
    kw, kb = jax.random.split(key)
    bound = 1.0 / (in_f ** 0.5)
    w = jax.random.uniform(kw, (out_f, in_f), jnp.float32, -bound, bound)
    b = jax.random.uniform(kb, (out_f,), jnp.float32, -bound, bound)
    return w, b


if __name__ == "__main__":
    root = jax.random.PRNGKey(0)
    keys = jax.random.split(root, 5)
    params = {
        "key": init_linear_params(keys[0], N_EMBD, N_EMBD),
        "query": init_linear_params(keys[1], N_EMBD, N_EMBD),
        "value": init_linear_params(keys[2], N_EMBD, N_EMBD),
        "proj": init_linear_params(keys[3], N_HEAD * HEAD_SIZE, N_EMBD),
    }
    prep = prepare_params(params)   # weight quantization done once, outside forward

    B, T = 2, 8  # small seq (<= block_size=256 causal window)
    x_raw = jax.random.normal(keys[4], (B, T, N_EMBD), jnp.float32)
    # Emulate a preceding QuantAct: x is an 8-bit symmetric-quantized activation.
    n_a = 2 ** (ACT_BIT - 1) - 1
    x_scale = jnp.max(jnp.abs(x_raw)) / n_a
    x = jnp.clip(jnp.round(x_raw / x_scale), -n_a, n_a) * x_scale

    fwd = jax.jit(functools.partial(multi_head_attention, prep))
    out, out_sf = fwd(x, x_scale)
    jax.block_until_ready(out)
    jax.block_until_ready(out_sf)

    assert out.shape == (B, T, N_EMBD) and out.dtype == jnp.float32
    assert out_sf.shape == ()
    print("KERNEL_OK")
</pallas_src>

<mosaic_0001>
module attributes {stable_mosaic.version = 11 : i64} {
  func.func @_quant_linear_kernel(%arg0: i32, %arg1: memref<1xf32, #tpu.memory_space<smem>>, %arg2: memref<16x384xf32, #tpu.memory_space<vmem>>, %arg3: memref<384x1152xbf16, #tpu.memory_space<vmem>>, %arg4: memref<1x1152xf32, #tpu.memory_space<vmem>>, %arg5: memref<1x1152xf32, #tpu.memory_space<vmem>>, %arg6: memref<16x1152xf32, #tpu.memory_space<vmem>>) attributes {dimension_semantics = [#tpu.dimension_semantics<parallel>], iteration_bounds = array<i64: 1>, scalar_prefetch = 0 : i64, scratch_operands = 0 : i64, tpu.core_type = #tpu.core_type<tc>, window_params = [{transform_indices = @transform_0, window_bounds = array<i64: 1>}, {transform_indices = @transform_1, window_bounds = array<i64: 16, 384>}, {pipeline_mode = #tpu.pipeline_mode<synchronous>, transform_indices = @transform_2, window_bounds = array<i64: 384, 1152>}, {pipeline_mode = #tpu.pipeline_mode<synchronous>, transform_indices = @transform_3, window_bounds = array<i64: 1, 1152>}, {pipeline_mode = #tpu.pipeline_mode<synchronous>, transform_indices = @transform_4, window_bounds = array<i64: 1, 1152>}, {transform_indices = @transform_5, window_bounds = array<i64: 16, 1152>}]} {
    %c0 = arith.constant 0 : index
    %0 = memref.load %arg1[%c0] : memref<1xf32, #tpu.memory_space<smem>>
    %c0_0 = arith.constant 0 : index
    %c0_1 = arith.constant 0 : index
    %1 = vector.load %arg2[%c0_0, %c0_1] : memref<16x384xf32, #tpu.memory_space<vmem>>, vector<16x384xf32>
    %2 = vector.broadcast %0 : f32 to vector<16x384xf32>
    %3 = arith.mulf %1, %2 : vector<16x384xf32>
    %4 = arith.truncf %3 : vector<16x384xf32> to vector<16x384xbf16>
    %c0_2 = arith.constant 0 : index
    %c0_3 = arith.constant 0 : index
    %5 = vector.load %arg3[%c0_2, %c0_3] : memref<384x1152xbf16, #tpu.memory_space<vmem>>, vector<384x1152xbf16>
    %cst = arith.constant dense<0.000000e+00> : vector<16x1152xf32>
    %6 = tpu.matmul %4, %5, %cst {dimension_numbers = #tpu.dot_dimension_numbers<[1], [0], [0], [1], [0, 0, 1, 1], [], []>} : vector<16x384xbf16>, vector<384x1152xbf16>, vector<16x1152xf32> -> vector<16x1152xf32>
    %c0_4 = arith.constant 0 : index
    %c0_5 = arith.constant 0 : index
    %7 = vector.load %arg4[%c0_4, %c0_5] : memref<1x1152xf32, #tpu.memory_space<vmem>>, vector<1x1152xf32>
    %8 = vector.broadcast %7 : vector<1x1152xf32> to vector<16x1152xf32>
    %9 = arith.addf %6, %8 : vector<16x1152xf32>
    %c0_6 = arith.constant 0 : index
    %c0_7 = arith.constant 0 : index
    %10 = vector.load %arg5[%c0_6, %c0_7] : memref<1x1152xf32, #tpu.memory_space<vmem>>, vector<1x1152xf32>
    %11 = vector.broadcast %10 : vector<1x1152xf32> to vector<16x1152xf32>
    %12 = arith.mulf %9, %11 : vector<16x1152xf32>
    %c0_8 = arith.constant 0 : index
    %c0_9 = arith.constant 0 : index
    %13 = vector.load %arg6[%c0_8, %c0_9] : memref<16x1152xf32, #tpu.memory_space<vmem>>, vector<16x1152xf32>
    tpu.vector_store %arg6[%c0_8, %c0_9], %12 {strides = array<i32>} : memref<16x1152xf32, #tpu.memory_space<vmem>>, vector<16x1152xf32>,
    return
  }
  func.func @transform_0(%arg0: i32) -> i32 {
    %c0_i32 = arith.constant 0 : i32
    %c0_i32_0 = arith.constant 0 : i32
    return %c0_i32 : i32
  }
  func.func @transform_1(%arg0: i32) -> (i32, i32) {
    %c0_i32 = arith.constant 0 : i32
    %c0_i32_0 = arith.constant 0 : i32
    return %arg0, %c0_i32 : i32, i32
  }
  func.func @transform_2(%arg0: i32) -> (i32, i32) {
    %c0_i32 = arith.constant 0 : i32
    %c0_i32_0 = arith.constant 0 : i32
    %c0_i32_1 = arith.constant 0 : i32
    return %c0_i32, %c0_i32_0 : i32, i32
  }
  func.func @transform_3(%arg0: i32) -> (i32, i32) {
    %c0_i32 = arith.constant 0 : i32
    %c0_i32_0 = arith.constant 0 : i32
    %c0_i32_1 = arith.constant 0 : i32
    return %c0_i32, %c0_i32_0 : i32, i32
  }
  func.func @transform_4(%arg0: i32) -> (i32, i32) {
    %c0_i32 = arith.constant 0 : i32
    %c0_i32_0 = arith.constant 0 : i32
    %c0_i32_1 = arith.constant 0 : i32
    return %c0_i32, %c0_i32_0 : i32, i32
  }
  func.func @transform_5(%arg0: i32) -> (i32, i32) {
    %c0_i32 = arith.constant 0 : i32
    %c0_i32_0 = arith.constant 0 : i32
    return %arg0, %c0_i32 : i32, i32
  }
}

module attributes {stable_mosaic.version = 11 : i64} {
  func.func @_mha_heads_kernel(%arg0: i32, %arg1: memref<2x8x128xf32, #tpu.memory_space<vmem>>, %arg2: memref<2x8x128xf32, #tpu.memory_space<vmem>>, %arg3: memref<2x8x128xf32, #tpu.memory_space<vmem>>, %arg4: memref<2x8x128xf32, #tpu.memory_space<vmem>>) attributes {dimension_semantics = [#tpu.dimension_semantics<parallel>], iteration_bounds = array<i64: 3>, scalar_prefetch = 0 : i64, scratch_operands = 0 : i64, tpu.core_type = #tpu.core_type<tc>, window_params = [{transform_indices = @transform_0, window_bounds = array<i64: 2, 8, 128>}, {transform_indices = @transform_1, window_bounds = array<i64: 2, 8, 128>}, {transform_indices = @transform_2, window_bounds = array<i64: 2, 8, 128>}, {transform_indices = @transform_3, window_bounds = array<i64: 2, 8, 128>}]} {
    %c0 = arith.constant 0 : index
    %c0_0 = arith.constant 0 : index
    %c0_1 = arith.constant 0 : index
    %0 = vector.load %arg1[%c0, %c0_0, %c0_1] : memref<2x8x128xf32, #tpu.memory_space<vmem>>, vector<2x8x128xf32>
    %c0_2 = arith.constant 0 : index
    %c0_3 = arith.constant 0 : index
    %c0_4 = arith.constant 0 : index
    %1 = vector.load %arg2[%c0_2, %c0_3, %c0_4] : memref<2x8x128xf32, #tpu.memory_space<vmem>>, vector<2x8x128xf32>
    %c0_5 = arith.constant 0 : index
    %c0_6 = arith.constant 0 : index
    %c0_7 = arith.constant 0 : index
    %2 = vector.load %arg3[%c0_5, %c0_6, %c0_7] : memref<2x8x128xf32, #tpu.memory_space<vmem>>, vector<2x8x128xf32>
    %3 = tpu.iota {dimensions = array<i32: 0>} : vector<8x8xi32>
    %4 = tpu.iota {dimensions = array<i32: 1>} : vector<8x8xi32>
    %5 = arith.cmpi sle, %4, %3 : vector<8x8xi32>
    %6 = vector.shape_cast %5 : vector<8x8xi1> to vector<1x8x8xi1>
    %7 = vector.extract_strided_slice %0 {offsets = [0, 0, 0], sizes = [2, 8, 64], strides = [1, 1, 1]} : vector<2x8x128xf32> to vector<2x8x64xf32>
    %8 = math.absf %7 : vector<2x8x64xf32>
    %9 = vector.shape_cast %8 : vector<2x8x64xf32> to vector<1x2x8x64xf32>
    %cst = arith.constant dense<0xFF800000> : vector<1xf32>
    %10 = vector.multi_reduction <maximumf>, %9, %cst [1, 2, 3] : vector<1x2x8x64xf32> to vector<1xf32>
    %11 = vector.shape_cast %10 : vector<1xf32> to vector<1x1x1x1xf32>
    %12 = vector.extract %11[0, 0, 0, 0] : f32 from vector<1x1x1x1xf32>
    %cst_8 = arith.constant 9.99999993E-9 : f32
    %13 = arith.maximumf %12, %cst_8 : f32
    %cst_9 = arith.constant 1.270000e+02 : f32
    %14 = arith.divf %13, %cst_9 : f32
    %cst_10 = arith.constant 1.270000e+02 : f32
    %15 = arith.divf %cst_10, %13 : f32
    %16 = vector.broadcast %15 : f32 to vector<2x8x64xf32>
    %17 = arith.mulf %7, %16 : vector<2x8x64xf32>
    %18 = math.roundeven %17 : vector<2x8x64xf32>
    %cst_11 = arith.constant -1.270000e+02 : f32
    %cst_12 = arith.constant 1.270000e+02 : f32
    %19 = vector.broadcast %cst_11 : f32 to vector<2x8x64xf32>
    %20 = arith.maximumf %19, %18 : vector<2x8x64xf32>
    %21 = vector.broadcast %cst_12 : f32 to vector<2x8x64xf32>
    %22 = arith.minimumf %21, %20 : vector<2x8x64xf32>
    %23 = arith.truncf %22 : vector<2x8x64xf32> to vector<2x8x64xbf16>
    %24 = vector.extract_strided_slice %1 {offsets = [0, 0, 0], sizes = [2, 8, 64], strides = [1, 1, 1]} : vector<2x8x128xf32> to vector<2x8x64xf32>
    %25 = math.absf %24 : vector<2x8x64xf32>
    %26 = vector.shape_cast %25 : vector<2x8x64xf32> to vector<1x2x8x64xf32>
    %cst_13 = arith.constant dense<0xFF800000> : vector<1xf32>
    %27 = vector.multi_reduction <maximumf>, %26, %cst_13 [1, 2, 3] : vector<1x2x8x64xf32> to vector<1xf32>
    %28 = vector.shape_cast %27 : vector<1xf32> to vector<1x1x1x1xf32>
    %29 = vector.extract %28[0, 0, 0, 0] : f32 from vector<1x1x1x1xf32>
    %cst_14 = arith.constant 9.99999993E-9 : f32
    %30 = arith.maximumf %29, %cst_14 : f32
    %cst_15 = arith.constant 1.270000e+02 : f32
    %31 = arith.divf %30, %cst_15 : f32
    %cst_16 = arith.constant 1.270000e+02 : f32
    %32 = arith.divf %cst_16, %30 : f32
    %33 = vector.broadcast %32 : f32 to vector<2x8x64xf32>
    %34 = arith.mulf %24, %33 : vector<2x8x64xf32>
    %35 = math.roundeven %34 : vector<2x8x64xf32>
    %cst_17 = arith.constant -1.270000e+02 : f32
    %cst_18 = arith.constant 1.270000e+02 : f32
    %36 = vector.broadcast %cst_17 : f32 to vector<2x8x64xf32>
    %37 = arith.maximumf %36, %35 : vector<2x8x64xf32>
    %38 = vector.broadcast %cst_18 : f32 to vector<2x8x64xf32>
    %39 = arith.minimumf %38, %37 : vector<2x8x64xf32>
    %40 = arith.truncf %39 : vector<2x8x64xf32> to vector<2x8x64xbf16>
    %41 = vector.extract_strided_slice %2 {offsets = [0, 0, 0], sizes = [2, 8, 64], strides = [1, 1, 1]} : vector<2x8x128xf32> to vector<2x8x64xf32>
    %42 = math.absf %41 : vector<2x8x64xf32>
    %43 = vector.shape_cast %42 : vector<2x8x64xf32> to vector<1x2x8x64xf32>
    %cst_19 = arith.constant dense<0xFF800000> : vector<1xf32>
    %44 = vector.multi_reduction <maximumf>, %43, %cst_19 [1, 2, 3] : vector<1x2x8x64xf32> to vector<1xf32>
    %45 = vector.shape_cast %44 : vector<1xf32> to vector<1x1x1x1xf32>
    %46 = vector.extract %45[0, 0, 0, 0] : f32 from vector<1x1x1x1xf32>
    %cst_20 = arith.constant 9.99999993E-9 : f32
    %47 = arith.maximumf %46, %cst_20 : f32
    %cst_21 = arith.constant 1.270000e+02 : f32
    %48 = arith.divf %47, %cst_21 : f32
    %cst_22 = arith.constant 1.270000e+02 : f32
    %49 = arith.divf %cst_22, %47 : f32
    %50 = vector.broadcast %49 : f32 to vector<2x8x64xf32>
    %51 = arith.mulf %41, %50 : vector<2x8x64xf32>
    %52 = math.roundeven %51 : vector<2x8x64xf32>
    %cst_23 = arith.constant -1.270000e+02 : f32
    %cst_24 = arith.constant 1.270000e+02 : f32
    %53 = vector.broadcast %cst_23 : f32 to vector<2x8x64xf32>
    %54 = arith.maximumf %53, %52 : vector<2x8x64xf32>
    %55 = vector.broadcast %cst_24 : f32 to vector<2x8x64xf32>
    %56 = arith.minimumf %55, %54 : vector<2x8x64xf32>
    %57 = arith.truncf %56 : vector<2x8x64xf32> to vector<2x8x64xbf16>
    "tpu.trace_start"() <{level = 10 : i32, message = "btd,bsd->bts"}> : () -> ()
    %cst_25 = arith.constant dense<0.000000e+00> : vector<2x8x8xf32>
    %58 = tpu.matmul %23, %40, %cst_25 {dimension_numbers = #tpu.dot_dimension_numbers<[2], [2], [1], [1], [0, 0, 0, 1, 1, 1], [0], [0]>} : vector<2x8x64xbf16>, vector<2x8x64xbf16>, vector<2x8x8xf32> -> vector<2x8x8xf32>
    "tpu.trace_stop"() : () -> ()
    %59 = arith.mulf %14, %31 : f32
    %cst_26 = arith.constant 1.250000e-01 : f32
    %60 = arith.mulf %59, %cst_26 : f32
    %61 = vector.broadcast %60 : f32 to vector<2x8x8xf32>
    %62 = arith.mulf %58, %61 : vector<2x8x8xf32>
    %cst_27 = arith.constant 0xFF800000 : f32
    %63 = vector.shape_cast %6 : vector<1x8x8xi1> to vector<1x8x8xi1>
    %64 = vector.broadcast %63 : vector<1x8x8xi1> to vector<2x8x8xi1>
    %65 = vector.broadcast %cst_27 : f32 to vector<2x8x8xf32>
    %66 = arith.select %64, %62, %65 : vector<2x8x8xi1>, vector<2x8x8xf32>
    %cst_28 = arith.constant dense<0xFF800000> : vector<2x8xf32>
    %67 = vector.multi_reduction <maximumf>, %66, %cst_28 [2] : vector<2x8x8xf32> to vector<2x8xf32>
    %68 = vector.shape_cast %67 : vector<2x8xf32> to vector<2x8x1xf32>
    %69 = vector.broadcast %68 : vector<2x8x1xf32> to vector<2x8x8xf32>
    %70 = arith.subf %66, %69 : vector<2x8x8xf32>
    %71 = math.exp %70 : vector<2x8x8xf32>
    %cst_29 = arith.constant dense<0.000000e+00> : vector<2x8xf32>
    %72 = vector.multi_reduction <add>, %71, %cst_29 [2] : vector<2x8x8xf32> to vector<2x8xf32>
    %73 = vector.shape_cast %72 : vector<2x8xf32> to vector<2x8x1xf32>
    %cst_30 = arith.constant 1.000000e+00 : f32
    %74 = vector.broadcast %cst_30 : f32 to vector<2x8x1xf32>
    %75 = arith.divf %74, %73 : vector<2x8x1xf32>
    %76 = vector.broadcast %75 : vector<2x8x1xf32> to vector<2x8x8xf32>
    %77 = arith.mulf %71, %76 : vector<2x8x8xf32>
    %cst_31 = arith.constant 2.560000e+02 : f32
    %78 = vector.broadcast %cst_31 : f32 to vector<2x8x8xf32>
    %79 = arith.mulf %77, %78 : vector<2x8x8xf32>
    %80 = math.floor %79 : vector<2x8x8xf32>
    %81 = arith.truncf %80 : vector<2x8x8xf32> to vector<2x8x8xbf16>
    "tpu.trace_start"() <{level = 10 : i32, message = "bts,bsd->btd"}> : () -> ()
    %cst_32 = arith.constant dense<0.000000e+00> : vector<2x8x64xf32>
    %82 = tpu.matmul %81, %57, %cst_32 {dimension_numbers = #tpu.dot_dimension_numbers<[2], [1], [1], [2], [0, 0, 0, 1, 1, 2], [0], [0]>} : vector<2x8x8xbf16>, vector<2x8x64xbf16>, vector<2x8x64xf32> -> vector<2x8x64xf32>
    "tpu.trace_stop"() : () -> ()
    %cst_33 = arith.constant 3.906250e-03 : f32
    %83 = arith.mulf %48, %cst_33 : f32
    %cst_34 = arith.constant 3.906250e-03 : f32
    %84 = arith.mulf %83, %cst_34 : f32
    %85 = vector.broadcast %84 : f32 to vector<2x8x64xf32>
    %86 = arith.mulf %82, %85 : vector<2x8x64xf32>
    %87 = vector.extract_strided_slice %0 {offsets = [0, 0, 64], sizes = [2, 8, 64], strides = [1, 1, 1]} : vector<2x8x128xf32> to vector<2x8x64xf32>
    %88 = math.absf %87 : vector<2x8x64xf32>
    %89 = vector.shape_cast %88 : vector<2x8x64xf32> to vector<1x2x8x64xf32>
    %cst_35 = arith.constant dense<0xFF800000> : vector<1xf32>
    %90 = vector.multi_reduction <maximumf>, %89, %cst_35 [1, 2, 3] : vector<1x2x8x64xf32> to vector<1xf32>
    %91 = vector.shape_cast %90 : vector<1xf32> to vector<1x1x1x1xf32>
    %92 = vector.extract %91[0, 0, 0, 0] : f32 from vector<1x1x1x1xf32>
    %cst_36 = arith.constant 9.99999993E-9 : f32
    %93 = arith.maximumf %92, %cst_36 : f32
    %cst_37 = arith.constant 1.270000e+02 : f32
    %94 = arith.divf %93, %cst_37 : f32
    %cst_38 = arith.constant 1.270000e+02 : f32
    %95 = arith.divf %cst_38, %93 : f32
    %96 = vector.broadcast %95 : f32 to vector<2x8x64xf32>
    %97 = arith.mulf %87, %96 : vector<2x8x64xf32>
    %98 = math.roundeven %97 : vector<2x8x64xf32>
    %cst_39 = arith.constant -1.270000e+02 : f32
    %cst_40 = arith.constant 1.270000e+02 : f32
    %99 = vector.broadcast %cst_39 : f32 to vector<2x8x64xf32>
    %100 = arith.maximumf %99, %98 : vector<2x8x64xf32>
    %101 = vector.broadcast %cst_40 : f32 to vector<2x8x64xf32>
    %102 = arith.minimumf %101, %100 : vector<2x8x64xf32>
    %103 = arith.truncf %102 : vector<2x8x64xf32> to vector<2x8x64xbf16>
    %104 = vector.extract_strided_slice %1 {offsets = [0, 0, 64], sizes = [2, 8, 64], strides = [1, 1, 1]} : vector<2x8x128xf32> to vector<2x8x64xf32>
    %105 = math.absf %104 : vector<2x8x64xf32>
    %106 = vector.shape_cast %105 : vector<2x8x64xf32> to vector<1x2x8x64xf32>
    %cst_41 = arith.constant dense<0xFF800000> : vector<1xf32>
    %107 = vector.multi_reduction <maximumf>, %106, %cst_41 [1, 2, 3] : vector<1x2x8x64xf32> to vector<1xf32>
    %108 = vector.shape_cast %107 : vector<1xf32> to vector<1x1x1x1xf32>
    %109 = vector.extract %108[0, 0, 0, 0] : f32 from vector<1x1x1x1xf32>
    %cst_42 = arith.constant 9.99999993E-9 : f32
    %110 = arith.maximumf %109, %cst_42 : f32
    %cst_43 = arith.constant 1.270000e+02 : f32
    %111 = arith.divf %110, %cst_43 : f32
    %cst_44 = arith.constant 1.270000e+02 : f32
    %112 = arith.divf %cst_44, %110 : f32
    %113 = vector.broadcast %112 : f32 to vector<2x8x64xf32>
    %114 = arith.mulf %104, %113 : vector<2x8x64xf32>
    %115 = math.roundeven %114 : vector<2x8x64xf32>
    %cst_45 = arith.constant -1.270000e+02 : f32
    %cst_46 = arith.constant 1.270000e+02 : f32
    %116 = vector.broadcast %cst_45 : f32 to vector<2x8x64xf32>
    %117 = arith.maximumf %116, %115 : vector<2x8x64xf32>
    %118 = vector.broadcast %cst_46 : f32 to vector<2x8x64xf32>
    %119 = arith.minimumf %118, %117 : vector<2x8x64xf32>
    %120 = arith.truncf %119 : vector<2x8x64xf32> to vector<2x8x64xbf16>
    %121 = vector.extract_strided_slice %2 {offsets = [0, 0, 64], sizes = [2, 8, 64], strides = [1, 1, 1]} : vector<2x8x128xf32> to vector<2x8x64xf32>
    %122 = math.absf %121 : vector<2x8x64xf32>
    %123 = vector.shape_cast %122 : vector<2x8x64xf32> to vector<1x2x8x64xf32>
    %cst_47 = arith.constant dense<0xFF800000> : vector<1xf32>
    %124 = vector.multi_reduction <maximumf>, %123, %cst_47 [1, 2, 3] : vector<1x2x8x64xf32> to vector<1xf32>
    %125 = vector.shape_cast %124 : vector<1xf32> to vector<1x1x1x1xf32>
    %126 = vector.extract %125[0, 0, 0, 0] : f32 from vector<1x1x1x1xf32>
    %cst_48 = arith.constant 9.99999993E-9 : f32
    %127 = arith.maximumf %126, %cst_48 : f32
    %cst_49 = arith.constant 1.270000e+02 : f32
    %128 = arith.divf %127, %cst_49 : f32
    %cst_50 = arith.constant 1.270000e+02 : f32
    %129 = arith.divf %cst_50, %127 : f32
    %130 = vector.broadcast %129 : f32 to vector<2x8x64xf32>
    %131 = arith.mulf %121, %130 : vector<2x8x64xf32>
    %132 = math.roundeven %131 : vector<2x8x64xf32>
    %cst_51 = arith.constant -1.270000e+02 : f32
    %cst_52 = arith.constant 1.270000e+02 : f32
    %133 = vector.broadcast %cst_51 : f32 to vector<2x8x64xf32>
    %134 = arith.maximumf %133, %132 : vector<2x8x64xf32>
    %135 = vector.broadcast %cst_52 : f32 to vector<2x8x64xf32>
    %136 = arith.minimumf %135, %134 : vector<2x8x64xf32>
    %137 = arith.truncf %136 : vector<2x8x64xf32> to vector<2x8x64xbf16>
    "tpu.trace_start"() <{level = 10 : i32, message = "btd,bsd->bts"}> : () -> ()
    %cst_53 = arith.constant dense<0.000000e+00> : vector<2x8x8xf32>
    %138 = tpu.matmul %103, %120, %cst_53 {dimension_numbers = #tpu.dot_dimension_numbers<[2], [2], [1], [1], [0, 0, 0, 1, 1, 1], [0], [0]>} : vector<2x8x64xbf16>, vector<2x8x64xbf16>, vector<2x8x8xf32> -> vector<2x8x8xf32>
    "tpu.trace_stop"() : () -> ()
    %139 = arith.mulf %94, %111 : f32
    %cst_54 = arith.constant 1.250000e-01 : f32
    %140 = arith.mulf %139, %cst_54 : f32
    %141 = vector.broadcast %140 : f32 to vector<2x8x8xf32>
    %142 = arith.mulf %138, %141 : vector<2x8x8xf32>
    %cst_55 = arith.constant 0xFF800000 : f32
    %143 = vector.shape_cast %6 : vector<1x8x8xi1> to vector<1x8x8xi1>
    %144 = vector.broadcast %143 : vector<1x8x8xi1> to vector<2x8x8xi1>
    %145 = vector.broadcast %cst_55 : f32 to vector<2x8x8xf32>
    %146 = arith.select %144, %142, %145 : vector<2x8x8xi1>, vector<2x8x8xf32>
    %cst_56 = arith.constant dense<0xFF800000> : vector<2x8xf32>
    %147 = vector.multi_reduction <maximumf>, %146, %cst_56 [2] : vector<2x8x8xf32> to vector<2x8xf32>
    %148 = vector.shape_cast %147 : vector<2x8xf32> to vector<2x8x1xf32>
    %149 = vector.broadcast %148 : vector<2x8x1xf32> to vector<2x8x8xf32>
    %150 = arith.subf %146, %149 : vector<2x8x8xf32>
    %151 = math.exp %150 : vector<2x8x8xf32>
    %cst_57 = arith.constant dense<0.000000e+00> : vector<2x8xf32>
    %152 = vector.multi_reduction <add>, %151, %cst_57 [2] : vector<2x8x8xf32> to vector<2x8xf32>
    %153 = vector.shape_cast %152 : vector<2x8xf32> to vector<2x8x1xf32>
    %cst_58 = arith.constant 1.000000e+00 : f32
    %154 = vector.broadcast %cst_58 : f32 to vector<2x8x1xf32>
    %155 = arith.divf %154, %153 : vector<2x8x1xf32>
    %156 = vector.broadcast %155 : vector<2x8x1xf32> to vector<2x8x8xf32>
    %157 = arith.mulf %151, %156 : vector<2x8x8xf32>
    %cst_59 = arith.constant 2.560000e+02 : f32
    %158 = vector.broadcast %cst_59 : f32 to vector<2x8x8xf32>
    %159 = arith.mulf %157, %158 : vector<2x8x8xf32>
    %160 = math.floor %159 : vector<2x8x8xf32>
    %161 = arith.truncf %160 : vector<2x8x8xf32> to vector<2x8x8xbf16>
    "tpu.trace_start"() <{level = 10 : i32, message = "bts,bsd->btd"}> : () -> ()
    %cst_60 = arith.constant dense<0.000000e+00> : vector<2x8x64xf32>
    %162 = tpu.matmul %161, %137, %cst_60 {dimension_numbers = #tpu.dot_dimension_numbers<[2], [1], [1], [2], [0, 0, 0, 1, 1, 2], [0], [0]>} : vector<2x8x8xbf16>, vector<2x8x64xbf16>, vector<2x8x64xf32> -> vector<2x8x64xf32>
    "tpu.trace_stop"() : () -> ()
    %cst_61 = arith.constant 3.906250e-03 : f32
    %163 = arith.mulf %128, %cst_61 : f32
    %cst_62 = arith.constant 3.906250e-03 : f32
    %164 = arith.mulf %163, %cst_62 : f32
    %165 = vector.broadcast %164 : f32 to vector<2x8x64xf32>
    %166 = arith.mulf %162, %165 : vector<2x8x64xf32>
    %167 = tpu.concatenate %86, %166 in 2 : vector<2x8x64xf32>, vector<2x8x64xf32> -> vector<2x8x128xf32>
    %c0_63 = arith.constant 0 : index
    %c0_64 = arith.constant 0 : index
    %c0_65 = arith.constant 0 : index
    %168 = vector.load %arg4[%c0_63, %c0_64, %c0_65] : memref<2x8x128xf32, #tpu.memory_space<vmem>>, vector<2x8x128xf32>
    tpu.vector_store %arg4[%c0_63, %c0_64, %c0_65], %167 {strides = array<i32>} : memref<2x8x128xf32, #tpu.memory_space<vmem>>, vector<2x8x128xf32>,
    return
  }
  func.func @transform_0(%arg0: i32) -> (i32, i32, i32) {
    %c3_i32 = arith.constant 3 : i32
    %0 = arith.addi %c3_i32, %arg0 : i32
    %c0_i32 = arith.constant 0 : i32
    %c0_i32_0 = arith.constant 0 : i32
    %c0_i32_1 = arith.constant 0 : i32
    return %c0_i32, %c0_i32_0, %0 : i32, i32, i32
  }
  func.func @transform_1(%arg0: i32) -> (i32, i32, i32) {
    %c0_i32 = arith.constant 0 : i32
    %c0_i32_0 = arith.constant 0 : i32
    %c0_i32_1 = arith.constant 0 : i32
    return %c0_i32, %c0_i32_0, %arg0 : i32, i32, i32
  }
  func.func @transform_2(%arg0: i32) -> (i32, i32, i32) {
    %c6_i32 = arith.constant 6 : i32
    %0 = arith.addi %c6_i32, %arg0 : i32
    %c0_i32 = arith.constant 0 : i32
    %c0_i32_0 = arith.constant 0 : i32
    %c0_i32_1 = arith.constant 0 : i32
    return %c0_i32, %c0_i32_0, %0 : i32, i32, i32
  }
  func.func @transform_3(%arg0: i32) -> (i32, i32, i32) {
    %c0_i32 = arith.constant 0 : i32
    %c0_i32_0 = arith.constant 0 : i32
    %c0_i32_1 = arith.constant 0 : i32
    return %c0_i32, %c0_i32_0, %arg0 : i32, i32, i32
  }
}

module attributes {stable_mosaic.version = 11 : i64} {
  func.func @_quant_linear_kernel(%arg0: i32, %arg1: memref<1xf32, #tpu.memory_space<smem>>, %arg2: memref<16x384xf32, #tpu.memory_space<vmem>>, %arg3: memref<384x384xbf16, #tpu.memory_space<vmem>>, %arg4: memref<1x384xf32, #tpu.memory_space<vmem>>, %arg5: memref<1x384xf32, #tpu.memory_space<vmem>>, %arg6: memref<16x384xf32, #tpu.memory_space<vmem>>) attributes {dimension_semantics = [#tpu.dimension_semantics<parallel>], iteration_bounds = array<i64: 1>, scalar_prefetch = 0 : i64, scratch_operands = 0 : i64, tpu.core_type = #tpu.core_type<tc>, window_params = [{transform_indices = @transform_0, window_bounds = array<i64: 1>}, {transform_indices = @transform_1, window_bounds = array<i64: 16, 384>}, {pipeline_mode = #tpu.pipeline_mode<synchronous>, transform_indices = @transform_2, window_bounds = array<i64: 384, 384>}, {pipeline_mode = #tpu.pipeline_mode<synchronous>, transform_indices = @transform_3, window_bounds = array<i64: 1, 384>}, {pipeline_mode = #tpu.pipeline_mode<synchronous>, transform_indices = @transform_4, window_bounds = array<i64: 1, 384>}, {transform_indices = @transform_5, window_bounds = array<i64: 16, 384>}]} {
    %c0 = arith.constant 0 : index
    %0 = memref.load %arg1[%c0] : memref<1xf32, #tpu.memory_space<smem>>
    %c0_0 = arith.constant 0 : index
    %c0_1 = arith.constant 0 : index
    %1 = vector.load %arg2[%c0_0, %c0_1] : memref<16x384xf32, #tpu.memory_space<vmem>>, vector<16x384xf32>
    %2 = vector.broadcast %0 : f32 to vector<16x384xf32>
    %3 = arith.mulf %1, %2 : vector<16x384xf32>
    %c0_2 = arith.constant 0 : index
    %c0_3 = arith.constant 0 : index
    %4 = vector.load %arg3[%c0_2, %c0_3] : memref<384x384xbf16, #tpu.memory_space<vmem>>, vector<384x384xbf16>
    %5 = arith.extf %4 : vector<384x384xbf16> to vector<384x384xf32>
    %cst = arith.constant dense<0.000000e+00> : vector<16x384xf32>
    %6 = tpu.matmul %3, %5, %cst {dimension_numbers = #tpu.dot_dimension_numbers<[1], [0], [0], [1], [0, 0, 1, 1], [], []>} : vector<16x384xf32>, vector<384x384xf32>, vector<16x384xf32> -> vector<16x384xf32>
    %c0_4 = arith.constant 0 : index
    %c0_5 = arith.constant 0 : index
    %7 = vector.load %arg4[%c0_4, %c0_5] : memref<1x384xf32, #tpu.memory_space<vmem>>, vector<1x384xf32>
    %8 = vector.broadcast %7 : vector<1x384xf32> to vector<16x384xf32>
    %9 = arith.addf %6, %8 : vector<16x384xf32>
    %c0_6 = arith.constant 0 : index
    %c0_7 = arith.constant 0 : index
    %10 = vector.load %arg5[%c0_6, %c0_7] : memref<1x384xf32, #tpu.memory_space<vmem>>, vector<1x384xf32>
    %11 = vector.broadcast %10 : vector<1x384xf32> to vector<16x384xf32>
    %12 = arith.mulf %9, %11 : vector<16x384xf32>
    %c0_8 = arith.constant 0 : index
    %c0_9 = arith.constant 0 : index
    %13 = vector.load %arg6[%c0_8, %c0_9] : memref<16x384xf32, #tpu.memory_space<vmem>>, vector<16x384xf32>
    tpu.vector_store %arg6[%c0_8, %c0_9], %12 {strides = array<i32>} : memref<16x384xf32, #tpu.memory_space<vmem>>, vector<16x384xf32>,
    return
  }
  func.func @transform_0(%arg0: i32) -> i32 {
    %c0_i32 = arith.constant 0 : i32
    %c0_i32_0 = arith.constant 0 : i32
    return %c0_i32 : i32
  }
  func.func @transform_1(%arg0: i32) -> (i32, i32) {
    %c0_i32 = arith.constant 0 : i32
    %c0_i32_0 = arith.constant 0 : i32
    return %arg0, %c0_i32 : i32, i32
  }
  func.func @transform_2(%arg0: i32) -> (i32, i32) {
    %c0_i32 = arith.constant 0 : i32
    %c0_i32_0 = arith.constant 0 : i32
    %c0_i32_1 = arith.constant 0 : i32
    return %c0_i32, %c0_i32_0 : i32, i32
  }
  func.func @transform_3(%arg0: i32) -> (i32, i32) {
    %c0_i32 = arith.constant 0 : i32
    %c0_i32_0 = arith.constant 0 : i32
    %c0_i32_1 = arith.constant 0 : i32
    return %c0_i32, %c0_i32_0 : i32, i32
  }
  func.func @transform_4(%arg0: i32) -> (i32, i32) {
    %c0_i32 = arith.constant 0 : i32
    %c0_i32_0 = arith.constant 0 : i32
    %c0_i32_1 = arith.constant 0 : i32
    return %c0_i32, %c0_i32_0 : i32, i32
  }
  func.func @transform_5(%arg0: i32) -> (i32, i32) {
    %c0_i32 = arith.constant 0 : i32
    %c0_i32_0 = arith.constant 0 : i32
    return %arg0, %c0_i32 : i32, i32
  }
}

</mosaic_0001>

<llo_original>
// kernel: multi_head_attention.4
$region0: #{multi_head_attention.4}
  #allocation0 [shape = 'u32[]', space=smem, size = 0x4, offset = 0x4, fixed_abs, tag = 'smem constant byte address 0x4 - core index']
  #allocation1 [shape = 'u32[72,128]{1,0:T(1,128)}', space=vmem, size = 0x9000, scoped, tag = 'internal scratch']
  %s0 = inlined_call_operand.vmem [shape: f32[2,8,1152], index: 0, kind: input, shape index: {}, may-alias: {0,1,2}]
  %s1 = inlined_call_operand.vmem [shape: f32[2,8,1152], index: 1, kind: input, shape index: {}, may-alias: {0,1,2}]
  %s2 = inlined_call_operand.vmem [shape: f32[2,8,1152], index: 2, kind: input, shape index: {}, may-alias: {0,1,2}]
  %s3 = inlined_call_operand.vmem [shape: f32[2,8,384], index: 3, kind: output, shape index: {}]
  %s4 = sld [smem:[#allocation0]]
  $region193: #{multi_head_attention.4} parent=0
    _
  %s6 = ssub.s32 1, %s4
  %s7 = scalar_select 0, %s6, %s4
  $region1: #{multi_head_attention.4} parent=0
    #allocation2 [shape = 'u8[16384]{0}', space=vmem, size = 0x4000, scoped, tag = 'input window, operand 0']
    #allocation3 [shape = 'u8[16384]{0}', space=vmem, size = 0x4000, scoped, tag = 'input window, operand 1']
    #allocation4 [shape = 'u8[16384]{0}', space=vmem, size = 0x4000, scoped, tag = 'input window, operand 2']
    #allocation5 [shape = 'u8[16384]{0}', space=vmem, size = 0x4000, scoped, tag = 'output window, operand 0']
    loop: start=0, step=1, limit=5
    $region2: #{multi_head_attention.4} parent=1 // loop_pre_header
      _
    $region3: #{multi_head_attention.4} parent=1 // loop_header
      %s9 = sphi 0, %s13
      %p10 = scmp.ge.s32.totalorder %s9, 5
      %s21 = sphi 0, %s23
      %s24 = sphi 0, %s21
      %s25 = sphi 0, %s24
      %s41 = sphi 0, %s25
      %s47 = sphi 0, %s49
      %s50 = sphi 0, %s47
      %s51 = sphi 0, %s50
      %s67 = sphi 0, %s51
      %s75 = sphi 0, %s77
      %s78 = sphi 0, %s75
      %s79 = sphi 0, %s78
      %s95 = sphi 0, %s79
      %s101 = sphi 0, %s103
      %s104 = sphi 0, %s101
      %s105 = sphi 0, %s104
      %s121 = sphi 0, %s105
    $region4: #{multi_head_attention.4} parent=1 // loop_header_branch
      %12 = sbr.rel (%p10) target = $region8
    $region5: #{multi_head_attention.4} parent=1 // loop_body
      %s14 = ssub.s32 %s9, 1
      %s15 = ssub.s32 %s9, 2
      %s16 = sadd.s32 %s9, 1
      %s17 = sadd.s32 %s9, 3
      %s18 = sadd.s32 %s16, 3
      %s19 = ssub.s32 %s17, %s18
      %p20 = scmp.eq.s32.totalorder %s19, 0
      %s22 = sadd.s32 %s21, 1
      %s23 = scalar_select %p20, %s21, %s22
      %p26 = pneg %p20
      %p27 = scmp.eq.s32.totalorder %s9, 2
      %p28 = por %p26, %p27
      %p29 = scmp.ne.s32.totalorder %s21, %s24
      %p30 = scmp.eq.s32.totalorder %s9, 0
      %p31 = por %p29, %p30
      %p32 = scmp.ne.s32.totalorder %s21, %s24
      %p33 = scmp.eq.s32.totalorder %s14, 2
      %p34 = por %p32, %p33
      %p35 = scmp.ne.s32.totalorder %s24, %s25
      %p36 = scmp.eq.s32.totalorder %s14, 0
      %p37 = por %p35, %p36
      %p38 = scmp.ne.s32.totalorder %s24, %s25
      %p39 = scmp.eq.s32.totalorder %s15, 2
      %p40 = por %p38, %p39
      %p42 = scmp.ne.s32.totalorder %s25, %s41
      %p43 = scmp.eq.s32.totalorder %s15, 0
      %p44 = por %p42, %p43
      %s45 = ssub.s32 %s9, %s16
      %p46 = scmp.eq.s32.totalorder %s45, 0
      %s48 = sadd.s32 %s47, 1
      %s49 = scalar_select %p46, %s47, %s48
      %p52 = pneg %p46
      %p53 = scmp.eq.s32.totalorder %s9, 2
      %p54 = por %p52, %p53
      %p55 = scmp.ne.s32.totalorder %s47, %s50
      %p56 = scmp.eq.s32.totalorder %s9, 0
      %p57 = por %p55, %p56
      %p58 = scmp.ne.s32.totalorder %s47, %s50
      %p59 = scmp.eq.s32.totalorder %s14, 2
      %p60 = por %p58, %p59
      %p61 = scmp.ne.s32.totalorder %s50, %s51
      %p62 = scmp.eq.s32.totalorder %s14, 0
      %p63 = por %p61, %p62
      %p64 = scmp.ne.s32.totalorder %s50, %s51
      %p65 = scmp.eq.s32.totalorder %s15, 2
      %p66 = por %p64, %p65
      %p68 = scmp.ne.s32.totalorder %s51, %s67
      %p69 = scmp.eq.s32.totalorder %s15, 0
      %p70 = por %p68, %p69
      %s71 = sadd.s32 %s9, 6
      %s72 = sadd.s32 %s16, 6
      %s73 = ssub.s32 %s71, %s72
      %p74 = scmp.eq.s32.totalorder %s73, 0
      %s76 = sadd.s32 %s75, 1
      %s77 = scalar_select %p74, %s75, %s76
      %p80 = pneg %p74
      %p81 = scmp.eq.s32.totalorder %s9, 2
      %p82 = por %p80, %p81
      %p83 = scmp.ne.s32.totalorder %s75, %s78
      %p84 = scmp.eq.s32.totalorder %s9, 0
      %p85 = por %p83, %p84
      %p86 = scmp.ne.s32.totalorder %s75, %s78
      %p87 = scmp.eq.s32.totalorder %s14, 2
      %p88 = por %p86, %p87
      %p89 = scmp.ne.s32.totalorder %s78, %s79
      %p90 = scmp.eq.s32.totalorder %s14, 0
      %p91 = por %p89, %p90
      %p92 = scmp.ne.s32.totalorder %s78, %s79
      %p93 = scmp.eq.s32.totalorder %s15, 2
      %p94 = por %p92, %p93
      %p96 = scmp.ne.s32.totalorder %s79, %s95
      %p97 = scmp.eq.s32.totalorder %s15, 0
      %p98 = por %p96, %p97
      %s99 = ssub.s32 %s9, %s16
      %p100 = scmp.eq.s32.totalorder %s99, 0
      %s102 = sadd.s32 %s101, 1
      %s103 = scalar_select %p100, %s101, %s102
      %p106 = pneg %p100
      %p107 = scmp.eq.s32.totalorder %s9, 2
      %p108 = por %p106, %p107
      %p109 = scmp.ne.s32.totalorder %s101, %s104
      %p110 = scmp.eq.s32.totalorder %s9, 0
      %p111 = por %p109, %p110
      %p112 = scmp.ne.s32.totalorder %s101, %s104
      %p113 = scmp.eq.s32.totalorder %s14, 2
      %p114 = por %p112, %p113
      %p115 = scmp.ne.s32.totalorder %s104, %s105
      %p116 = scmp.eq.s32.totalorder %s14, 0
      %p117 = por %p115, %p116
      %p118 = scmp.ne.s32.totalorder %s104, %s105
      %p119 = scmp.eq.s32.totalorder %s15, 2
      %p120 = por %p118, %p119
      %p122 = scmp.ne.s32.totalorder %s105, %s121
      %p123 = scmp.eq.s32.totalorder %s15, 0
      %p124 = por %p122, %p123
      %p125 = scmp.le.s32.totalorder 1, %s9
      %p126 = scmp.lt.s32.totalorder %s9, 4
      %p127 = pnand %p125, %p126
      %p128 = pneg %p127
      // Predicated region
      $region9: #{multi_head_attention.4} parent=5 // pred_check
        _
      $region10: #{multi_head_attention.4} parent=5 // pred_check_branch
        %130 = sbr.rel (%p127) target = $region12
      $region11: #{multi_head_attention.4} parent=5 // pred_region
        %s131 = ssub.s32 %s9, 1
      $region12: #{multi_head_attention.4} parent=5 // pred_fallthru
        _
      %p132 = scmp.lt.s32.totalorder %s9, 3
      // Predicated region
      $region13: #{multi_head_attention.4} parent=5 // pred_check
        %p133 = pneg %p132
      $region14: #{multi_head_attention.4} parent=5 // pred_check_branch
        %135 = sbr.rel (%p133) target = $region16
      $region15: #{multi_head_attention.4} parent=5 // pred_region
        // Predicated region
        $region17: #{multi_head_attention.4} parent=15 // pred_check
          %p136 = pneg %p31
        $region18: #{multi_head_attention.4} parent=15 // pred_check_branch
          %138 = sbr.rel (%p136) target = $region20
        $region19: #{multi_head_attention.4} parent=15 // pred_region
          %s139 = sand.u32 %s21, 1
          %s140 = sand.u32 %s21, 1
          %s141 = smul.addr %s140, 16
          %s142 = scalar_lea.vmem [#allocation2], %s141
          %s143 = sadd.s32 %s9, 3
          %s144 = smul.addr %s143, 8
          %s145 = scalar_lea.vmem %s0, %s144
          // Predicated region
          $region21: #{multi_head_attention.4} parent=19 // pred_check
            _
          $region22: #{multi_head_attention.4} parent=19 // pred_check_branch
            %147 = sbr.rel (0) target = $region24
          $region23: #{multi_head_attention.4} parent=19 // pred_region
            // Predicated region
            $region25: #{multi_head_attention.4} parent=23 // pred_check
              _
            $region26: #{multi_head_attention.4} parent=23 // pred_check_branch
              %149 = sbr.rel (0) target = $region28
            $region27: #{multi_head_attention.4} parent=23 // pred_region
              // Predicated region
              $region40: #{multi_head_attention.4} parent=27 // pred_check
                _
              $region41: #{multi_head_attention.4} parent=27 // pred_check_branch
                %167 = sbr.rel (0) target = $region43
              $region42: #{multi_head_attention.4} parent=27 // pred_region
                loop: start=0, step=1, limit=1
                $region44: #{multi_head_attention.4} parent=42 // loop_pre_header
                  _
                $region45: #{multi_head_attention.4} parent=42 // loop_header
                  %s169 = sphi 0, %s173
                  %p170 = scmp.ge.s32.totalorder %s169, 1
                  %s174 = sphi %s145, %s145
                  %s175 = sphi %s142, %s142
                $region46: #{multi_head_attention.4} parent=42 // loop_header_branch
                  %172 = sbr.rel (%p170) target = $region50
                $region47: #{multi_head_attention.4} parent=42 // loop_body
                  %v176 = vld [vmem:[%s174] sm:$0xff]
                  %177 = vst [vmem:[%s175] sm:$0xff] %v176
                  %v178 = vld [vmem:[%s174 + $0x48] sm:$0xff]
                  %179 = vst [vmem:[%s175 + $0x8] sm:$0xff] %v178
                $region48: #{multi_head_attention.4} parent=42 // loop_footer
                  %s173 = sadd.s32 1, %s169
                $region49: #{multi_head_attention.4} parent=42 // loop_footer_branch
                  %168 = sbr.rel target = $region45
                $region50: #{multi_head_attention.4} parent=42 // loop_exit
                  _
              $region43: #{multi_head_attention.4} parent=27 // pred_fallthru
                _
              // Predicated region
              $region51: #{multi_head_attention.4} parent=27 // pred_check
                _
              $region52: #{multi_head_attention.4} parent=27 // pred_check_branch
                %181 = sbr.rel target = $region54
              $region53: #{multi_head_attention.4} parent=27 // pred_region
                _
              $region54: #{multi_head_attention.4} parent=27 // pred_fallthru
                _
            $region28: #{multi_head_attention.4} parent=23 // pred_fallthru
              _
            // Predicated region
            $region29: #{multi_head_attention.4} parent=23 // pred_check
              _
            $region30: #{multi_head_attention.4} parent=23 // pred_check_branch
              %151 = sbr.rel target = $region32
            $region31: #{multi_head_attention.4} parent=23 // pred_region
              %s153 = ssub.s32 256, 1
              loop: start=0, step=1, limit=1
              $region33: #{multi_head_attention.4} parent=31 // loop_pre_header
                _
              $region34: #{multi_head_attention.4} parent=31 // loop_header
                %s155 = sphi 0, %s159
                %p156 = scmp.ge.s32.totalorder %s155, 1
                %s160 = sphi %s145, %s145
                %s161 = sphi %s142, %s142
              $region35: #{multi_head_attention.4} parent=31 // loop_header_branch
                %158 = sbr.rel (%p156) target = $region39
              $region36: #{multi_head_attention.4} parent=31 // loop_body
                %v162 = vld [vmem:[%s160] sm:%s153]
                %163 = vst [vmem:[%s161] sm:%s153] %v162
                %v164 = vld [vmem:[%s160 + $0x48] sm:%s153]
                %165 = vst [vmem:[%s161 + $0x8] sm:%s153] %v164
              $region37: #{multi_head_attention.4} parent=31 // loop_footer
                %s159 = sadd.s32 1, %s155
              $region38: #{multi_head_attention.4} parent=31 // loop_footer_branch
                %154 = sbr.rel target = $region34
              $region39: #{multi_head_attention.4} parent=31 // loop_exit
                _
            $region32: #{multi_head_attention.4} parent=23 // pred_fallthru
              _
          $region24: #{multi_head_attention.4} parent=19 // pred_fallthru
            _
          %182 = vnop
        $region20: #{multi_head_attention.4} parent=15 // pred_fallthru
          _
        // Predicated region
        $region55: #{multi_head_attention.4} parent=15 // pred_check
          %p183 = pneg %p57
        $region56: #{multi_head_attention.4} parent=15 // pred_check_branch
          %185 = sbr.rel (%p183) target = $region58
        $region57: #{multi_head_attention.4} parent=15 // pred_region
          %s186 = sand.u32 %s47, 1
          %s187 = sand.u32 %s47, 1
          %s188 = smul.addr %s187, 16
          %s189 = scalar_lea.vmem [#allocation3], %s188
          %s190 = smul.addr %s9, 8
          %s191 = scalar_lea.vmem %s1, %s190
          // Predicated region
          $region59: #{multi_head_attention.4} parent=57 // pred_check
            _
          $region60: #{multi_head_attention.4} parent=57 // pred_check_branch
            %193 = sbr.rel (0) target = $region62
          $region61: #{multi_head_attention.4} parent=57 // pred_region
            // Predicated region
            $region63: #{multi_head_attention.4} parent=61 // pred_check
              _
            $region64: #{multi_head_attention.4} parent=61 // pred_check_branch
              %195 = sbr.rel (0) target = $region66
            $region65: #{multi_head_attention.4} parent=61 // pred_region
              // Predicated region
              $region78: #{multi_head_attention.4} parent=65 // pred_check
                _
              $region79: #{multi_head_attention.4} parent=65 // pred_check_branch
                %213 = sbr.rel (0) target = $region81
              $region80: #{multi_head_attention.4} parent=65 // pred_region
                loop: start=0, step=1, limit=1
                $region82: #{multi_head_attention.4} parent=80 // loop_pre_header
                  _
                $region83: #{multi_head_attention.4} parent=80 // loop_header
                  %s215 = sphi 0, %s219
                  %p216 = scmp.ge.s32.totalorder %s215, 1
                  %s220 = sphi %s191, %s191
                  %s221 = sphi %s189, %s189
                $region84: #{multi_head_attention.4} parent=80 // loop_header_branch
                  %218 = sbr.rel (%p216) target = $region88
                $region85: #{multi_head_attention.4} parent=80 // loop_body
                  %v222 = vld [vmem:[%s220] sm:$0xff]
                  %223 = vst [vmem:[%s221] sm:$0xff] %v222
                  %v224 = vld [vmem:[%s220 + $0x48] sm:$0xff]
                  %225 = vst [vmem:[%s221 + $0x8] sm:$0xff] %v224
                $region86: #{multi_head_attention.4} parent=80 // loop_footer
                  %s219 = sadd.s32 1, %s215
                $region87: #{multi_head_attention.4} parent=80 // loop_footer_branch
                  %214 = sbr.rel target = $region83
                $region88: #{multi_head_attention.4} parent=80 // loop_exit
                  _
              $region81: #{multi_head_attention.4} parent=65 // pred_fallthru
                _
              // Predicated region
              $region89: #{multi_head_attention.4} parent=65 // pred_check
                _
              $region90: #{multi_head_attention.4} parent=65 // pred_check_branch
                %227 = sbr.rel target = $region92
              $region91: #{multi_head_attention.4} parent=65 // pred_region
                _
              $region92: #{multi_head_attention.4} parent=65 // pred_fallthru
                _
            $region66: #{multi_head_attention.4} parent=61 // pred_fallthru
              _
            // Predicated region
            $region67: #{multi_head_attention.4} parent=61 // pred_check
              _
            $region68: #{multi_head_attention.4} parent=61 // pred_check_branch
              %197 = sbr.rel target = $region70
            $region69: #{multi_head_attention.4} parent=61 // pred_region
              %s199 = ssub.s32 256, 1
              loop: start=0, step=1, limit=1
              $region71: #{multi_head_attention.4} parent=69 // loop_pre_header
                _
              $region72: #{multi_head_attention.4} parent=69 // loop_header
                %s201 = sphi 0, %s205
                %p202 = scmp.ge.s32.totalorder %s201, 1
                %s206 = sphi %s191, %s191
                %s207 = sphi %s189, %s189
              $region73: #{multi_head_attention.4} parent=69 // loop_header_branch
                %204 = sbr.rel (%p202) target = $region77
              $region74: #{multi_head_attention.4} parent=69 // loop_body
                %v208 = vld [vmem:[%s206] sm:%s199]
                %209 = vst [vmem:[%s207] sm:%s199] %v208
                %v210 = vld [vmem:[%s206 + $0x48] sm:%s199]
                %211 = vst [vmem:[%s207 + $0x8] sm:%s199] %v210
              $region75: #{multi_head_attention.4} parent=69 // loop_footer
                %s205 = sadd.s32 1, %s201
              $region76: #{multi_head_attention.4} parent=69 // loop_footer_branch
                %200 = sbr.rel target = $region72
              $region77: #{multi_head_attention.4} parent=69 // loop_exit
                _
            $region70: #{multi_head_attention.4} parent=61 // pred_fallthru
              _
          $region62: #{multi_head_attention.4} parent=57 // pred_fallthru
            _
          %228 = vnop
        $region58: #{multi_head_attention.4} parent=15 // pred_fallthru
          _
        // Predicated region
        $region93: #{multi_head_attention.4} parent=15 // pred_check
          %p229 = pneg %p85
        $region94: #{multi_head_attention.4} parent=15 // pred_check_branch
          %231 = sbr.rel (%p229) target = $region96
        $region95: #{multi_head_attention.4} parent=15 // pred_region
          %s232 = sand.u32 %s75, 1
          %s233 = sand.u32 %s75, 1
          %s234 = smul.addr %s233, 16
          %s235 = scalar_lea.vmem [#allocation4], %s234
          %s236 = sadd.s32 %s9, 6
          %s237 = smul.addr %s236, 8
          %s238 = scalar_lea.vmem %s2, %s237
          // Predicated region
          $region97: #{multi_head_attention.4} parent=95 // pred_check
            _
          $region98: #{multi_head_attention.4} parent=95 // pred_check_branch
            %240 = sbr.rel (0) target = $region100
          $region99: #{multi_head_attention.4} parent=95 // pred_region
            // Predicated region
            $region101: #{multi_head_attention.4} parent=99 // pred_check
              _
            $region102: #{multi_head_attention.4} parent=99 // pred_check_branch
              %242 = sbr.rel (0) target = $region104
            $region103: #{multi_head_attention.4} parent=99 // pred_region
              // Predicated region
              $region116: #{multi_head_attention.4} parent=103 // pred_check
                _
              $region117: #{multi_head_attention.4} parent=103 // pred_check_branch
                %260 = sbr.rel (0) target = $region119
              $region118: #{multi_head_attention.4} parent=103 // pred_region
                loop: start=0, step=1, limit=1
                $region120: #{multi_head_attention.4} parent=118 // loop_pre_header
                  _
                $region121: #{multi_head_attention.4} parent=118 // loop_header
                  %s262 = sphi 0, %s266
                  %p263 = scmp.ge.s32.totalorder %s262, 1
                  %s267 = sphi %s238, %s238
                  %s268 = sphi %s235, %s235
                $region122: #{multi_head_attention.4} parent=118 // loop_header_branch
                  %265 = sbr.rel (%p263) target = $region126
                $region123: #{multi_head_attention.4} parent=118 // loop_body
                  %v269 = vld [vmem:[%s267] sm:$0xff]
                  %270 = vst [vmem:[%s268] sm:$0xff] %v269
                  %v271 = vld [vmem:[%s267 + $0x48] sm:$0xff]
                  %272 = vst [vmem:[%s268 + $0x8] sm:$0xff] %v271
                $region124: #{multi_head_attention.4} parent=118 // loop_footer
                  %s266 = sadd.s32 1, %s262
                $region125: #{multi_head_attention.4} parent=118 // loop_footer_branch
                  %261 = sbr.rel target = $region121
                $region126: #{multi_head_attention.4} parent=118 // loop_exit
                  _
              $region119: #{multi_head_attention.4} parent=103 // pred_fallthru
                _
              // Predicated region
              $region127: #{multi_head_attention.4} parent=103 // pred_check
                _
              $region128: #{multi_head_attention.4} parent=103 // pred_check_branch
                %274 = sbr.rel target = $region130
              $region129: #{multi_head_attention.4} parent=103 // pred_region
                _
              $region130: #{multi_head_attention.4} parent=103 // pred_fallthru
                _
            $region104: #{multi_head_attention.4} parent=99 // pred_fallthru
              _
            // Predicated region
            $region105: #{multi_head_attention.4} parent=99 // pred_check
              _
            $region106: #{multi_head_attention.4} parent=99 // pred_check_branch
              %244 = sbr.rel target = $region108
            $region107: #{multi_head_attention.4} parent=99 // pred_region
              %s246 = ssub.s32 256, 1
              loop: start=0, step=1, limit=1
              $region109: #{multi_head_attention.4} parent=107 // loop_pre_header
                _
              $region110: #{multi_head_attention.4} parent=107 // loop_header
                %s248 = sphi 0, %s252
                %p249 = scmp.ge.s32.totalorder %s248, 1
                %s253 = sphi %s238, %s238
                %s254 = sphi %s235, %s235
              $region111: #{multi_head_attention.4} parent=107 // loop_header_branch
                %251 = sbr.rel (%p249) target = $region115
              $region112: #{multi_head_attention.4} parent=107 // loop_body
                %v255 = vld [vmem:[%s253] sm:%s246]
                %256 = vst [vmem:[%s254] sm:%s246] %v255
                %v257 = vld [vmem:[%s253 + $0x48] sm:%s246]
                %258 = vst [vmem:[%s254 + $0x8] sm:%s246] %v257
              $region113: #{multi_head_attention.4} parent=107 // loop_footer
                %s252 = sadd.s32 1, %s248
              $region114: #{multi_head_attention.4} parent=107 // loop_footer_branch
                %247 = sbr.rel target = $region110
              $region115: #{multi_head_attention.4} parent=107 // loop_exit
                _
            $region108: #{multi_head_attention.4} parent=99 // pred_fallthru
              _
          $region100: #{multi_head_attention.4} parent=95 // pred_fallthru
            _
          %275 = vnop
        $region96: #{multi_head_attention.4} parent=15 // pred_fallthru
          _
      $region16: #{multi_head_attention.4} parent=5 // pred_fallthru
        _
      %p276 = scmp.le.s32.totalorder 1, %s9
      %p277 = scmp.lt.s32.totalorder %s9, 4
      %p278 = pnand %p276, %p277
      %p279 = pneg %p278
      // Predicated region
      $region131: #{multi_head_attention.4} parent=5 // pred_check
        _
      $region132: #{multi_head_attention.4} parent=5 // pred_check_branch
        %281 = sbr.rel (%p278) target = $region134
      $region133: #{multi_head_attention.4} parent=5 // pred_region
        %s282 = ssub.s32 %s9, 1
        %s283 = sand.u32 %s24, 1
        %s284 = sand.u32 %s24, 1
        %s285 = smul.addr %s284, 16
        %s286 = scalar_lea.vmem [#allocation2], %s285
        // Predicated region
        $region135: #{multi_head_attention.4} parent=133 // pred_check
          %p287 = pneg %p37
        $region136: #{multi_head_attention.4} parent=133 // pred_check_branch
          %289 = sbr.rel (%p287) target = $region138
        $region137: #{multi_head_attention.4} parent=133 // pred_region
          _
        $region138: #{multi_head_attention.4} parent=133 // pred_fallthru
          _
        %s290 = sand.u32 %s50, 1
        %s291 = sand.u32 %s50, 1
        %s292 = smul.addr %s291, 16
        %s293 = scalar_lea.vmem [#allocation3], %s292
        // Predicated region
        $region139: #{multi_head_attention.4} parent=133 // pred_check
          %p294 = pneg %p63
        $region140: #{multi_head_attention.4} parent=133 // pred_check_branch
          %296 = sbr.rel (%p294) target = $region142
        $region141: #{multi_head_attention.4} parent=133 // pred_region
          _
        $region142: #{multi_head_attention.4} parent=133 // pred_fallthru
          _
        %s297 = sand.u32 %s78, 1
        %s298 = sand.u32 %s78, 1
        %s299 = smul.addr %s298, 16
        %s300 = scalar_lea.vmem [#allocation4], %s299
        // Predicated region
        $region143: #{multi_head_attention.4} parent=133 // pred_check
          %p301 = pneg %p91
        $region144: #{multi_head_attention.4} parent=133 // pred_check_branch
          %303 = sbr.rel (%p301) target = $region146
        $region145: #{multi_head_attention.4} parent=133 // pred_region
          _
        $region146: #{multi_head_attention.4} parent=133 // pred_fallthru
          _
        %s304 = sand.u32 %s24, 1
        %s305 = sand.u32 %s24, 1
        %s306 = smul.addr %s305, 16
        %s307 = scalar_lea.vmem [#allocation2], %s306
        %p308 = pneg %p37
        %p309 = pneg %p34
        %s310 = sand.u32 %s50, 1
        %s311 = sand.u32 %s50, 1
        %s312 = smul.addr %s311, 16
        %s313 = scalar_lea.vmem [#allocation3], %s312
        %p314 = pneg %p63
        %p315 = pneg %p60
        %s316 = sand.u32 %s78, 1
        %s317 = sand.u32 %s78, 1
        %s318 = smul.addr %s317, 16
        %s319 = scalar_lea.vmem [#allocation4], %s318
        %p320 = pneg %p91
        %p321 = pneg %p88
        %p322 = pneg %p117
        %p323 = pneg %p114
        %s324 = sand.u32 %s104, 1
        %s325 = sand.u32 %s104, 1
        %s326 = smul.addr %s325, 16
        %s327 = scalar_lea.vmem [#allocation5], %s326
        %s328 = sadd.s32 %s14, 3
        %s329 = sadd.s32 %s14, 6
        %v331 = vld [vmem:[%s286] sm:$0xff]
        %v332 = vld [vmem:[%s286 + $0x8] sm:$0xff]
        %v333 = vld [vmem:[%s293] sm:$0xff]
        %v334 = vld [vmem:[%s293 + $0x8] sm:$0xff]
        %v335 = vld [vmem:[%s300] sm:$0xff]
        %v336 = vld [vmem:[%s300 + $0x8] sm:$0xff]
        %v337 = vlaneseq
        %v338 = vshrl.u32 %v337, 7
        %v339 = vlaneseq
        %v340 = vand.u32 %v339, 127
        %vm341 = vcmp.le.s32.totalorder %v340, %v338
        %v342 = vand.u32 2147483647, %v331
        %v343 = vand.u32 2147483647, %v332
        %vm344 = vcmask 523264
        %v345 = vsel %vm344, %v342, -inf
        %v346 = vsel %vm344, %v343, -inf
        %v347 = vmax.f32 %v345, %v346
        %348 = vmax.xlane.f32.xlu0 %v347
        %v349 = vpop.xlane.xlu0 %348
        %v350 = vrot.slane %v349, 4
        %v351 = vmax.f32 %v349, %v350
        %v352 = vrot.slane %v351, 2
        %v353 = vmax.f32 %v351, %v352
        %v354 = vrot.slane %v353, 1
        %v355 = vmax.f32 %v353, %v354
        %s356 = vtos %v355
        %s357 = smax.f32 %s356, 1e-08
        %v358 = vrcp.pop 127.0
        %v359 = vmul.f32 127.0, %v358
        %v360 = vsub.f32 1.0, %v359
        %v361 = vmul.f32 %v358, %v360
        %v362 = vadd.f32 %v358, %v361
        %vm363 = vweird.f32 %v358
        %v364 = vsel %vm363, %v358, %v362
        %s365 = vtos %v364
        %s366 = smul.f32 %s357, %s365
        %v367 = vstv %s357
        %v368 = vrcp.pop %v367
        %v369 = vmul.f32 %v367, %v368
        %v370 = vsub.f32 1.0, %v369
        %v371 = vmul.f32 %v368, %v370
        %v372 = vadd.f32 %v368, %v371
        %vm373 = vweird.f32 %v367
        %vm374 = vweird.f32 %v368
        %vm375 = vmor %vm373, %vm374
        %v376 = vsel %vm375, %v368, %v372
        %v377 = vand.u32 2147483647, %v367
        %vm378 = vcmp.eq.f32.partialorder %v377, 8.507059e+37
        %v379 = vand.u32 %v367, 2147483648
        %v380 = vor.u32 1.1754944e-38, %v379
        %v381 = vsel %vm378, %v380, %v376
        %s382 = vtos %v381
        %s383 = smul.f32 127.0, %s382
        %v384 = vstv %s383
        %v385 = vmul.f32 %v331, %v384
        %v386 = vmul.f32 %v332, %v384
        %v387 = vround.ne.pseudo %v385
        %v388 = vround.ne.pseudo %v386
        %v389 = vmax.f32 %v387, -127.0
        %v390 = vmax.f32 %v388, -127.0
        %v391 = vmin.f32 %v389, 127.0
        %v392 = vmin.f32 %v390, 127.0
        %v393 = vpack.c.bf16 %v391, %v391
        %v394 = vpack.c.bf16 %v392, %v392
        %v395 = vand.u32 2147483647, %v333
        %v396 = vand.u32 2147483647, %v334
        %v397 = vsel %vm344, %v395, -inf
        %v398 = vsel %vm344, %v396, -inf
        %v399 = vmax.f32 %v397, %v398
        %400 = vmax.xlane.f32.xlu0 %v399
        %v401 = vpop.xlane.xlu0 %400
        %v402 = vrot.slane %v401, 4
        %v403 = vmax.f32 %v401, %v402
        %v404 = vrot.slane %v403, 2
        %v405 = vmax.f32 %v403, %v404
        %v406 = vrot.slane %v405, 1
        %v407 = vmax.f32 %v405, %v406
        %s408 = vtos %v407
        %s409 = smax.f32 %s408, 1e-08
        %v410 = vrcp.pop 127.0
        %v411 = vmul.f32 127.0, %v410
        %v412 = vsub.f32 1.0, %v411
        %v413 = vmul.f32 %v410, %v412
        %v414 = vadd.f32 %v410, %v413
        %vm415 = vweird.f32 %v410
        %v416 = vsel %vm415, %v410, %v414
        %s417 = vtos %v416
        %s418 = smul.f32 %s409, %s417
        %v419 = vstv %s409
        %v420 = vrcp.pop %v419
        %v421 = vmul.f32 %v419, %v420
        %v422 = vsub.f32 1.0, %v421
        %v423 = vmul.f32 %v420, %v422
        %v424 = vadd.f32 %v420, %v423
        %vm425 = vweird.f32 %v419
        %vm426 = vweird.f32 %v420
        %vm427 = vmor %vm425, %vm426
        %v428 = vsel %vm427, %v420, %v424
        %v429 = vand.u32 2147483647, %v419
        %vm430 = vcmp.eq.f32.partialorder %v429, 8.507059e+37
        %v431 = vand.u32 %v419, 2147483648
        %v432 = vor.u32 1.1754944e-38, %v431
        %v433 = vsel %vm430, %v432, %v428
        %s434 = vtos %v433
        %s435 = smul.f32 127.0, %s434
        %v436 = vstv %s435
        %v437 = vmul.f32 %v333, %v436
        %v438 = vmul.f32 %v334, %v436
        %v439 = vround.ne.pseudo %v437
        %v440 = vround.ne.pseudo %v438
        %v441 = vmax.f32 %v439, -127.0
        %v442 = vmax.f32 %v440, -127.0
        %v443 = vmin.f32 %v441, 127.0
        %v444 = vmin.f32 %v442, 127.0
        %v445 = vpack.c.bf16 %v443, %v443
        %v446 = vpack.c.bf16 %v444, %v444
        %v447 = vand.u32 2147483647, %v335
        %v448 = vand.u32 2147483647, %v336
        %v449 = vsel %vm344, %v447, -inf
        %v450 = vsel %vm344, %v448, -inf
        %v451 = vmax.f32 %v449, %v450
        %452 = vmax.xlane.f32.xlu0 %v451
        %v453 = vpop.xlane.xlu0 %452
        %v454 = vrot.slane %v453, 4
        %v455 = vmax.f32 %v453, %v454
        %v456 = vrot.slane %v455, 2
        %v457 = vmax.f32 %v455, %v456
        %v458 = vrot.slane %v457, 1
        %v459 = vmax.f32 %v457, %v458
        %s460 = vtos %v459
        %s461 = smax.f32 %s460, 1e-08
        %v462 = vrcp.pop 127.0
        %v463 = vmul.f32 127.0, %v462
        %v464 = vsub.f32 1.0, %v463
        %v465 = vmul.f32 %v462, %v464
        %v466 = vadd.f32 %v462, %v465
        %vm467 = vweird.f32 %v462
        %v468 = vsel %vm467, %v462, %v466
        %s469 = vtos %v468
        %s470 = smul.f32 %s461, %s469
        %v471 = vstv %s461
        %v472 = vrcp.pop %v471
        %v473 = vmul.f32 %v471, %v472
        %v474 = vsub.f32 1.0, %v473
        %v475 = vmul.f32 %v472, %v474
        %v476 = vadd.f32 %v472, %v475
        %vm477 = vweird.f32 %v471
        %vm478 = vweird.f32 %v472
        %vm479 = vmor %vm477, %vm478
        %v480 = vsel %vm479, %v472, %v476
        %v481 = vand.u32 2147483647, %v471
        %vm482 = vcmp.eq.f32.partialorder %v481, 8.507059e+37
        %v483 = vand.u32 %v471, 2147483648
        %v484 = vor.u32 1.1754944e-38, %v483
        %v485 = vsel %vm482, %v484, %v480
        %s486 = vtos %v485
        %s487 = smul.f32 127.0, %s486
        %v488 = vstv %s487
        %v489 = vmul.f32 %v335, %v488
        %v490 = vmul.f32 %v336, %v488
        %v491 = vround.ne.pseudo %v489
        %v492 = vround.ne.pseudo %v490
        %v493 = vmax.f32 %v491, -127.0
        %v494 = vmax.f32 %v492, -127.0
        %v495 = vmin.f32 %v493, 127.0
        %v496 = vmin.f32 %v494, 127.0
        %v497 = vpack.c.bf16 %v495, %v495
        %v498 = vpack.c.bf16 %v496, %v496
        %v500 = vsel %vm344, %v393, 0
        %v503 = vsel %vm344, %v445, 0
        %505 = vmatpush.bf16.xpose.msra.mxu0 0
        %506 = vmatpush.bf16.xpose.msra.mxu0 0
        %507 = vmatpush.bf16.xpose.msra.mxu0 0
        %508 = vmatpush.bf16.xpose.msra.mxu0 0
        %509 = vmatpush.bf16.xpose.msra.mxu0 0
        %510 = vmatpush.bf16.xpose.msra.mxu0 0
        %511 = vmatpush.bf16.xpose.msra.mxu0 0
        %512 = vmatpush.bf16.xpose.msra.mxu0 %v503
        %513 = vmatmul.bf16.gmra.mxu0 %v500
        %v514 = vpop.f32.mrf.mxu0
        %v515 = vadd.f32 0.0, %v514
        %v516 = vpop.f32.mrf.mxu0
        %517 = vdwg.mxu0
        %v519 = vsel %vm344, %v394, 0
        %v522 = vsel %vm344, %v446, 0
        %524 = vmatpush.bf16.xpose.msra.mxu0 0
        %525 = vmatpush.bf16.xpose.msra.mxu0 0
        %526 = vmatpush.bf16.xpose.msra.mxu0 0
        %527 = vmatpush.bf16.xpose.msra.mxu0 0
        %528 = vmatpush.bf16.xpose.msra.mxu0 0
        %529 = vmatpush.bf16.xpose.msra.mxu0 0
        %530 = vmatpush.bf16.xpose.msra.mxu0 0
        %531 = vmatpush.bf16.xpose.msra.mxu0 %v522
        %532 = vmatmul.bf16.gmra.mxu0 %v519
        %v533 = vpop.f32.mrf.mxu0
        %v534 = vadd.f32 0.0, %v533
        %v535 = vpop.f32.mrf.mxu0
        %536 = vdwg.mxu0
        %s537 = smul.f32 %s366, %s418
        %s538 = smul.f32 %s537, 0.125
        %v539 = vstv %s538
        %v540 = vmul.f32 %v515, %v539
        %v541 = vmul.f32 %v534, %v539
        %v542 = vsel %vm341, 1, 0
        %vm543 = vcmp.eq.s32.totalorder %v542, 1
        %v544 = vsel %vm543, %v540, -inf
        %v545 = vsel %vm543, %v541, -inf
        %vm546 = vcmask 64512
        %v547 = vsel %vm546, %v544, -inf
        %548 = vmax.xlane.f32.xlu0 %v547
        %v549 = vpop.xlane.xlu0 %548
        %v550 = vsel %vm546, %v545, -inf
        %551 = vmax.xlane.f32.xlu0 %v550
        %v552 = vpop.xlane.xlu0 %551
        %v553 = vsub.f32 %v544, %v549
        %v554 = vsub.f32 %v545, %v552
        %v555 = vmul.f32 %v553, 1.442695
        %v556 = vpow.pop %v555
        %v557 = vmul.f32 %v554, 1.442695
        %v558 = vpow.pop %v557
        %v559 = vsel %vm546, %v556, 0.0
        %560 = vadd.xlane.f32.xlu0 %v559
        %v561 = vpop.xlane.xlu0 %560
        %v562 = vsel %vm546, %v558, 0.0
        %563 = vadd.xlane.f32.xlu0 %v562
        %v564 = vpop.xlane.xlu0 %563
        %v565 = vrcp.pop %v561
        %v566 = vmul.f32 %v561, %v565
        %v567 = vsub.f32 1.0, %v566
        %v568 = vmul.f32 %v565, %v567
        %v569 = vadd.f32 %v565, %v568
        %vm570 = vweird.f32 %v561
        %vm571 = vweird.f32 %v565
        %vm572 = vmor %vm570, %vm571
        %v573 = vsel %vm572, %v565, %v569
        %v574 = vand.u32 2147483647, %v561
        %vm575 = vcmp.eq.f32.partialorder %v574, 8.507059e+37
        %v576 = vand.u32 %v561, 2147483648
        %v577 = vor.u32 1.1754944e-38, %v576
        %v578 = vsel %vm575, %v577, %v573
        %v579 = vmul.f32 1.0, %v578
        %v580 = vrcp.pop %v564
        %v581 = vmul.f32 %v564, %v580
        %v582 = vsub.f32 1.0, %v581
        %v583 = vmul.f32 %v580, %v582
        %v584 = vadd.f32 %v580, %v583
        %vm585 = vweird.f32 %v564
        %vm586 = vweird.f32 %v580
        %vm587 = vmor %vm585, %vm586
        %v588 = vsel %vm587, %v580, %v584
        %v589 = vand.u32 2147483647, %v564
        %vm590 = vcmp.eq.f32.partialorder %v589, 8.507059e+37
        %v591 = vand.u32 %v564, 2147483648
        %v592 = vor.u32 1.1754944e-38, %v591
        %v593 = vsel %vm590, %v592, %v588
        %v594 = vmul.f32 1.0, %v593
        %v595 = vmul.f32 %v556, %v579
        %v596 = vmul.f32 %v558, %v594
        %v597 = vmul.f32 %v595, 256.0
        %v598 = vmul.f32 %v596, 256.0
        %v599 = vfloor.f32 %v597
        %v600 = vfloor.f32 %v598
        %v601 = vpack.c.bf16 %v599, %v599
        %v602 = vpack.c.bf16 %v600, %v600
        %v604 = vsel %vm546, %v601, 0
        %vm606 = vcmask 1043456
        %v608 = vsel %vm606, %v497, 0
        %610 = vmatpush.bf16.msra.mxu0 0
        %611 = vmatpush.bf16.msra.mxu0 0
        %612 = vmatpush.bf16.msra.mxu0 0
        %613 = vmatpush.bf16.msra.mxu0 0
        %614 = vmatpush.bf16.msra.mxu0 0
        %615 = vmatpush.bf16.msra.mxu0 0
        %616 = vmatpush.bf16.msra.mxu0 0
        %617 = vmatpush.bf16.msra.mxu0 %v608
        %618 = vmatmul.bf16.gmra.mxu0 %v604
        %v619 = vpop.f32.mrf.mxu0
        %v620 = vadd.f32 0.0, %v619
        %v621 = vpop.f32.mrf.mxu0
        %622 = vdwg.mxu0
        %v624 = vsel %vm546, %v602, 0
        %v627 = vsel %vm606, %v498, 0
        %629 = vmatpush.bf16.msra.mxu0 0
        %630 = vmatpush.bf16.msra.mxu0 0
        %631 = vmatpush.bf16.msra.mxu0 0
        %632 = vmatpush.bf16.msra.mxu0 0
        %633 = vmatpush.bf16.msra.mxu0 0
        %634 = vmatpush.bf16.msra.mxu0 0
        %635 = vmatpush.bf16.msra.mxu0 0
        %636 = vmatpush.bf16.msra.mxu0 %v627
        %637 = vmatmul.bf16.gmra.mxu0 %v624
        %v638 = vpop.f32.mrf.mxu0
        %v639 = vadd.f32 0.0, %v638
        %v640 = vpop.f32.mrf.mxu0
        %641 = vdwg.mxu0
        %s642 = smul.f32 %s470, 0.00390625
        %s643 = smul.f32 %s642, 0.00390625
        %v644 = vstv %s643
        %v645 = vmul.f32 %v620, %v644
        %v646 = vmul.f32 %v639, %v644
        %vm647 = vcmask 1048064
        %v648 = vsel %vm647, %v342, -inf
        %v649 = vsel %vm647, %v343, -inf
        %v650 = vmax.f32 %v648, %v649
        %651 = vmax.xlane.f32.xlu0 %v650
        %v652 = vpop.xlane.xlu0 %651
        %v653 = vrot.slane %v652, 4
        %v654 = vmax.f32 %v652, %v653
        %v655 = vrot.slane %v654, 2
        %v656 = vmax.f32 %v654, %v655
        %v657 = vrot.slane %v656, 1
        %v658 = vmax.f32 %v656, %v657
        %s659 = vtos %v658
        %s660 = smax.f32 %s659, 1e-08
        %v661 = vrcp.pop 127.0
        %v662 = vmul.f32 127.0, %v661
        %v663 = vsub.f32 1.0, %v662
        %v664 = vmul.f32 %v661, %v663
        %v665 = vadd.f32 %v661, %v664
        %vm666 = vweird.f32 %v661
        %v667 = vsel %vm666, %v661, %v665
        %s668 = vtos %v667
        %s669 = smul.f32 %s660, %s668
        %v670 = vstv %s660
        %v671 = vrcp.pop %v670
        %v672 = vmul.f32 %v670, %v671
        %v673 = vsub.f32 1.0, %v672
        %v674 = vmul.f32 %v671, %v673
        %v675 = vadd.f32 %v671, %v674
        %vm676 = vweird.f32 %v670
        %vm677 = vweird.f32 %v671
        %vm678 = vmor %vm676, %vm677
        %v679 = vsel %vm678, %v671, %v675
        %v680 = vand.u32 2147483647, %v670
        %vm681 = vcmp.eq.f32.partialorder %v680, 8.507059e+37
        %v682 = vand.u32 %v670, 2147483648
        %v683 = vor.u32 1.1754944e-38, %v682
        %v684 = vsel %vm681, %v683, %v679
        %s685 = vtos %v684
        %s686 = smul.f32 127.0, %s685
        %v687 = vstv %s686
        %v688 = vmul.f32 %v331, %v687
        %v689 = vmul.f32 %v332, %v687
        %v690 = vround.ne.pseudo %v688
        %v691 = vround.ne.pseudo %v689
        %v692 = vmax.f32 %v690, -127.0
        %v693 = vmax.f32 %v691, -127.0
        %v694 = vmin.f32 %v692, 127.0
        %v695 = vmin.f32 %v693, 127.0
        %v696 = vpack.c.bf16 %v694, %v694
        %v697 = vpack.c.bf16 %v695, %v695
        %v698 = vsel %vm647, %v395, -inf
        %v699 = vsel %vm647, %v396, -inf
        %v700 = vmax.f32 %v698, %v699
        %701 = vmax.xlane.f32.xlu0 %v700
        %v702 = vpop.xlane.xlu0 %701
        %v703 = vrot.slane %v702, 4
        %v704 = vmax.f32 %v702, %v703
        %v705 = vrot.slane %v704, 2
        %v706 = vmax.f32 %v704, %v705
        %v707 = vrot.slane %v706, 1
        %v708 = vmax.f32 %v706, %v707
        %s709 = vtos %v708
        %s710 = smax.f32 %s709, 1e-08
        %v711 = vrcp.pop 127.0
        %v712 = vmul.f32 127.0, %v711
        %v713 = vsub.f32 1.0, %v712
        %v714 = vmul.f32 %v711, %v713
        %v715 = vadd.f32 %v711, %v714
        %vm716 = vweird.f32 %v711
        %v717 = vsel %vm716, %v711, %v715
        %s718 = vtos %v717
        %s719 = smul.f32 %s710, %s718
        %v720 = vstv %s710
        %v721 = vrcp.pop %v720
        %v722 = vmul.f32 %v720, %v721
        %v723 = vsub.f32 1.0, %v722
        %v724 = vmul.f32 %v721, %v723
        %v725 = vadd.f32 %v721, %v724
        %vm726 = vweird.f32 %v720
        %vm727 = vweird.f32 %v721
        %vm728 = vmor %vm726, %vm727
        %v729 = vsel %vm728, %v721, %v725
        %v730 = vand.u32 2147483647, %v720
        %vm731 = vcmp.eq.f32.partialorder %v730, 8.507059e+37
        %v732 = vand.u32 %v720, 2147483648
        %v733 = vor.u32 1.1754944e-38, %v732
        %v734 = vsel %vm731, %v733, %v729
        %s735 = vtos %v734
        %s736 = smul.f32 127.0, %s735
        %v737 = vstv %s736
        %v738 = vmul.f32 %v333, %v737
        %v739 = vmul.f32 %v334, %v737
        %v740 = vround.ne.pseudo %v738
        %v741 = vround.ne.pseudo %v739
        %v742 = vmax.f32 %v740, -127.0
        %v743 = vmax.f32 %v741, -127.0
        %v744 = vmin.f32 %v742, 127.0
        %v745 = vmin.f32 %v743, 127.0
        %v746 = vpack.c.bf16 %v744, %v744
        %v747 = vpack.c.bf16 %v745, %v745
        %v748 = vsel %vm647, %v447, -inf
        %v749 = vsel %vm647, %v448, -inf
        %v750 = vmax.f32 %v748, %v749
        %751 = vmax.xlane.f32.xlu0 %v750
        %v752 = vpop.xlane.xlu0 %751
        %v753 = vrot.slane %v752, 4
        %v754 = vmax.f32 %v752, %v753
        %v755 = vrot.slane %v754, 2
        %v756 = vmax.f32 %v754, %v755
        %v757 = vrot.slane %v756, 1
        %v758 = vmax.f32 %v756, %v757
        %s759 = vtos %v758
        %s760 = smax.f32 %s759, 1e-08
        %v761 = vrcp.pop 127.0
        %v762 = vmul.f32 127.0, %v761
        %v763 = vsub.f32 1.0, %v762
        %v764 = vmul.f32 %v761, %v763
        %v765 = vadd.f32 %v761, %v764
        %vm766 = vweird.f32 %v761
        %v767 = vsel %vm766, %v761, %v765
        %s768 = vtos %v767
        %s769 = smul.f32 %s760, %s768
        %v770 = vstv %s760
        %v771 = vrcp.pop %v770
        %v772 = vmul.f32 %v770, %v771
        %v773 = vsub.f32 1.0, %v772
        %v774 = vmul.f32 %v771, %v773
        %v775 = vadd.f32 %v771, %v774
        %vm776 = vweird.f32 %v770
        %vm777 = vweird.f32 %v771
        %vm778 = vmor %vm776, %vm777
        %v779 = vsel %vm778, %v771, %v775
        %v780 = vand.u32 2147483647, %v770
        %vm781 = vcmp.eq.f32.partialorder %v780, 8.507059e+37
        %v782 = vand.u32 %v770, 2147483648
        %v783 = vor.u32 1.1754944e-38, %v782
        %v784 = vsel %vm781, %v783, %v779
        %s785 = vtos %v784
        %s786 = smul.f32 127.0, %s785
        %v787 = vstv %s786
        %v788 = vmul.f32 %v335, %v787
        %v789 = vmul.f32 %v336, %v787
        %v790 = vround.ne.pseudo %v788
        %v791 = vround.ne.pseudo %v789
        %v792 = vmax.f32 %v790, -127.0
        %v793 = vmax.f32 %v791, -127.0
        %v794 = vmin.f32 %v792, 127.0
        %v795 = vmin.f32 %v793, 127.0
        %v796 = vpack.c.bf16 %v794, %v794
        %v797 = vpack.c.bf16 %v795, %v795
        %v799 = vunpack.c.l.b16 %v696
        %v800 = vpack.c.b16 %v799, %v799
        %801 = vrot.lane.b32.xlu0 %v800, 64
        %v802 = vpop.permute.xlu0 %801
        %v804 = vunpack.c.l.b16 %v746
        %v805 = vpack.c.b16 %v804, %v804
        %806 = vrot.lane.b32.xlu0 %v805, 64
        %v807 = vpop.permute.xlu0 %806
        %v809 = vsel %vm344, %v802, 0
        %v812 = vsel %vm344, %v807, 0
        %814 = vmatpush.bf16.xpose.msra.mxu0 0
        %815 = vmatpush.bf16.xpose.msra.mxu0 0
        %816 = vmatpush.bf16.xpose.msra.mxu0 0
        %817 = vmatpush.bf16.xpose.msra.mxu0 0
        %818 = vmatpush.bf16.xpose.msra.mxu0 0
        %819 = vmatpush.bf16.xpose.msra.mxu0 0
        %820 = vmatpush.bf16.xpose.msra.mxu0 0
        %821 = vmatpush.bf16.xpose.msra.mxu0 %v812
        %822 = vmatmul.bf16.gmra.mxu0 %v809
        %v823 = vpop.f32.mrf.mxu0
        %v824 = vadd.f32 0.0, %v823
        %v825 = vpop.f32.mrf.mxu0
        %826 = vdwg.mxu0
        %v828 = vunpack.c.l.b16 %v697
        %v829 = vpack.c.b16 %v828, %v828
        %830 = vrot.lane.b32.xlu0 %v829, 64
        %v831 = vpop.permute.xlu0 %830
        %v833 = vunpack.c.l.b16 %v747
        %v834 = vpack.c.b16 %v833, %v833
        %835 = vrot.lane.b32.xlu0 %v834, 64
        %v836 = vpop.permute.xlu0 %835
        %v838 = vsel %vm344, %v831, 0
        %v841 = vsel %vm344, %v836, 0
        %843 = vmatpush.bf16.xpose.msra.mxu0 0
        %844 = vmatpush.bf16.xpose.msra.mxu0 0
        %845 = vmatpush.bf16.xpose.msra.mxu0 0
        %846 = vmatpush.bf16.xpose.msra.mxu0 0
        %847 = vmatpush.bf16.xpose.msra.mxu0 0
        %848 = vmatpush.bf16.xpose.msra.mxu0 0
        %849 = vmatpush.bf16.xpose.msra.mxu0 0
        %850 = vmatpush.bf16.xpose.msra.mxu0 %v841
        %851 = vmatmul.bf16.gmra.mxu0 %v838
        %v852 = vpop.f32.mrf.mxu0
        %v853 = vadd.f32 0.0, %v852
        %v854 = vpop.f32.mrf.mxu0
        %855 = vdwg.mxu0
        %s856 = smul.f32 %s669, %s719
        %s857 = smul.f32 %s856, 0.125
        %v858 = vstv %s857
        %v859 = vmul.f32 %v824, %v858
        %v860 = vmul.f32 %v853, %v858
        %v861 = vsel %vm543, %v859, -inf
        %v862 = vsel %vm543, %v860, -inf
        %v863 = vsel %vm546, %v861, -inf
        %864 = vmax.xlane.f32.xlu0 %v863
        %v865 = vpop.xlane.xlu0 %864
        %v866 = vsel %vm546, %v862, -inf
        %867 = vmax.xlane.f32.xlu0 %v866
        %v868 = vpop.xlane.xlu0 %867
        %v869 = vsub.f32 %v861, %v865
        %v870 = vsub.f32 %v862, %v868
        %v871 = vmul.f32 %v869, 1.442695
        %v872 = vpow.pop %v871
        %v873 = vmul.f32 %v870, 1.442695
        %v874 = vpow.pop %v873
        %v875 = vsel %vm546, %v872, 0.0
        %876 = vadd.xlane.f32.xlu0 %v875
        %v877 = vpop.xlane.xlu0 %876
        %v878 = vsel %vm546, %v874, 0.0
        %879 = vadd.xlane.f32.xlu0 %v878
        %v880 = vpop.xlane.xlu0 %879
        %v881 = vrcp.pop %v877
        %v882 = vmul.f32 %v877, %v881
        %v883 = vsub.f32 1.0, %v882
        %v884 = vmul.f32 %v881, %v883
        %v885 = vadd.f32 %v881, %v884
        %vm886 = vweird.f32 %v877
        %vm887 = vweird.f32 %v881
        %vm888 = vmor %vm886, %vm887
        %v889 = vsel %vm888, %v881, %v885
        %v890 = vand.u32 2147483647, %v877
        %vm891 = vcmp.eq.f32.partialorder %v890, 8.507059e+37
        %v892 = vand.u32 %v877, 2147483648
        %v893 = vor.u32 1.1754944e-38, %v892
        %v894 = vsel %vm891, %v893, %v889
        %v895 = vmul.f32 1.0, %v894
        %v896 = vrcp.pop %v880
        %v897 = vmul.f32 %v880, %v896
        %v898 = vsub.f32 1.0, %v897
        %v899 = vmul.f32 %v896, %v898
        %v900 = vadd.f32 %v896, %v899
        %vm901 = vweird.f32 %v880
        %vm902 = vweird.f32 %v896
        %vm903 = vmor %vm901, %vm902
        %v904 = vsel %vm903, %v896, %v900
        %v905 = vand.u32 2147483647, %v880
        %vm906 = vcmp.eq.f32.partialorder %v905, 8.507059e+37
        %v907 = vand.u32 %v880, 2147483648
        %v908 = vor.u32 1.1754944e-38, %v907
        %v909 = vsel %vm906, %v908, %v904
        %v910 = vmul.f32 1.0, %v909
        %v911 = vmul.f32 %v872, %v895
        %v912 = vmul.f32 %v874, %v910
        %v913 = vmul.f32 %v911, 256.0
        %v914 = vmul.f32 %v912, 256.0
        %v915 = vfloor.f32 %v913
        %v916 = vfloor.f32 %v914
        %v917 = vpack.c.bf16 %v915, %v915
        %v918 = vpack.c.bf16 %v916, %v916
        %v920 = vunpack.c.l.b16 %v796
        %v921 = vpack.c.b16 %v920, %v920
        %922 = vrot.lane.b32.xlu0 %v921, 64
        %v923 = vpop.permute.xlu0 %922
        %v925 = vsel %vm546, %v917, 0
        %v928 = vsel %vm606, %v923, 0
        %930 = vmatpush.bf16.msra.mxu0 0
        %931 = vmatpush.bf16.msra.mxu0 0
        %932 = vmatpush.bf16.msra.mxu0 0
        %933 = vmatpush.bf16.msra.mxu0 0
        %934 = vmatpush.bf16.msra.mxu0 0
        %935 = vmatpush.bf16.msra.mxu0 0
        %936 = vmatpush.bf16.msra.mxu0 0
        %937 = vmatpush.bf16.msra.mxu0 %v928
        %938 = vmatmul.bf16.gmra.mxu0 %v925
        %v939 = vpop.f32.mrf.mxu0
        %v940 = vadd.f32 0.0, %v939
        %v941 = vpop.f32.mrf.mxu0
        %942 = vdwg.mxu0
        %v944 = vunpack.c.l.b16 %v797
        %v945 = vpack.c.b16 %v944, %v944
        %946 = vrot.lane.b32.xlu0 %v945, 64
        %v947 = vpop.permute.xlu0 %946
        %v949 = vsel %vm546, %v918, 0
        %v952 = vsel %vm606, %v947, 0
        %954 = vmatpush.bf16.msra.mxu0 0
        %955 = vmatpush.bf16.msra.mxu0 0
        %956 = vmatpush.bf16.msra.mxu0 0
        %957 = vmatpush.bf16.msra.mxu0 0
        %958 = vmatpush.bf16.msra.mxu0 0
        %959 = vmatpush.bf16.msra.mxu0 0
        %960 = vmatpush.bf16.msra.mxu0 0
        %961 = vmatpush.bf16.msra.mxu0 %v952
        %962 = vmatmul.bf16.gmra.mxu0 %v949
        %v963 = vpop.f32.mrf.mxu0
        %v964 = vadd.f32 0.0, %v963
        %v965 = vpop.f32.mrf.mxu0
        %966 = vdwg.mxu0
        %s967 = smul.f32 %s769, 0.00390625
        %s968 = smul.f32 %s967, 0.00390625
        %v969 = vstv %s968
        %v970 = vmul.f32 %v940, %v969
        %v971 = vmul.f32 %v964, %v969
        %974 = vrot.lane.b32.xlu0 %v970, 64
        %v975 = vpop.permute.xlu0 %974
        %976 = vrot.lane.b32.xlu0 %v971, 64
        %v977 = vpop.permute.xlu0 %976
        %v980 = vsel %vm344, %v645, %v975
        %v981 = vsel %vm344, %v646, %v977
        %982 = vst [vmem:[%s327] sm:$0xff] %v980
        %983 = vst [vmem:[%s327 + $0x8] sm:$0xff] %v981
        %s984 = sand.u32 %s104, 1
        %s985 = sand.u32 %s104, 1
        %s986 = smul.addr %s985, 16
        %s987 = scalar_lea.vmem [#allocation5], %s986
        // Predicated region
        $region147: #{multi_head_attention.4} parent=133 // pred_check
          %p988 = pneg %p114
        $region148: #{multi_head_attention.4} parent=133 // pred_check_branch
          %990 = sbr.rel (%p988) target = $region150
        $region149: #{multi_head_attention.4} parent=133 // pred_region
          %s991 = smul.addr %s14, 8
          %s992 = scalar_lea.vmem %s3, %s991
          // Predicated region
          $region151: #{multi_head_attention.4} parent=149 // pred_check
            _
          $region152: #{multi_head_attention.4} parent=149 // pred_check_branch
            %994 = sbr.rel (0) target = $region154
          $region153: #{multi_head_attention.4} parent=149 // pred_region
            // Predicated region
            $region155: #{multi_head_attention.4} parent=153 // pred_check
              _
            $region156: #{multi_head_attention.4} parent=153 // pred_check_branch
              %996 = sbr.rel (0) target = $region158
            $region157: #{multi_head_attention.4} parent=153 // pred_region
              // Predicated region
              $region170: #{multi_head_attention.4} parent=157 // pred_check
                _
              $region171: #{multi_head_attention.4} parent=157 // pred_check_branch
                %1014 = sbr.rel (0) target = $region173
              $region172: #{multi_head_attention.4} parent=157 // pred_region
                loop: start=0, step=1, limit=1
                $region174: #{multi_head_attention.4} parent=172 // loop_pre_header
                  _
                $region175: #{multi_head_attention.4} parent=172 // loop_header
                  %s1016 = sphi 0, %s1020
                  %p1017 = scmp.ge.s32.totalorder %s1016, 1
                  %s1021 = sphi %s987, %s987
                  %s1022 = sphi %s992, %s992
                $region176: #{multi_head_attention.4} parent=172 // loop_header_branch
                  %1019 = sbr.rel (%p1017) target = $region180
                $region177: #{multi_head_attention.4} parent=172 // loop_body
                  %v1023 = vld [vmem:[%s1021] sm:$0xff]
                  %1024 = vst [vmem:[%s1022] sm:$0xff] %v1023
                  %v1025 = vld [vmem:[%s1021 + $0x8] sm:$0xff]
                  %1026 = vst [vmem:[%s1022 + $0x18] sm:$0xff] %v1025
                $region178: #{multi_head_attention.4} parent=172 // loop_footer
                  %s1020 = sadd.s32 1, %s1016
                $region179: #{multi_head_attention.4} parent=172 // loop_footer_branch
                  %1015 = sbr.rel target = $region175
                $region180: #{multi_head_attention.4} parent=172 // loop_exit
                  _
              $region173: #{multi_head_attention.4} parent=157 // pred_fallthru
                _
              // Predicated region
              $region181: #{multi_head_attention.4} parent=157 // pred_check
                _
              $region182: #{multi_head_attention.4} parent=157 // pred_check_branch
                %1028 = sbr.rel target = $region184
              $region183: #{multi_head_attention.4} parent=157 // pred_region
                _
              $region184: #{multi_head_attention.4} parent=157 // pred_fallthru
                _
            $region158: #{multi_head_attention.4} parent=153 // pred_fallthru
              _
            // Predicated region
            $region159: #{multi_head_attention.4} parent=153 // pred_check
              _
            $region160: #{multi_head_attention.4} parent=153 // pred_check_branch
              %998 = sbr.rel target = $region162
            $region161: #{multi_head_attention.4} parent=153 // pred_region
              %s1000 = ssub.s32 256, 1
              loop: start=0, step=1, limit=1
              $region163: #{multi_head_attention.4} parent=161 // loop_pre_header
                _
              $region164: #{multi_head_attention.4} parent=161 // loop_header
                %s1002 = sphi 0, %s1006
                %p1003 = scmp.ge.s32.totalorder %s1002, 1
                %s1007 = sphi %s987, %s987
                %s1008 = sphi %s992, %s992
              $region165: #{multi_head_attention.4} parent=161 // loop_header_branch
                %1005 = sbr.rel (%p1003) target = $region169
              $region166: #{multi_head_attention.4} parent=161 // loop_body
                %v1009 = vld [vmem:[%s1007] sm:%s1000]
                %1010 = vst [vmem:[%s1008] sm:%s1000] %v1009
                %v1011 = vld [vmem:[%s1007 + $0x8] sm:%s1000]
                %1012 = vst [vmem:[%s1008 + $0x18] sm:%s1000] %v1011
              $region167: #{multi_head_attention.4} parent=161 // loop_footer
                %s1006 = sadd.s32 1, %s1002
              $region168: #{multi_head_attention.4} parent=161 // loop_footer_branch
                %1001 = sbr.rel target = $region164
              $region169: #{multi_head_attention.4} parent=161 // loop_exit
                _
            $region162: #{multi_head_attention.4} parent=153 // pred_fallthru
              _
          $region154: #{multi_head_attention.4} parent=149 // pred_fallthru
            _
          %1029 = vnop
        $region150: #{multi_head_attention.4} parent=133 // pred_fallthru
          _
      $region134: #{multi_head_attention.4} parent=5 // pred_fallthru
        _
      %p1030 = scmp.le.s32.totalorder 2, %s9
      // Predicated region
      $region185: #{multi_head_attention.4} parent=5 // pred_check
        %p1031 = pneg %p1030
      $region186: #{multi_head_attention.4} parent=5 // pred_check_branch
        %1033 = sbr.rel (%p1031) target = $region188
      $region187: #{multi_head_attention.4} parent=5 // pred_region
        %s1034 = ssub.s32 %s9, 2
        // Predicated region
        $region189: #{multi_head_attention.4} parent=187 // pred_check
          %p1035 = pneg %p120
        $region190: #{multi_head_attention.4} parent=187 // pred_check_branch
          %1037 = sbr.rel (%p1035) target = $region192
        $region191: #{multi_head_attention.4} parent=187 // pred_region
          %s1038 = sand.u32 %s105, 1
          %s1039 = sand.u32 %s105, 1
          %s1040 = smul.addr %s1039, 16
          %s1041 = scalar_lea.vmem [#allocation5], %s1040
        $region192: #{multi_head_attention.4} parent=187 // pred_fallthru
          _
      $region188: #{multi_head_attention.4} parent=5 // pred_fallthru
        _
    $region6: #{multi_head_attention.4} parent=1 // loop_footer
      %s13 = sadd.s32 1, %s9
    $region7: #{multi_head_attention.4} parent=1 // loop_footer_branch
      %8 = sbr.rel target = $region3
    $region8: #{multi_head_attention.4} parent=1 // loop_exit
      _

// kernel: multi_head_attention.5
$region0: #{multi_head_attention.5}
  #allocation0 [shape = 'u32[]', space=smem, size = 0x4, offset = 0x4, fixed_abs, tag = 'smem constant byte address 0x4 - core index']
  #allocation1 [shape = 'u32[72,128]{1,0:T(1,128)}', space=vmem, size = 0x9000, scoped, tag = 'internal scratch']
  #allocation2 [shape = 'f32[1]{0:T(128)S(6)}', space=smem, size = 0x200, scoped, tag = 'scoped memory for multi_head_attention.5']
  %s0 = inlined_call_operand.<no memory space> [shape: f32[1], index: 0, kind: input, shape index: {}]
  %s1 = inlined_call_operand.vmem [shape: f32[16,384], index: 1, kind: input, shape index: {}]
  %s2 = inlined_call_operand.hbm [shape: bf16[384,384], index: 2, kind: input, shape index: {}]
  %s3 = inlined_call_operand.vmem [shape: f32[1,384], index: 3, kind: input, shape index: {}]
  %s4 = inlined_call_operand.vmem [shape: f32[1,384], index: 4, kind: input, shape index: {}]
  %s5 = inlined_call_operand.hbm [shape: f32[16,384], index: 5, kind: output, shape index: {}]
  %s6 = sld [smem:[#allocation0]]
  $region34: #{multi_head_attention.5} parent=0
    _
  %s8 = ssub.s32 1, %s6
  %s9 = scalar_select 0, %s8, %s6
  %10 = sst [smem:[#allocation2]] %s0
  $region1: #{multi_head_attention.5} parent=0
    #allocation3 [shape = 'u8[294912]{0}', space=vmem, size = 0x48000, scoped, tag = 'input window, operand 2, single buffered']
    #allocation4 [shape = 's32[1]{0}', space=sflag, size = 0x4, scoped, tag = 'scoped memory for multi_head_attention.5']
    #allocation5 [shape = 's32[1]{0}', space=sflag, size = 0x4, scoped, tag = 'scoped memory for multi_head_attention.5']
    #allocation6 [shape = 'u8[24576]{0}', space=vmem, size = 0x6000, scoped, tag = 'output window, operand 0, single buffered']
    %11 = vsyncpa [#allocation4], 0
    %12 = vsyncpa [#allocation5], 0
    // Predicated region
    $region2: #{multi_head_attention.5} parent=1 // pred_check
      _
    $region3: #{multi_head_attention.5} parent=1 // pred_check_branch
      %14 = sbr.rel (0) target = $region5
    $region4: #{multi_head_attention.5} parent=1 // pred_region
      _
    $region5: #{multi_head_attention.5} parent=1 // pred_fallthru
      _
    // Predicated region
    $region6: #{multi_head_attention.5} parent=1 // pred_check
      _
    $region7: #{multi_head_attention.5} parent=1 // pred_check_branch
      %16 = sbr.rel (0) target = $region9
    $region8: #{multi_head_attention.5} parent=1 // pred_region
      _
    $region9: #{multi_head_attention.5} parent=1 // pred_fallthru
      _
    // Predicated region
    $region10: #{multi_head_attention.5} parent=1 // pred_check
      _
    $region11: #{multi_head_attention.5} parent=1 // pred_check_branch
      %18 = sbr.rel (0) target = $region13
    $region12: #{multi_head_attention.5} parent=1 // pred_region
      %20 = vsyncadd [#allocation4], 0
      %s21 = sshll.u32 %s2, 4
      %s22 = int_to_ptr.hbm [resolvable:$true] %s21
      %s23 = sshll.u32 [#allocation3], 4
      %s24 = int_to_ptr.vmem [resolvable:$true] %s23
      %29 = dma.hbm_to_vmem [thread:$0]  %s22, 9216, %s24, [#allocation4], 192, 192, 12
    $region13: #{multi_head_attention.5} parent=1 // pred_fallthru
      _
    // Predicated region
    $region14: #{multi_head_attention.5} parent=1 // pred_check
      _
    $region15: #{multi_head_attention.5} parent=1 // pred_check_branch
      %31 = sbr.rel (0) target = $region17
    $region16: #{multi_head_attention.5} parent=1 // pred_region
      _
    $region17: #{multi_head_attention.5} parent=1 // pred_fallthru
      _
    // Predicated region
    $region18: #{multi_head_attention.5} parent=1 // pred_check
      _
    $region19: #{multi_head_attention.5} parent=1 // pred_check_branch
      %33 = sbr.rel (0) target = $region21
    $region20: #{multi_head_attention.5} parent=1 // pred_region
      _
    $region21: #{multi_head_attention.5} parent=1 // pred_fallthru
      _
    // Predicated region
    $region22: #{multi_head_attention.5} parent=1 // pred_check
      _
    $region23: #{multi_head_attention.5} parent=1 // pred_check_branch
      %35 = sbr.rel (0) target = $region25
    $region24: #{multi_head_attention.5} parent=1 // pred_region
      %37 = dma.done [#allocation4], 9216
    $region25: #{multi_head_attention.5} parent=1 // pred_fallthru
      _
    %s38 = sld [smem:[#allocation2]]
    %v39 = vld [vmem:[%s1] sm:$0xff]
    %v40 = vld [vmem:[%s1 + $0x8] sm:$0xff]
    %v41 = vld [vmem:[%s1 + $0x10] sm:$0xff]
    %v42 = vld [vmem:[%s1 + $0x18] sm:$0xff]
    %v43 = vld [vmem:[%s1 + $0x20] sm:$0xff]
    %v44 = vld [vmem:[%s1 + $0x28] sm:$0xff]
    %v45 = vstv %s38
    %v46 = vmul.f32 %v39, %v45
    %v47 = vmul.f32 %v40, %v45
    %v48 = vmul.f32 %v41, %v45
    %v49 = vmul.f32 %v42, %v45
    %v50 = vmul.f32 %v43, %v45
    %v51 = vmul.f32 %v44, %v45
    %v52 = vld [vmem:[#allocation3] sm:$0xff]
    %v53 = vld [vmem:[#allocation3 + $0x8] sm:$0xf]
    %v54 = vld [vmem:[#allocation3 + $0xc] sm:$0xff]
    %v55 = vld [vmem:[#allocation3 + $0x14] sm:$0xf]
    %v56 = vld [vmem:[#allocation3 + $0x18] sm:$0xff]
    %v57 = vld [vmem:[#allocation3 + $0x20] sm:$0xf]
    %v58 = vld [vmem:[#allocation3 + $0x24] sm:$0xff]
    %v59 = vld [vmem:[#allocation3 + $0x2c] sm:$0xf]
    %v60 = vld [vmem:[#allocation3 + $0x30] sm:$0xff]
    %v61 = vld [vmem:[#allocation3 + $0x38] sm:$0xf]
    %v62 = vld [vmem:[#allocation3 + $0x3c] sm:$0xff]
    %v63 = vld [vmem:[#allocation3 + $0x44] sm:$0xf]
    %v64 = vld [vmem:[#allocation3 + $0x48] sm:$0xff]
    %v65 = vld [vmem:[#allocation3 + $0x50] sm:$0xf]
    %v66 = vld [vmem:[#allocation3 + $0x54] sm:$0xff]
    %v67 = vld [vmem:[#allocation3 + $0x5c] sm:$0xf]
    %v68 = vld [vmem:[#allocation3 + $0x60] sm:$0xff]
    %v69 = vld [vmem:[#allocation3 + $0x68] sm:$0xf]
    %v70 = vld [vmem:[#allocation3 + $0x6c] sm:$0xff]
    %v71 = vld [vmem:[#allocation3 + $0x74] sm:$0xf]
    %v72 = vld [vmem:[#allocation3 + $0x78] sm:$0xff]
    %v73 = vld [vmem:[#allocation3 + $0x80] sm:$0xf]
    %v74 = vld [vmem:[#allocation3 + $0x84] sm:$0xff]
    %v75 = vld [vmem:[#allocation3 + $0x8c] sm:$0xf]
    %v76 = vld [vmem:[#allocation3 + $0x90] sm:$0xff]
    %v77 = vld [vmem:[#allocation3 + $0x98] sm:$0xf]
    %v78 = vld [vmem:[#allocation3 + $0x9c] sm:$0xff]
    %v79 = vld [vmem:[#allocation3 + $0xa4] sm:$0xf]
    %v80 = vld [vmem:[#allocation3 + $0xa8] sm:$0xff]
    %v81 = vld [vmem:[#allocation3 + $0xb0] sm:$0xf]
    %v82 = vld [vmem:[#allocation3 + $0xb4] sm:$0xff]
    %v83 = vld [vmem:[#allocation3 + $0xbc] sm:$0xf]
    %v84 = vld [vmem:[#allocation3 + $0xc0] sm:$0xff]
    %v85 = vld [vmem:[#allocation3 + $0xc8] sm:$0xf]
    %v86 = vld [vmem:[#allocation3 + $0xcc] sm:$0xff]
    %v87 = vld [vmem:[#allocation3 + $0xd4] sm:$0xf]
    %v88 = vld [vmem:[#allocation3 + $0xd8] sm:$0xff]
    %v89 = vld [vmem:[#allocation3 + $0xe0] sm:$0xf]
    %v90 = vld [vmem:[#allocation3 + $0xe4] sm:$0xff]
    %v91 = vld [vmem:[#allocation3 + $0xec] sm:$0xf]
    %v92 = vld [vmem:[#allocation3 + $0xf0] sm:$0xff]
    %v93 = vld [vmem:[#allocation3 + $0xf8] sm:$0xf]
    %v94 = vld [vmem:[#allocation3 + $0xfc] sm:$0xff]
    %v95 = vld [vmem:[#allocation3 + $0x104] sm:$0xf]
    %v96 = vld [vmem:[#allocation3 + $0x108] sm:$0xff]
    %v97 = vld [vmem:[#allocation3 + $0x110] sm:$0xf]
    %v98 = vld [vmem:[#allocation3 + $0x114] sm:$0xff]
    %v99 = vld [vmem:[#allocation3 + $0x11c] sm:$0xf]
    %v100 = vld [vmem:[#allocation3 + $0x120] sm:$0xff]
    %v101 = vld [vmem:[#allocation3 + $0x128] sm:$0xf]
    %v102 = vld [vmem:[#allocation3 + $0x12c] sm:$0xff]
    %v103 = vld [vmem:[#allocation3 + $0x134] sm:$0xf]
    %v104 = vld [vmem:[#allocation3 + $0x138] sm:$0xff]
    %v105 = vld [vmem:[#allocation3 + $0x140] sm:$0xf]
    %v106 = vld [vmem:[#allocation3 + $0x144] sm:$0xff]
    %v107 = vld [vmem:[#allocation3 + $0x14c] sm:$0xf]
    %v108 = vld [vmem:[#allocation3 + $0x150] sm:$0xff]
    %v109 = vld [vmem:[#allocation3 + $0x158] sm:$0xf]
    %v110 = vld [vmem:[#allocation3 + $0x15c] sm:$0xff]
    %v111 = vld [vmem:[#allocation3 + $0x164] sm:$0xf]
    %v112 = vld [vmem:[#allocation3 + $0x168] sm:$0xff]
    %v113 = vld [vmem:[#allocation3 + $0x170] sm:$0xf]
    %v114 = vld [vmem:[#allocation3 + $0x174] sm:$0xff]
    %v115 = vld [vmem:[#allocation3 + $0x17c] sm:$0xf]
    %v116 = vld [vmem:[#allocation3 + $0x180] sm:$0xff]
    %v117 = vld [vmem:[#allocation3 + $0x188] sm:$0xf]
    %v118 = vld [vmem:[#allocation3 + $0x18c] sm:$0xff]
    %v119 = vld [vmem:[#allocation3 + $0x194] sm:$0xf]
    %v120 = vld [vmem:[#allocation3 + $0x198] sm:$0xff]
    %v121 = vld [vmem:[#allocation3 + $0x1a0] sm:$0xf]
    %v122 = vld [vmem:[#allocation3 + $0x1a4] sm:$0xff]
    %v123 = vld [vmem:[#allocation3 + $0x1ac] sm:$0xf]
    %v124 = vld [vmem:[#allocation3 + $0x1b0] sm:$0xff]
    %v125 = vld [vmem:[#allocation3 + $0x1b8] sm:$0xf]
    %v126 = vld [vmem:[#allocation3 + $0x1bc] sm:$0xff]
    %v127 = vld [vmem:[#allocation3 + $0x1c4] sm:$0xf]
    %v128 = vld [vmem:[#allocation3 + $0x1c8] sm:$0xff]
    %v129 = vld [vmem:[#allocation3 + $0x1d0] sm:$0xf]
    %v130 = vld [vmem:[#allocation3 + $0x1d4] sm:$0xff]
    %v131 = vld [vmem:[#allocation3 + $0x1dc] sm:$0xf]
    %v132 = vld [vmem:[#allocation3 + $0x1e0] sm:$0xff]
    %v133 = vld [vmem:[#allocation3 + $0x1e8] sm:$0xf]
    %v134 = vld [vmem:[#allocation3 + $0x1ec] sm:$0xff]
    %v135 = vld [vmem:[#allocation3 + $0x1f4] sm:$0xf]
    %v136 = vld [vmem:[#allocation3 + $0x1f8] sm:$0xff]
    %v137 = vld [vmem:[#allocation3 + $0x200] sm:$0xf]
    %v138 = vld [vmem:[#allocation3 + $0x204] sm:$0xff]
    %v139 = vld [vmem:[#allocation3 + $0x20c] sm:$0xf]
    %v140 = vld [vmem:[#allocation3 + $0x210] sm:$0xff]
    %v141 = vld [vmem:[#allocation3 + $0x218] sm:$0xf]
    %v142 = vld [vmem:[#allocation3 + $0x21c] sm:$0xff]
    %v143 = vld [vmem:[#allocation3 + $0x224] sm:$0xf]
    %v144 = vld [vmem:[#allocation3 + $0x228] sm:$0xff]
    %v145 = vld [vmem:[#allocation3 + $0x230] sm:$0xf]
    %v146 = vld [vmem:[#allocation3 + $0x234] sm:$0xff]
    %v147 = vld [vmem:[#allocation3 + $0x23c] sm:$0xf]
    %v148 = vunpack.c.l.bf16 %v52
    %v149 = vunpack.c.h.bf16 %v52
    %v150 = vunpack.c.l.bf16 %v53
    %v151 = vunpack.c.l.bf16 %v54
    %v152 = vunpack.c.h.bf16 %v54
    %v153 = vunpack.c.l.bf16 %v55
    %v154 = vunpack.c.l.bf16 %v56
    %v155 = vunpack.c.h.bf16 %v56
    %v156 = vunpack.c.l.bf16 %v57
    %v157 = vunpack.c.l.bf16 %v58
    %v158 = vunpack.c.h.bf16 %v58
    %v159 = vunpack.c.l.bf16 %v59
    %v160 = vunpack.c.l.bf16 %v60
    %v161 = vunpack.c.h.bf16 %v60
    %v162 = vunpack.c.l.bf16 %v61
    %v163 = vunpack.c.l.bf16 %v62
    %v164 = vunpack.c.h.bf16 %v62
    %v165 = vunpack.c.l.bf16 %v63
    %v166 = vunpack.c.l.bf16 %v64
    %v167 = vunpack.c.h.bf16 %v64
    %v168 = vunpack.c.l.bf16 %v65
    %v169 = vunpack.c.l.bf16 %v66
    %v170 = vunpack.c.h.bf16 %v66
    %v171 = vunpack.c.l.bf16 %v67
    %v172 = vunpack.c.l.bf16 %v68
    %v173 = vunpack.c.h.bf16 %v68
    %v174 = vunpack.c.l.bf16 %v69
    %v175 = vunpack.c.l.bf16 %v70
    %v176 = vunpack.c.h.bf16 %v70
    %v177 = vunpack.c.l.bf16 %v71
    %v178 = vunpack.c.l.bf16 %v72
    %v179 = vunpack.c.h.bf16 %v72
    %v180 = vunpack.c.l.bf16 %v73
    %v181 = vunpack.c.l.bf16 %v74
    %v182 = vunpack.c.h.bf16 %v74
    %v183 = vunpack.c.l.bf16 %v75
    %v184 = vunpack.c.l.bf16 %v76
    %v185 = vunpack.c.h.bf16 %v76
    %v186 = vunpack.c.l.bf16 %v77
    %v187 = vunpack.c.l.bf16 %v78
    %v188 = vunpack.c.h.bf16 %v78
    %v189 = vunpack.c.l.bf16 %v79
    %v190 = vunpack.c.l.bf16 %v80
    %v191 = vunpack.c.h.bf16 %v80
    %v192 = vunpack.c.l.bf16 %v81
    %v193 = vunpack.c.l.bf16 %v82
    %v194 = vunpack.c.h.bf16 %v82
    %v195 = vunpack.c.l.bf16 %v83
    %v196 = vunpack.c.l.bf16 %v84
    %v197 = vunpack.c.h.bf16 %v84
    %v198 = vunpack.c.l.bf16 %v85
    %v199 = vunpack.c.l.bf16 %v86
    %v200 = vunpack.c.h.bf16 %v86
    %v201 = vunpack.c.l.bf16 %v87
    %v202 = vunpack.c.l.bf16 %v88
    %v203 = vunpack.c.h.bf16 %v88
    %v204 = vunpack.c.l.bf16 %v89
    %v205 = vunpack.c.l.bf16 %v90
    %v206 = vunpack.c.h.bf16 %v90
    %v207 = vunpack.c.l.bf16 %v91
    %v208 = vunpack.c.l.bf16 %v92
    %v209 = vunpack.c.h.bf16 %v92
    %v210 = vunpack.c.l.bf16 %v93
    %v211 = vunpack.c.l.bf16 %v94
    %v212 = vunpack.c.h.bf16 %v94
    %v213 = vunpack.c.l.bf16 %v95
    %v214 = vunpack.c.l.bf16 %v96
    %v215 = vunpack.c.h.bf16 %v96
    %v216 = vunpack.c.l.bf16 %v97
    %v217 = vunpack.c.l.bf16 %v98
    %v218 = vunpack.c.h.bf16 %v98
    %v219 = vunpack.c.l.bf16 %v99
    %v220 = vunpack.c.l.bf16 %v100
    %v221 = vunpack.c.h.bf16 %v100
    %v222 = vunpack.c.l.bf16 %v101
    %v223 = vunpack.c.l.bf16 %v102
    %v224 = vunpack.c.h.bf16 %v102
    %v225 = vunpack.c.l.bf16 %v103
    %v226 = vunpack.c.l.bf16 %v104
    %v227 = vunpack.c.h.bf16 %v104
    %v228 = vunpack.c.l.bf16 %v105
    %v229 = vunpack.c.l.bf16 %v106
    %v230 = vunpack.c.h.bf16 %v106
    %v231 = vunpack.c.l.bf16 %v107
    %v232 = vunpack.c.l.bf16 %v108
    %v233 = vunpack.c.h.bf16 %v108
    %v234 = vunpack.c.l.bf16 %v109
    %v235 = vunpack.c.l.bf16 %v110
    %v236 = vunpack.c.h.bf16 %v110
    %v237 = vunpack.c.l.bf16 %v111
    %v238 = vunpack.c.l.bf16 %v112
    %v239 = vunpack.c.h.bf16 %v112
    %v240 = vunpack.c.l.bf16 %v113
    %v241 = vunpack.c.l.bf16 %v114
    %v242 = vunpack.c.h.bf16 %v114
    %v243 = vunpack.c.l.bf16 %v115
    %v244 = vunpack.c.l.bf16 %v116
    %v245 = vunpack.c.h.bf16 %v116
    %v246 = vunpack.c.l.bf16 %v117
    %v247 = vunpack.c.l.bf16 %v118
    %v248 = vunpack.c.h.bf16 %v118
    %v249 = vunpack.c.l.bf16 %v119
    %v250 = vunpack.c.l.bf16 %v120
    %v251 = vunpack.c.h.bf16 %v120
    %v252 = vunpack.c.l.bf16 %v121
    %v253 = vunpack.c.l.bf16 %v122
    %v254 = vunpack.c.h.bf16 %v122
    %v255 = vunpack.c.l.bf16 %v123
    %v256 = vunpack.c.l.bf16 %v124
    %v257 = vunpack.c.h.bf16 %v124
    %v258 = vunpack.c.l.bf16 %v125
    %v259 = vunpack.c.l.bf16 %v126
    %v260 = vunpack.c.h.bf16 %v126
    %v261 = vunpack.c.l.bf16 %v127
    %v262 = vunpack.c.l.bf16 %v128
    %v263 = vunpack.c.h.bf16 %v128
    %v264 = vunpack.c.l.bf16 %v129
    %v265 = vunpack.c.l.bf16 %v130
    %v266 = vunpack.c.h.bf16 %v130
    %v267 = vunpack.c.l.bf16 %v131
    %v268 = vunpack.c.l.bf16 %v132
    %v269 = vunpack.c.h.bf16 %v132
    %v270 = vunpack.c.l.bf16 %v133
    %v271 = vunpack.c.l.bf16 %v134
    %v272 = vunpack.c.h.bf16 %v134
    %v273 = vunpack.c.l.bf16 %v135
    %v274 = vunpack.c.l.bf16 %v136
    %v275 = vunpack.c.h.bf16 %v136
    %v276 = vunpack.c.l.bf16 %v137
    %v277 = vunpack.c.l.bf16 %v138
    %v278 = vunpack.c.h.bf16 %v138
    %v279 = vunpack.c.l.bf16 %v139
    %v280 = vunpack.c.l.bf16 %v140
    %v281 = vunpack.c.h.bf16 %v140
    %v282 = vunpack.c.l.bf16 %v141
    %v283 = vunpack.c.l.bf16 %v142
    %v284 = vunpack.c.h.bf16 %v142
    %v285 = vunpack.c.l.bf16 %v143
    %v286 = vunpack.c.l.bf16 %v144
    %v287 = vunpack.c.h.bf16 %v144
    %v288 = vunpack.c.l.bf16 %v145
    %v289 = vunpack.c.l.bf16 %v146
    %v290 = vunpack.c.h.bf16 %v146
    %v291 = vunpack.c.l.bf16 %v147
    %v292 = vld [vmem:[%s3] sm:$0x7]
    %v294 = vperm.slane %v292, 0
    %v295 = vperm.slane %v292, 1
    %v296 = vperm.slane %v292, 2
    %300 = vmatpush.msra.mxu0 %v193
    %301 = vmatpush.msra.mxu0 %v190
    %302 = vmatpush.msra.mxu0 %v187
    %303 = vmatpush.msra.mxu0 %v184
    %304 = vmatpush.msra.mxu0 %v181
    %305 = vmatpush.msra.mxu0 %v178
    %306 = vmatpush.msra.mxu0 %v175
    %307 = vmatpush.msra.mxu0 %v172
    %308 = vmatpush.msra.mxu0 %v169
    %309 = vmatpush.msra.mxu0 %v166
    %310 = vmatpush.msra.mxu0 %v163
    %311 = vmatpush.msra.mxu0 %v160
    %312 = vmatpush.msra.mxu0 %v157
    %313 = vmatpush.msra.mxu0 %v154
    %314 = vmatpush.msra.mxu0 %v151
    %315 = vmatpush.msra.mxu0 %v148
    %316 = vmatmul.f32.gmra.mxu0 %v46
    %v317 = vpop.f32.mrf.mxu0
    %v318 = vadd.f32 %v294, %v317
    %319 = vmatmul.f32.gmra.mxu0 %v49
    %v320 = vpop.f32.mrf.mxu0
    %v321 = vadd.f32 %v294, %v320
    %322 = vdwg.mxu0
    %323 = vmatpush.msra.mxu0 %v241
    %324 = vmatpush.msra.mxu0 %v238
    %325 = vmatpush.msra.mxu0 %v235
    %326 = vmatpush.msra.mxu0 %v232
    %327 = vmatpush.msra.mxu0 %v229
    %328 = vmatpush.msra.mxu0 %v226
    %329 = vmatpush.msra.mxu0 %v223
    %330 = vmatpush.msra.mxu0 %v220
    %331 = vmatpush.msra.mxu0 %v217
    %332 = vmatpush.msra.mxu0 %v214
    %333 = vmatpush.msra.mxu0 %v211
    %334 = vmatpush.msra.mxu0 %v208
    %335 = vmatpush.msra.mxu0 %v205
    %336 = vmatpush.msra.mxu0 %v202
    %337 = vmatpush.msra.mxu0 %v199
    %338 = vmatpush.msra.mxu0 %v196
    %339 = vmatmul.f32.gmra.mxu0 %v47
    %v340 = vpop.f32.mrf.mxu0
    %v341 = vadd.f32 %v318, %v340
    %342 = vmatmul.f32.gmra.mxu0 %v50
    %v343 = vpop.f32.mrf.mxu0
    %v344 = vadd.f32 %v321, %v343
    %345 = vdwg.mxu0
    %346 = vmatpush.msra.mxu0 %v289
    %347 = vmatpush.msra.mxu0 %v286
    %348 = vmatpush.msra.mxu0 %v283
    %349 = vmatpush.msra.mxu0 %v280
    %350 = vmatpush.msra.mxu0 %v277
    %351 = vmatpush.msra.mxu0 %v274
    %352 = vmatpush.msra.mxu0 %v271
    %353 = vmatpush.msra.mxu0 %v268
    %354 = vmatpush.msra.mxu0 %v265
    %355 = vmatpush.msra.mxu0 %v262
    %356 = vmatpush.msra.mxu0 %v259
    %357 = vmatpush.msra.mxu0 %v256
    %358 = vmatpush.msra.mxu0 %v253
    %359 = vmatpush.msra.mxu0 %v250
    %360 = vmatpush.msra.mxu0 %v247
    %361 = vmatpush.msra.mxu0 %v244
    %362 = vmatmul.f32.gmra.mxu0 %v48
    %v363 = vpop.f32.mrf.mxu0
    %v364 = vadd.f32 %v341, %v363
    %365 = vmatmul.f32.gmra.mxu0 %v51
    %v366 = vpop.f32.mrf.mxu0
    %v367 = vadd.f32 %v344, %v366
    %368 = vdwg.mxu0
    %369 = vmatpush.msra.mxu0 %v194
    %370 = vmatpush.msra.mxu0 %v191
    %371 = vmatpush.msra.mxu0 %v188
    %372 = vmatpush.msra.mxu0 %v185
    %373 = vmatpush.msra.mxu0 %v182
    %374 = vmatpush.msra.mxu0 %v179
    %375 = vmatpush.msra.mxu0 %v176
    %376 = vmatpush.msra.mxu0 %v173
    %377 = vmatpush.msra.mxu0 %v170
    %378 = vmatpush.msra.mxu0 %v167
    %379 = vmatpush.msra.mxu0 %v164
    %380 = vmatpush.msra.mxu0 %v161
    %381 = vmatpush.msra.mxu0 %v158
    %382 = vmatpush.msra.mxu0 %v155
    %383 = vmatpush.msra.mxu0 %v152
    %384 = vmatpush.msra.mxu0 %v149
    %385 = vmatmul.f32.gmra.mxu0 %v46
    %v386 = vpop.f32.mrf.mxu0
    %v387 = vadd.f32 %v295, %v386
    %388 = vmatmul.f32.gmra.mxu0 %v49
    %v389 = vpop.f32.mrf.mxu0
    %v390 = vadd.f32 %v295, %v389
    %391 = vdwg.mxu0
    %392 = vmatpush.msra.mxu0 %v242
    %393 = vmatpush.msra.mxu0 %v239
    %394 = vmatpush.msra.mxu0 %v236
    %395 = vmatpush.msra.mxu0 %v233
    %396 = vmatpush.msra.mxu0 %v230
    %397 = vmatpush.msra.mxu0 %v227
    %398 = vmatpush.msra.mxu0 %v224
    %399 = vmatpush.msra.mxu0 %v221
    %400 = vmatpush.msra.mxu0 %v218
    %401 = vmatpush.msra.mxu0 %v215
    %402 = vmatpush.msra.mxu0 %v212
    %403 = vmatpush.msra.mxu0 %v209
    %404 = vmatpush.msra.mxu0 %v206
    %405 = vmatpush.msra.mxu0 %v203
    %406 = vmatpush.msra.mxu0 %v200
    %407 = vmatpush.msra.mxu0 %v197
    %408 = vmatmul.f32.gmra.mxu0 %v47
    %v409 = vpop.f32.mrf.mxu0
    %v410 = vadd.f32 %v387, %v409
    %411 = vmatmul.f32.gmra.mxu0 %v50
    %v412 = vpop.f32.mrf.mxu0
    %v413 = vadd.f32 %v390, %v412
    %414 = vdwg.mxu0
    %415 = vmatpush.msra.mxu0 %v290
    %416 = vmatpush.msra.mxu0 %v287
    %417 = vmatpush.msra.mxu0 %v284
    %418 = vmatpush.msra.mxu0 %v281
    %419 = vmatpush.msra.mxu0 %v278
    %420 = vmatpush.msra.mxu0 %v275
    %421 = vmatpush.msra.mxu0 %v272
    %422 = vmatpush.msra.mxu0 %v269
    %423 = vmatpush.msra.mxu0 %v266
    %424 = vmatpush.msra.mxu0 %v263
    %425 = vmatpush.msra.mxu0 %v260
    %426 = vmatpush.msra.mxu0 %v257
    %427 = vmatpush.msra.mxu0 %v254
    %428 = vmatpush.msra.mxu0 %v251
    %429 = vmatpush.msra.mxu0 %v248
    %430 = vmatpush.msra.mxu0 %v245
    %431 = vmatmul.f32.gmra.mxu0 %v48
    %v432 = vpop.f32.mrf.mxu0
    %v433 = vadd.f32 %v410, %v432
    %434 = vmatmul.f32.gmra.mxu0 %v51
    %v435 = vpop.f32.mrf.mxu0
    %v436 = vadd.f32 %v413, %v435
    %437 = vdwg.mxu0
    %438 = vmatpush.msra.mxu0 %v195
    %439 = vmatpush.msra.mxu0 %v192
    %440 = vmatpush.msra.mxu0 %v189
    %441 = vmatpush.msra.mxu0 %v186
    %442 = vmatpush.msra.mxu0 %v183
    %443 = vmatpush.msra.mxu0 %v180
    %444 = vmatpush.msra.mxu0 %v177
    %445 = vmatpush.msra.mxu0 %v174
    %446 = vmatpush.msra.mxu0 %v171
    %447 = vmatpush.msra.mxu0 %v168
    %448 = vmatpush.msra.mxu0 %v165
    %449 = vmatpush.msra.mxu0 %v162
    %450 = vmatpush.msra.mxu0 %v159
    %451 = vmatpush.msra.mxu0 %v156
    %452 = vmatpush.msra.mxu0 %v153
    %453 = vmatpush.msra.mxu0 %v150
    %454 = vmatmul.f32.gmra.mxu0 %v46
    %v455 = vpop.f32.mrf.mxu0
    %v456 = vadd.f32 %v296, %v455
    %457 = vmatmul.f32.gmra.mxu0 %v49
    %v458 = vpop.f32.mrf.mxu0
    %v459 = vadd.f32 %v296, %v458
    %460 = vdwg.mxu0
    %461 = vmatpush.msra.mxu0 %v243
    %462 = vmatpush.msra.mxu0 %v240
    %463 = vmatpush.msra.mxu0 %v237
    %464 = vmatpush.msra.mxu0 %v234
    %465 = vmatpush.msra.mxu0 %v231
    %466 = vmatpush.msra.mxu0 %v228
    %467 = vmatpush.msra.mxu0 %v225
    %468 = vmatpush.msra.mxu0 %v222
    %469 = vmatpush.msra.mxu0 %v219
    %470 = vmatpush.msra.mxu0 %v216
    %471 = vmatpush.msra.mxu0 %v213
    %472 = vmatpush.msra.mxu0 %v210
    %473 = vmatpush.msra.mxu0 %v207
    %474 = vmatpush.msra.mxu0 %v204
    %475 = vmatpush.msra.mxu0 %v201
    %476 = vmatpush.msra.mxu0 %v198
    %477 = vmatmul.f32.gmra.mxu0 %v47
    %v478 = vpop.f32.mrf.mxu0
    %v479 = vadd.f32 %v456, %v478
    %480 = vmatmul.f32.gmra.mxu0 %v50
    %v481 = vpop.f32.mrf.mxu0
    %v482 = vadd.f32 %v459, %v481
    %483 = vdwg.mxu0
    %484 = vmatpush.msra.mxu0 %v291
    %485 = vmatpush.msra.mxu0 %v288
    %486 = vmatpush.msra.mxu0 %v285
    %487 = vmatpush.msra.mxu0 %v282
    %488 = vmatpush.msra.mxu0 %v279
    %489 = vmatpush.msra.mxu0 %v276
    %490 = vmatpush.msra.mxu0 %v273
    %491 = vmatpush.msra.mxu0 %v270
    %492 = vmatpush.msra.mxu0 %v267
    %493 = vmatpush.msra.mxu0 %v264
    %494 = vmatpush.msra.mxu0 %v261
    %495 = vmatpush.msra.mxu0 %v258
    %496 = vmatpush.msra.mxu0 %v255
    %497 = vmatpush.msra.mxu0 %v252
    %498 = vmatpush.msra.mxu0 %v249
    %499 = vmatpush.msra.mxu0 %v246
    %500 = vmatmul.f32.gmra.mxu0 %v48
    %v501 = vpop.f32.mrf.mxu0
    %v502 = vadd.f32 %v479, %v501
    %503 = vmatmul.f32.gmra.mxu0 %v51
    %v504 = vpop.f32.mrf.mxu0
    %v505 = vadd.f32 %v482, %v504
    %506 = vdwg.mxu0
    %v507 = vld [vmem:[%s4] sm:$0x7]
    %v509 = vperm.slane %v507, 0
    %v510 = vperm.slane %v507, 1
    %v511 = vperm.slane %v507, 2
    %v515 = vmul.f32 %v364, %v509
    %v516 = vmul.f32 %v433, %v510
    %v517 = vmul.f32 %v502, %v511
    %v518 = vmul.f32 %v367, %v509
    %v519 = vmul.f32 %v436, %v510
    %v520 = vmul.f32 %v505, %v511
    %521 = vst [vmem:[#allocation6] sm:$0xff] %v515
    %522 = vst [vmem:[#allocation6 + $0x8] sm:$0xff] %v516
    %523 = vst [vmem:[#allocation6 + $0x10] sm:$0xff] %v517
    %524 = vst [vmem:[#allocation6 + $0x18] sm:$0xff] %v518
    %525 = vst [vmem:[#allocation6 + $0x20] sm:$0xff] %v519
    %526 = vst [vmem:[#allocation6 + $0x28] sm:$0xff] %v520
    // Predicated region
    $region26: #{multi_head_attention.5} parent=1 // pred_check
      _
    $region27: #{multi_head_attention.5} parent=1 // pred_check_branch
      %528 = sbr.rel (0) target = $region29
    $region28: #{multi_head_attention.5} parent=1 // pred_region
      %530 = vsyncadd [#allocation5], 0
      %s531 = sshll.u32 [#allocation6], 4
      %s532 = int_to_ptr.vmem [resolvable:$true] %s531
      %s533 = sshll.u32 %s5, 4
      %s534 = int_to_ptr.hbm [resolvable:$true] %s533
      %539 = dma.vmem_to_hbm [thread:$0]  %s532, 768, %s534, [#allocation5], 384, 384, 24
    $region29: #{multi_head_attention.5} parent=1 // pred_fallthru
      _
    // Predicated region
    $region30: #{multi_head_attention.5} parent=1 // pred_check
      _
    $region31: #{multi_head_attention.5} parent=1 // pred_check_branch
      %541 = sbr.rel (0) target = $region33
    $region32: #{multi_head_attention.5} parent=1 // pred_region
      %543 = dma.done [#allocation5], 768
    $region33: #{multi_head_attention.5} parent=1 // pred_fallthru
      _
    %544 = vsyncpa [#allocation4], 1
    %545 = vsyncpa [#allocation5], 1

// kernel: multi_head_attention.3
$region0: #{multi_head_attention.3}
  #allocation0 [shape = 'u32[]', space=smem, size = 0x4, offset = 0x4, fixed_abs, tag = 'smem constant byte address 0x4 - core index']
  #allocation1 [shape = 'u32[72,128]{1,0:T(1,128)}', space=vmem, size = 0x9000, scoped, tag = 'internal scratch']
  #allocation2 [shape = 'f32[1]{0:T(128)S(6)}', space=smem, size = 0x200, scoped, tag = 'scoped memory for multi_head_attention.3']
  %s0 = inlined_call_operand.<no memory space> [shape: f32[1], index: 0, kind: input, shape index: {}]
  %s1 = inlined_call_operand.hbm [shape: f32[16,384], index: 1, kind: input, shape index: {}]
  %s2 = inlined_call_operand.hbm [shape: bf16[384,1152], index: 2, kind: input, shape index: {}]
  %s3 = inlined_call_operand.vmem [shape: f32[1,1152], index: 3, kind: input, shape index: {}]
  %s4 = inlined_call_operand.vmem [shape: f32[1,1152], index: 4, kind: input, shape index: {}]
  %s5 = inlined_call_operand.vmem [shape: f32[16,1152], index: 5, kind: output, shape index: {}]
  %s6 = sld [smem:[#allocation0]]
  $region38: #{multi_head_attention.3} parent=0
    _
  %s8 = ssub.s32 1, %s6
  %s9 = scalar_select 0, %s8, %s6
  %10 = sst [smem:[#allocation2]] %s0
  $region1: #{multi_head_attention.3} parent=0
    #allocation3 [shape = 'u8[24576]{0}', space=vmem, size = 0x6000, scoped, tag = 'input window, operand 1, single buffered']
    #allocation4 [shape = 's32[1]{0}', space=sflag, size = 0x4, scoped, tag = 'scoped memory for multi_head_attention.3']
    #allocation5 [shape = 'u8[884736]{0}', space=vmem, size = 0xd8000, scoped, tag = 'input window, operand 2, single buffered']
    #allocation6 [shape = 's32[1]{0}', space=sflag, size = 0x4, scoped, tag = 'scoped memory for multi_head_attention.3']
    %11 = vsyncpa [#allocation4], 0
    %12 = vsyncpa [#allocation6], 0
    // Predicated region
    $region2: #{multi_head_attention.3} parent=1 // pred_check
      _
    $region3: #{multi_head_attention.3} parent=1 // pred_check_branch
      %14 = sbr.rel (0) target = $region5
    $region4: #{multi_head_attention.3} parent=1 // pred_region
      _
    $region5: #{multi_head_attention.3} parent=1 // pred_fallthru
      _
    // Predicated region
    $region6: #{multi_head_attention.3} parent=1 // pred_check
      _
    $region7: #{multi_head_attention.3} parent=1 // pred_check_branch
      %16 = sbr.rel (0) target = $region9
    $region8: #{multi_head_attention.3} parent=1 // pred_region
      %18 = vsyncadd [#allocation4], 0
      %s19 = sshll.u32 %s1, 4
      %s20 = int_to_ptr.hbm [resolvable:$true] %s19
      %s21 = sshll.u32 [#allocation3], 4
      %s22 = int_to_ptr.vmem [resolvable:$true] %s21
      %27 = dma.hbm_to_vmem [thread:$0]  %s20, 768, %s22, [#allocation4], 384, 384, 24
    $region9: #{multi_head_attention.3} parent=1 // pred_fallthru
      _
    // Predicated region
    $region10: #{multi_head_attention.3} parent=1 // pred_check
      _
    $region11: #{multi_head_attention.3} parent=1 // pred_check_branch
      %29 = sbr.rel (0) target = $region13
    $region12: #{multi_head_attention.3} parent=1 // pred_region
      %31 = vsyncadd [#allocation6], 0
      %s32 = sshll.u32 %s2, 4
      %s33 = int_to_ptr.hbm [resolvable:$true] %s32
      %s34 = sshll.u32 [#allocation5], 4
      %s35 = int_to_ptr.vmem [resolvable:$true] %s34
      %40 = dma.hbm_to_vmem [thread:$0]  %s33, 27648, %s35, [#allocation6], 576, 576, 36
    $region13: #{multi_head_attention.3} parent=1 // pred_fallthru
      _
    // Predicated region
    $region14: #{multi_head_attention.3} parent=1 // pred_check
      _
    $region15: #{multi_head_attention.3} parent=1 // pred_check_branch
      %42 = sbr.rel (0) target = $region17
    $region16: #{multi_head_attention.3} parent=1 // pred_region
      _
    $region17: #{multi_head_attention.3} parent=1 // pred_fallthru
      _
    // Predicated region
    $region18: #{multi_head_attention.3} parent=1 // pred_check
      _
    $region19: #{multi_head_attention.3} parent=1 // pred_check_branch
      %44 = sbr.rel (0) target = $region21
    $region20: #{multi_head_attention.3} parent=1 // pred_region
      _
    $region21: #{multi_head_attention.3} parent=1 // pred_fallthru
      _
    // Predicated region
    $region22: #{multi_head_attention.3} parent=1 // pred_check
      _
    $region23: #{multi_head_attention.3} parent=1 // pred_check_branch
      %46 = sbr.rel (0) target = $region25
    $region24: #{multi_head_attention.3} parent=1 // pred_region
      %48 = dma.done [#allocation4], 768
    $region25: #{multi_head_attention.3} parent=1 // pred_fallthru
      _
    // Predicated region
    $region26: #{multi_head_attention.3} parent=1 // pred_check
      _
    $region27: #{multi_head_attention.3} parent=1 // pred_check_branch
      %50 = sbr.rel (0) target = $region29
    $region28: #{multi_head_attention.3} parent=1 // pred_region
      %52 = dma.done [#allocation6], 27648
    $region29: #{multi_head_attention.3} parent=1 // pred_fallthru
      _
    %s53 = sld [smem:[#allocation2]]
    %v54 = vld [vmem:[#allocation3] sm:$0xff]
    %v55 = vld [vmem:[#allocation3 + $0x8] sm:$0xff]
    %v56 = vld [vmem:[#allocation3 + $0x10] sm:$0xff]
    %v57 = vld [vmem:[#allocation3 + $0x18] sm:$0xff]
    %v58 = vld [vmem:[#allocation3 + $0x20] sm:$0xff]
    %v59 = vld [vmem:[#allocation3 + $0x28] sm:$0xff]
    %v60 = vstv %s53
    %v61 = vmul.f32 %v54, %v60
    %v62 = vmul.f32 %v55, %v60
    %v63 = vmul.f32 %v56, %v60
    %v64 = vmul.f32 %v57, %v60
    %v65 = vmul.f32 %v58, %v60
    %v66 = vmul.f32 %v59, %v60
    %v67 = vpack.c.bf16 %v64, %v61
    %v68 = vpack.c.bf16 %v65, %v62
    %v69 = vpack.c.bf16 %v66, %v63
    %v70 = vld [vmem:[#allocation5] sm:$0xff]
    %v71 = vld [vmem:[#allocation5 + $0x8] sm:$0xff]
    %v72 = vld [vmem:[#allocation5 + $0x10] sm:$0xff]
    %v73 = vld [vmem:[#allocation5 + $0x18] sm:$0xff]
    %v74 = vld [vmem:[#allocation5 + $0x20] sm:$0xf]
    %v75 = vld [vmem:[#allocation5 + $0x24] sm:$0xff]
    %v76 = vld [vmem:[#allocation5 + $0x2c] sm:$0xff]
    %v77 = vld [vmem:[#allocation5 + $0x34] sm:$0xff]
    %v78 = vld [vmem:[#allocation5 + $0x3c] sm:$0xff]
    %v79 = vld [vmem:[#allocation5 + $0x44] sm:$0xf]
    %v80 = vld [vmem:[#allocation5 + $0x48] sm:$0xff]
    %v81 = vld [vmem:[#allocation5 + $0x50] sm:$0xff]
    %v82 = vld [vmem:[#allocation5 + $0x58] sm:$0xff]
    %v83 = vld [vmem:[#allocation5 + $0x60] sm:$0xff]
    %v84 = vld [vmem:[#allocation5 + $0x68] sm:$0xf]
    %v85 = vld [vmem:[#allocation5 + $0x6c] sm:$0xff]
    %v86 = vld [vmem:[#allocation5 + $0x74] sm:$0xff]
    %v87 = vld [vmem:[#allocation5 + $0x7c] sm:$0xff]
    %v88 = vld [vmem:[#allocation5 + $0x84] sm:$0xff]
    %v89 = vld [vmem:[#allocation5 + $0x8c] sm:$0xf]
    %v90 = vld [vmem:[#allocation5 + $0x90] sm:$0xff]
    %v91 = vld [vmem:[#allocation5 + $0x98] sm:$0xff]
    %v92 = vld [vmem:[#allocation5 + $0xa0] sm:$0xff]
    %v93 = vld [vmem:[#allocation5 + $0xa8] sm:$0xff]
    %v94 = vld [vmem:[#allocation5 + $0xb0] sm:$0xf]
    %v95 = vld [vmem:[#allocation5 + $0xb4] sm:$0xff]
    %v96 = vld [vmem:[#allocation5 + $0xbc] sm:$0xff]
    %v97 = vld [vmem:[#allocation5 + $0xc4] sm:$0xff]
    %v98 = vld [vmem:[#allocation5 + $0xcc] sm:$0xff]
    %v99 = vld [vmem:[#allocation5 + $0xd4] sm:$0xf]
    %v100 = vld [vmem:[#allocation5 + $0xd8] sm:$0xff]
    %v101 = vld [vmem:[#allocation5 + $0xe0] sm:$0xff]
    %v102 = vld [vmem:[#allocation5 + $0xe8] sm:$0xff]
    %v103 = vld [vmem:[#allocation5 + $0xf0] sm:$0xff]
    %v104 = vld [vmem:[#allocation5 + $0xf8] sm:$0xf]
    %v105 = vld [vmem:[#allocation5 + $0xfc] sm:$0xff]
    %v106 = vld [vmem:[#allocation5 + $0x104] sm:$0xff]
    %v107 = vld [vmem:[#allocation5 + $0x10c] sm:$0xff]
    %v108 = vld [vmem:[#allocation5 + $0x114] sm:$0xff]
    %v109 = vld [vmem:[#allocation5 + $0x11c] sm:$0xf]
    %v110 = vld [vmem:[#allocation5 + $0x120] sm:$0xff]
    %v111 = vld [vmem:[#allocation5 + $0x128] sm:$0xff]
    %v112 = vld [vmem:[#allocation5 + $0x130] sm:$0xff]
    %v113 = vld [vmem:[#allocation5 + $0x138] sm:$0xff]
    %v114 = vld [vmem:[#allocation5 + $0x140] sm:$0xf]
    %v115 = vld [vmem:[#allocation5 + $0x144] sm:$0xff]
    %v116 = vld [vmem:[#allocation5 + $0x14c] sm:$0xff]
    %v117 = vld [vmem:[#allocation5 + $0x154] sm:$0xff]
    %v118 = vld [vmem:[#allocation5 + $0x15c] sm:$0xff]
    %v119 = vld [vmem:[#allocation5 + $0x164] sm:$0xf]
    %v120 = vld [vmem:[#allocation5 + $0x168] sm:$0xff]
    %v121 = vld [vmem:[#allocation5 + $0x170] sm:$0xff]
    %v122 = vld [vmem:[#allocation5 + $0x178] sm:$0xff]
    %v123 = vld [vmem:[#allocation5 + $0x180] sm:$0xff]
    %v124 = vld [vmem:[#allocation5 + $0x188] sm:$0xf]
    %v125 = vld [vmem:[#allocation5 + $0x18c] sm:$0xff]
    %v126 = vld [vmem:[#allocation5 + $0x194] sm:$0xff]
    %v127 = vld [vmem:[#allocation5 + $0x19c] sm:$0xff]
    %v128 = vld [vmem:[#allocation5 + $0x1a4] sm:$0xff]
    %v129 = vld [vmem:[#allocation5 + $0x1ac] sm:$0xf]
    %v130 = vld [vmem:[#allocation5 + $0x1b0] sm:$0xff]
    %v131 = vld [vmem:[#allocation5 + $0x1b8] sm:$0xff]
    %v132 = vld [vmem:[#allocation5 + $0x1c0] sm:$0xff]
    %v133 = vld [vmem:[#allocation5 + $0x1c8] sm:$0xff]
    %v134 = vld [vmem:[#allocation5 + $0x1d0] sm:$0xf]
    %v135 = vld [vmem:[#allocation5 + $0x1d4] sm:$0xff]
    %v136 = vld [vmem:[#allocation5 + $0x1dc] sm:$0xff]
    %v137 = vld [vmem:[#allocation5 + $0x1e4] sm:$0xff]
    %v138 = vld [vmem:[#allocation5 + $0x1ec] sm:$0xff]
    %v139 = vld [vmem:[#allocation5 + $0x1f4] sm:$0xf]
    %v140 = vld [vmem:[#allocation5 + $0x1f8] sm:$0xff]
    %v141 = vld [vmem:[#allocation5 + $0x200] sm:$0xff]
    %v142 = vld [vmem:[#allocation5 + $0x208] sm:$0xff]
    %v143 = vld [vmem:[#allocation5 + $0x210] sm:$0xff]
    %v144 = vld [vmem:[#allocation5 + $0x218] sm:$0xf]
    %v145 = vld [vmem:[#allocation5 + $0x21c] sm:$0xff]
    %v146 = vld [vmem:[#allocation5 + $0x224] sm:$0xff]
    %v147 = vld [vmem:[#allocation5 + $0x22c] sm:$0xff]
    %v148 = vld [vmem:[#allocation5 + $0x234] sm:$0xff]
    %v149 = vld [vmem:[#allocation5 + $0x23c] sm:$0xf]
    %v150 = vld [vmem:[#allocation5 + $0x240] sm:$0xff]
    %v151 = vld [vmem:[#allocation5 + $0x248] sm:$0xff]
    %v152 = vld [vmem:[#allocation5 + $0x250] sm:$0xff]
    %v153 = vld [vmem:[#allocation5 + $0x258] sm:$0xff]
    %v154 = vld [vmem:[#allocation5 + $0x260] sm:$0xf]
    %v155 = vld [vmem:[#allocation5 + $0x264] sm:$0xff]
    %v156 = vld [vmem:[#allocation5 + $0x26c] sm:$0xff]
    %v157 = vld [vmem:[#allocation5 + $0x274] sm:$0xff]
    %v158 = vld [vmem:[#allocation5 + $0x27c] sm:$0xff]
    %v159 = vld [vmem:[#allocation5 + $0x284] sm:$0xf]
    %v160 = vld [vmem:[#allocation5 + $0x288] sm:$0xff]
    %v161 = vld [vmem:[#allocation5 + $0x290] sm:$0xff]
    %v162 = vld [vmem:[#allocation5 + $0x298] sm:$0xff]
    %v163 = vld [vmem:[#allocation5 + $0x2a0] sm:$0xff]
    %v164 = vld [vmem:[#allocation5 + $0x2a8] sm:$0xf]
    %v165 = vld [vmem:[#allocation5 + $0x2ac] sm:$0xff]
    %v166 = vld [vmem:[#allocation5 + $0x2b4] sm:$0xff]
    %v167 = vld [vmem:[#allocation5 + $0x2bc] sm:$0xff]
    %v168 = vld [vmem:[#allocation5 + $0x2c4] sm:$0xff]
    %v169 = vld [vmem:[#allocation5 + $0x2cc] sm:$0xf]
    %v170 = vld [vmem:[#allocation5 + $0x2d0] sm:$0xff]
    %v171 = vld [vmem:[#allocation5 + $0x2d8] sm:$0xff]
    %v172 = vld [vmem:[#allocation5 + $0x2e0] sm:$0xff]
    %v173 = vld [vmem:[#allocation5 + $0x2e8] sm:$0xff]
    %v174 = vld [vmem:[#allocation5 + $0x2f0] sm:$0xf]
    %v175 = vld [vmem:[#allocation5 + $0x2f4] sm:$0xff]
    %v176 = vld [vmem:[#allocation5 + $0x2fc] sm:$0xff]
    %v177 = vld [vmem:[#allocation5 + $0x304] sm:$0xff]
    %v178 = vld [vmem:[#allocation5 + $0x30c] sm:$0xff]
    %v179 = vld [vmem:[#allocation5 + $0x314] sm:$0xf]
    %v180 = vld [vmem:[#allocation5 + $0x318] sm:$0xff]
    %v181 = vld [vmem:[#allocation5 + $0x320] sm:$0xff]
    %v182 = vld [vmem:[#allocation5 + $0x328] sm:$0xff]
    %v183 = vld [vmem:[#allocation5 + $0x330] sm:$0xff]
    %v184 = vld [vmem:[#allocation5 + $0x338] sm:$0xf]
    %v185 = vld [vmem:[#allocation5 + $0x33c] sm:$0xff]
    %v186 = vld [vmem:[#allocation5 + $0x344] sm:$0xff]
    %v187 = vld [vmem:[#allocation5 + $0x34c] sm:$0xff]
    %v188 = vld [vmem:[#allocation5 + $0x354] sm:$0xff]
    %v189 = vld [vmem:[#allocation5 + $0x35c] sm:$0xf]
    %v190 = vld [vmem:[#allocation5 + $0x360] sm:$0xff]
    %v191 = vld [vmem:[#allocation5 + $0x368] sm:$0xff]
    %v192 = vld [vmem:[#allocation5 + $0x370] sm:$0xff]
    %v193 = vld [vmem:[#allocation5 + $0x378] sm:$0xff]
    %v194 = vld [vmem:[#allocation5 + $0x380] sm:$0xf]
    %v195 = vld [vmem:[#allocation5 + $0x384] sm:$0xff]
    %v196 = vld [vmem:[#allocation5 + $0x38c] sm:$0xff]
    %v197 = vld [vmem:[#allocation5 + $0x394] sm:$0xff]
    %v198 = vld [vmem:[#allocation5 + $0x39c] sm:$0xff]
    %v199 = vld [vmem:[#allocation5 + $0x3a4] sm:$0xf]
    %v200 = vld [vmem:[#allocation5 + $0x3a8] sm:$0xff]
    %v201 = vld [vmem:[#allocation5 + $0x3b0] sm:$0xff]
    %v202 = vld [vmem:[#allocation5 + $0x3b8] sm:$0xff]
    %v203 = vld [vmem:[#allocation5 + $0x3c0] sm:$0xff]
    %v204 = vld [vmem:[#allocation5 + $0x3c8] sm:$0xf]
    %v205 = vld [vmem:[#allocation5 + $0x3cc] sm:$0xff]
    %v206 = vld [vmem:[#allocation5 + $0x3d4] sm:$0xff]
    %v207 = vld [vmem:[#allocation5 + $0x3dc] sm:$0xff]
    %v208 = vld [vmem:[#allocation5 + $0x3e4] sm:$0xff]
    %v209 = vld [vmem:[#allocation5 + $0x3ec] sm:$0xf]
    %v210 = vld [vmem:[#allocation5 + $0x3f0] sm:$0xff]
    %v211 = vld [vmem:[#allocation5 + $0x3f8] sm:$0xff]
    %v212 = vld [vmem:[#allocation5 + $0x400] sm:$0xff]
    %v213 = vld [vmem:[#allocation5 + $0x408] sm:$0xff]
    %v214 = vld [vmem:[#allocation5 + $0x410] sm:$0xf]
    %v215 = vld [vmem:[#allocation5 + $0x414] sm:$0xff]
    %v216 = vld [vmem:[#allocation5 + $0x41c] sm:$0xff]
    %v217 = vld [vmem:[#allocation5 + $0x424] sm:$0xff]
    %v218 = vld [vmem:[#allocation5 + $0x42c] sm:$0xff]
    %v219 = vld [vmem:[#allocation5 + $0x434] sm:$0xf]
    %v220 = vld [vmem:[#allocation5 + $0x438] sm:$0xff]
    %v221 = vld [vmem:[#allocation5 + $0x440] sm:$0xff]
    %v222 = vld [vmem:[#allocation5 + $0x448] sm:$0xff]
    %v223 = vld [vmem:[#allocation5 + $0x450] sm:$0xff]
    %v224 = vld [vmem:[#allocation5 + $0x458] sm:$0xf]
    %v225 = vld [vmem:[#allocation5 + $0x45c] sm:$0xff]
    %v226 = vld [vmem:[#allocation5 + $0x464] sm:$0xff]
    %v227 = vld [vmem:[#allocation5 + $0x46c] sm:$0xff]
    %v228 = vld [vmem:[#allocation5 + $0x474] sm:$0xff]
    %v229 = vld [vmem:[#allocation5 + $0x47c] sm:$0xf]
    %v230 = vld [vmem:[#allocation5 + $0x480] sm:$0xff]
    %v231 = vld [vmem:[#allocation5 + $0x488] sm:$0xff]
    %v232 = vld [vmem:[#allocation5 + $0x490] sm:$0xff]
    %v233 = vld [vmem:[#allocation5 + $0x498] sm:$0xff]
    %v234 = vld [vmem:[#allocation5 + $0x4a0] sm:$0xf]
    %v235 = vld [vmem:[#allocation5 + $0x4a4] sm:$0xff]
    %v236 = vld [vmem:[#allocation5 + $0x4ac] sm:$0xff]
    %v237 = vld [vmem:[#allocation5 + $0x4b4] sm:$0xff]
    %v238 = vld [vmem:[#allocation5 + $0x4bc] sm:$0xff]
    %v239 = vld [vmem:[#allocation5 + $0x4c4] sm:$0xf]
    %v240 = vld [vmem:[#allocation5 + $0x4c8] sm:$0xff]
    %v241 = vld [vmem:[#allocation5 + $0x4d0] sm:$0xff]
    %v242 = vld [vmem:[#allocation5 + $0x4d8] sm:$0xff]
    %v243 = vld [vmem:[#allocation5 + $0x4e0] sm:$0xff]
    %v244 = vld [vmem:[#allocation5 + $0x4e8] sm:$0xf]
    %v245 = vld [vmem:[#allocation5 + $0x4ec] sm:$0xff]
    %v246 = vld [vmem:[#allocation5 + $0x4f4] sm:$0xff]
    %v247 = vld [vmem:[#allocation5 + $0x4fc] sm:$0xff]
    %v248 = vld [vmem:[#allocation5 + $0x504] sm:$0xff]
    %v249 = vld [vmem:[#allocation5 + $0x50c] sm:$0xf]
    %v250 = vld [vmem:[#allocation5 + $0x510] sm:$0xff]
    %v251 = vld [vmem:[#allocation5 + $0x518] sm:$0xff]
    %v252 = vld [vmem:[#allocation5 + $0x520] sm:$0xff]
    %v253 = vld [vmem:[#allocation5 + $0x528] sm:$0xff]
    %v254 = vld [vmem:[#allocation5 + $0x530] sm:$0xf]
    %v255 = vld [vmem:[#allocation5 + $0x534] sm:$0xff]
    %v256 = vld [vmem:[#allocation5 + $0x53c] sm:$0xff]
    %v257 = vld [vmem:[#allocation5 + $0x544] sm:$0xff]
    %v258 = vld [vmem:[#allocation5 + $0x54c] sm:$0xff]
    %v259 = vld [vmem:[#allocation5 + $0x554] sm:$0xf]
    %v260 = vld [vmem:[#allocation5 + $0x558] sm:$0xff]
    %v261 = vld [vmem:[#allocation5 + $0x560] sm:$0xff]
    %v262 = vld [vmem:[#allocation5 + $0x568] sm:$0xff]
    %v263 = vld [vmem:[#allocation5 + $0x570] sm:$0xff]
    %v264 = vld [vmem:[#allocation5 + $0x578] sm:$0xf]
    %v265 = vld [vmem:[#allocation5 + $0x57c] sm:$0xff]
    %v266 = vld [vmem:[#allocation5 + $0x584] sm:$0xff]
    %v267 = vld [vmem:[#allocation5 + $0x58c] sm:$0xff]
    %v268 = vld [vmem:[#allocation5 + $0x594] sm:$0xff]
    %v269 = vld [vmem:[#allocation5 + $0x59c] sm:$0xf]
    %v270 = vld [vmem:[#allocation5 + $0x5a0] sm:$0xff]
    %v271 = vld [vmem:[#allocation5 + $0x5a8] sm:$0xff]
    %v272 = vld [vmem:[#allocation5 + $0x5b0] sm:$0xff]
    %v273 = vld [vmem:[#allocation5 + $0x5b8] sm:$0xff]
    %v274 = vld [vmem:[#allocation5 + $0x5c0] sm:$0xf]
    %v275 = vld [vmem:[#allocation5 + $0x5c4] sm:$0xff]
    %v276 = vld [vmem:[#allocation5 + $0x5cc] sm:$0xff]
    %v277 = vld [vmem:[#allocation5 + $0x5d4] sm:$0xff]
    %v278 = vld [vmem:[#allocation5 + $0x5dc] sm:$0xff]
    %v279 = vld [vmem:[#allocation5 + $0x5e4] sm:$0xf]
    %v280 = vld [vmem:[#allocation5 + $0x5e8] sm:$0xff]
    %v281 = vld [vmem:[#allocation5 + $0x5f0] sm:$0xff]
    %v282 = vld [vmem:[#allocation5 + $0x5f8] sm:$0xff]
    %v283 = vld [vmem:[#allocation5 + $0x600] sm:$0xff]
    %v284 = vld [vmem:[#allocation5 + $0x608] sm:$0xf]
    %v285 = vld [vmem:[#allocation5 + $0x60c] sm:$0xff]
    %v286 = vld [vmem:[#allocation5 + $0x614] sm:$0xff]
    %v287 = vld [vmem:[#allocation5 + $0x61c] sm:$0xff]
    %v288 = vld [vmem:[#allocation5 + $0x624] sm:$0xff]
    %v289 = vld [vmem:[#allocation5 + $0x62c] sm:$0xf]
    %v290 = vld [vmem:[#allocation5 + $0x630] sm:$0xff]
    %v291 = vld [vmem:[#allocation5 + $0x638] sm:$0xff]
    %v292 = vld [vmem:[#allocation5 + $0x640] sm:$0xff]
    %v293 = vld [vmem:[#allocation5 + $0x648] sm:$0xff]
    %v294 = vld [vmem:[#allocation5 + $0x650] sm:$0xf]
    %v295 = vld [vmem:[#allocation5 + $0x654] sm:$0xff]
    %v296 = vld [vmem:[#allocation5 + $0x65c] sm:$0xff]
    %v297 = vld [vmem:[#allocation5 + $0x664] sm:$0xff]
    %v298 = vld [vmem:[#allocation5 + $0x66c] sm:$0xff]
    %v299 = vld [vmem:[#allocation5 + $0x674] sm:$0xf]
    %v300 = vld [vmem:[#allocation5 + $0x678] sm:$0xff]
    %v301 = vld [vmem:[#allocation5 + $0x680] sm:$0xff]
    %v302 = vld [vmem:[#allocation5 + $0x688] sm:$0xff]
    %v303 = vld [vmem:[#allocation5 + $0x690] sm:$0xff]
    %v304 = vld [vmem:[#allocation5 + $0x698] sm:$0xf]
    %v305 = vld [vmem:[#allocation5 + $0x69c] sm:$0xff]
    %v306 = vld [vmem:[#allocation5 + $0x6a4] sm:$0xff]
    %v307 = vld [vmem:[#allocation5 + $0x6ac] sm:$0xff]
    %v308 = vld [vmem:[#allocation5 + $0x6b4] sm:$0xff]
    %v309 = vld [vmem:[#allocation5 + $0x6bc] sm:$0xf]
    %v310 = vld [vmem:[%s3] sm:$0xff]
    %v311 = vld [vmem:[%s3 + $0x8] sm:$0x1]
    %v314 = vperm.slane %v310, 0
    %v315 = vperm.slane %v310, 1
    %v316 = vperm.slane %v310, 2
    %v317 = vperm.slane %v310, 3
    %v318 = vperm.slane %v310, 4
    %v319 = vperm.slane %v310, 5
    %v320 = vperm.slane %v310, 6
    %v321 = vperm.slane %v310, 7
    %v322 = vperm.slane %v311, 0
    %v572 = vunpack.c.l.b16 %v70
    %v573 = vunpack.c.h.b16 %v70
    %v574 = vunpack.c.l.b16 %v71
    %v575 = vunpack.c.h.b16 %v71
    %v576 = vunpack.c.l.b16 %v72
    %v577 = vunpack.c.h.b16 %v72
    %v578 = vunpack.c.l.b16 %v73
    %v579 = vunpack.c.h.b16 %v73
    %v580 = vunpack.c.l.b16 %v74
    %v581 = vunpack.c.l.b16 %v75
    %v582 = vunpack.c.h.b16 %v75
    %v583 = vunpack.c.l.b16 %v76
    %v584 = vunpack.c.h.b16 %v76
    %v585 = vunpack.c.l.b16 %v77
    %v586 = vunpack.c.h.b16 %v77
    %v587 = vunpack.c.l.b16 %v78
    %v588 = vunpack.c.h.b16 %v78
    %v589 = vunpack.c.l.b16 %v79
    %v590 = vunpack.c.l.b16 %v80
    %v591 = vunpack.c.h.b16 %v80
    %v592 = vunpack.c.l.b16 %v81
    %v593 = vunpack.c.h.b16 %v81
    %v594 = vunpack.c.l.b16 %v82
    %v595 = vunpack.c.h.b16 %v82
    %v596 = vunpack.c.l.b16 %v83
    %v597 = vunpack.c.h.b16 %v83
    %v598 = vunpack.c.l.b16 %v84
    %v599 = vunpack.c.l.b16 %v85
    %v600 = vunpack.c.h.b16 %v85
    %v601 = vunpack.c.l.b16 %v86
    %v602 = vunpack.c.h.b16 %v86
    %v603 = vunpack.c.l.b16 %v87
    %v604 = vunpack.c.h.b16 %v87
    %v605 = vunpack.c.l.b16 %v88
    %v606 = vunpack.c.h.b16 %v88
    %v607 = vunpack.c.l.b16 %v89
    %v608 = vunpack.c.l.b16 %v90
    %v609 = vunpack.c.h.b16 %v90
    %v610 = vunpack.c.l.b16 %v91
    %v611 = vunpack.c.h.b16 %v91
    %v612 = vunpack.c.l.b16 %v92
    %v613 = vunpack.c.h.b16 %v92
    %v614 = vunpack.c.l.b16 %v93
    %v615 = vunpack.c.h.b16 %v93
    %v616 = vunpack.c.l.b16 %v94
    %v617 = vunpack.c.l.b16 %v95
    %v618 = vunpack.c.h.b16 %v95
    %v619 = vunpack.c.l.b16 %v96
    %v620 = vunpack.c.h.b16 %v96
    %v621 = vunpack.c.l.b16 %v97
    %v622 = vunpack.c.h.b16 %v97
    %v623 = vunpack.c.l.b16 %v98
    %v624 = vunpack.c.h.b16 %v98
    %v625 = vunpack.c.l.b16 %v99
    %v626 = vunpack.c.l.b16 %v100
    %v627 = vunpack.c.h.b16 %v100
    %v628 = vunpack.c.l.b16 %v101
    %v629 = vunpack.c.h.b16 %v101
    %v630 = vunpack.c.l.b16 %v102
    %v631 = vunpack.c.h.b16 %v102
    %v632 = vunpack.c.l.b16 %v103
    %v633 = vunpack.c.h.b16 %v103
    %v634 = vunpack.c.l.b16 %v104
    %v635 = vunpack.c.l.b16 %v105
    %v636 = vunpack.c.h.b16 %v105
    %v637 = vunpack.c.l.b16 %v106
    %v638 = vunpack.c.h.b16 %v106
    %v639 = vunpack.c.l.b16 %v107
    %v640 = vunpack.c.h.b16 %v107
    %v641 = vunpack.c.l.b16 %v108
    %v642 = vunpack.c.h.b16 %v108
    %v643 = vunpack.c.l.b16 %v109
    %v644 = vunpack.c.l.b16 %v110
    %v645 = vunpack.c.h.b16 %v110
    %v646 = vunpack.c.l.b16 %v111
    %v647 = vunpack.c.h.b16 %v111
    %v648 = vunpack.c.l.b16 %v112
    %v649 = vunpack.c.h.b16 %v112
    %v650 = vunpack.c.l.b16 %v113
    %v651 = vunpack.c.h.b16 %v113
    %v652 = vunpack.c.l.b16 %v114
    %v653 = vunpack.c.l.b16 %v115
    %v654 = vunpack.c.h.b16 %v115
    %v655 = vunpack.c.l.b16 %v116
    %v656 = vunpack.c.h.b16 %v116
    %v657 = vunpack.c.l.b16 %v117
    %v658 = vunpack.c.h.b16 %v117
    %v659 = vunpack.c.l.b16 %v118
    %v660 = vunpack.c.h.b16 %v118
    %v661 = vunpack.c.l.b16 %v119
    %v662 = vunpack.c.l.b16 %v120
    %v663 = vunpack.c.h.b16 %v120
    %v664 = vunpack.c.l.b16 %v121
    %v665 = vunpack.c.h.b16 %v121
    %v666 = vunpack.c.l.b16 %v122
    %v667 = vunpack.c.h.b16 %v122
    %v668 = vunpack.c.l.b16 %v123
    %v669 = vunpack.c.h.b16 %v123
    %v670 = vunpack.c.l.b16 %v124
    %v671 = vunpack.c.l.b16 %v125
    %v672 = vunpack.c.h.b16 %v125
    %v673 = vunpack.c.l.b16 %v126
    %v674 = vunpack.c.h.b16 %v126
    %v675 = vunpack.c.l.b16 %v127
    %v676 = vunpack.c.h.b16 %v127
    %v677 = vunpack.c.l.b16 %v128
    %v678 = vunpack.c.h.b16 %v128
    %v679 = vunpack.c.l.b16 %v129
    %v680 = vunpack.c.l.b16 %v130
    %v681 = vunpack.c.h.b16 %v130
    %v682 = vunpack.c.l.b16 %v131
    %v683 = vunpack.c.h.b16 %v131
    %v684 = vunpack.c.l.b16 %v132
    %v685 = vunpack.c.h.b16 %v132
    %v686 = vunpack.c.l.b16 %v133
    %v687 = vunpack.c.h.b16 %v133
    %v688 = vunpack.c.l.b16 %v134
    %v689 = vunpack.c.l.b16 %v135
    %v690 = vunpack.c.h.b16 %v135
    %v691 = vunpack.c.l.b16 %v136
    %v692 = vunpack.c.h.b16 %v136
    %v693 = vunpack.c.l.b16 %v137
    %v694 = vunpack.c.h.b16 %v137
    %v695 = vunpack.c.l.b16 %v138
    %v696 = vunpack.c.h.b16 %v138
    %v697 = vunpack.c.l.b16 %v139
    %v698 = vunpack.c.l.b16 %v140
    %v699 = vunpack.c.h.b16 %v140
    %v700 = vunpack.c.l.b16 %v141
    %v701 = vunpack.c.h.b16 %v141
    %v702 = vunpack.c.l.b16 %v142
    %v703 = vunpack.c.h.b16 %v142
    %v704 = vunpack.c.l.b16 %v143
    %v705 = vunpack.c.h.b16 %v143
    %v706 = vunpack.c.l.b16 %v144
    %v707 = vunpack.c.l.b16 %v145
    %v708 = vunpack.c.h.b16 %v145
    %v709 = vunpack.c.l.b16 %v146
    %v710 = vunpack.c.h.b16 %v146
    %v711 = vunpack.c.l.b16 %v147
    %v712 = vunpack.c.h.b16 %v147
    %v713 = vunpack.c.l.b16 %v148
    %v714 = vunpack.c.h.b16 %v148
    %v715 = vunpack.c.l.b16 %v149
    %v716 = vunpack.c.l.b16 %v150
    %v717 = vunpack.c.h.b16 %v150
    %v718 = vunpack.c.l.b16 %v151
    %v719 = vunpack.c.h.b16 %v151
    %v720 = vunpack.c.l.b16 %v152
    %v721 = vunpack.c.h.b16 %v152
    %v722 = vunpack.c.l.b16 %v153
    %v723 = vunpack.c.h.b16 %v153
    %v724 = vunpack.c.l.b16 %v154
    %v725 = vunpack.c.l.b16 %v155
    %v726 = vunpack.c.h.b16 %v155
    %v727 = vunpack.c.l.b16 %v156
    %v728 = vunpack.c.h.b16 %v156
    %v729 = vunpack.c.l.b16 %v157
    %v730 = vunpack.c.h.b16 %v157
    %v731 = vunpack.c.l.b16 %v158
    %v732 = vunpack.c.h.b16 %v158
    %v733 = vunpack.c.l.b16 %v159
    %v734 = vunpack.c.l.b16 %v160
    %v735 = vunpack.c.h.b16 %v160
    %v736 = vunpack.c.l.b16 %v161
    %v737 = vunpack.c.h.b16 %v161
    %v738 = vunpack.c.l.b16 %v162
    %v739 = vunpack.c.h.b16 %v162
    %v740 = vunpack.c.l.b16 %v163
    %v741 = vunpack.c.h.b16 %v163
    %v742 = vunpack.c.l.b16 %v164
    %v743 = vunpack.c.l.b16 %v165
    %v744 = vunpack.c.h.b16 %v165
    %v745 = vunpack.c.l.b16 %v166
    %v746 = vunpack.c.h.b16 %v166
    %v747 = vunpack.c.l.b16 %v167
    %v748 = vunpack.c.h.b16 %v167
    %v749 = vunpack.c.l.b16 %v168
    %v750 = vunpack.c.h.b16 %v168
    %v751 = vunpack.c.l.b16 %v169
    %v752 = vunpack.c.l.b16 %v170
    %v753 = vunpack.c.h.b16 %v170
    %v754 = vunpack.c.l.b16 %v171
    %v755 = vunpack.c.h.b16 %v171
    %v756 = vunpack.c.l.b16 %v172
    %v757 = vunpack.c.h.b16 %v172
    %v758 = vunpack.c.l.b16 %v173
    %v759 = vunpack.c.h.b16 %v173
    %v760 = vunpack.c.l.b16 %v174
    %v761 = vunpack.c.l.b16 %v175
    %v762 = vunpack.c.h.b16 %v175
    %v763 = vunpack.c.l.b16 %v176
    %v764 = vunpack.c.h.b16 %v176
    %v765 = vunpack.c.l.b16 %v177
    %v766 = vunpack.c.h.b16 %v177
    %v767 = vunpack.c.l.b16 %v178
    %v768 = vunpack.c.h.b16 %v178
    %v769 = vunpack.c.l.b16 %v179
    %v770 = vunpack.c.l.b16 %v180
    %v771 = vunpack.c.h.b16 %v180
    %v772 = vunpack.c.l.b16 %v181
    %v773 = vunpack.c.h.b16 %v181
    %v774 = vunpack.c.l.b16 %v182
    %v775 = vunpack.c.h.b16 %v182
    %v776 = vunpack.c.l.b16 %v183
    %v777 = vunpack.c.h.b16 %v183
    %v778 = vunpack.c.l.b16 %v184
    %v779 = vunpack.c.l.b16 %v185
    %v780 = vunpack.c.h.b16 %v185
    %v781 = vunpack.c.l.b16 %v186
    %v782 = vunpack.c.h.b16 %v186
    %v783 = vunpack.c.l.b16 %v187
    %v784 = vunpack.c.h.b16 %v187
    %v785 = vunpack.c.l.b16 %v188
    %v786 = vunpack.c.h.b16 %v188
    %v787 = vunpack.c.l.b16 %v189
    %v788 = vunpack.c.l.b16 %v190
    %v789 = vunpack.c.h.b16 %v190
    %v790 = vunpack.c.l.b16 %v191
    %v791 = vunpack.c.h.b16 %v191
    %v792 = vunpack.c.l.b16 %v192
    %v793 = vunpack.c.h.b16 %v192
    %v794 = vunpack.c.l.b16 %v193
    %v795 = vunpack.c.h.b16 %v193
    %v796 = vunpack.c.l.b16 %v194
    %v797 = vunpack.c.l.b16 %v195
    %v798 = vunpack.c.h.b16 %v195
    %v799 = vunpack.c.l.b16 %v196
    %v800 = vunpack.c.h.b16 %v196
    %v801 = vunpack.c.l.b16 %v197
    %v802 = vunpack.c.h.b16 %v197
    %v803 = vunpack.c.l.b16 %v198
    %v804 = vunpack.c.h.b16 %v198
    %v805 = vunpack.c.l.b16 %v199
    %v806 = vunpack.c.l.b16 %v200
    %v807 = vunpack.c.h.b16 %v200
    %v808 = vunpack.c.l.b16 %v201
    %v809 = vunpack.c.h.b16 %v201
    %v810 = vunpack.c.l.b16 %v202
    %v811 = vunpack.c.h.b16 %v202
    %v812 = vunpack.c.l.b16 %v203
    %v813 = vunpack.c.h.b16 %v203
    %v814 = vunpack.c.l.b16 %v204
    %v815 = vunpack.c.l.b16 %v205
    %v816 = vunpack.c.h.b16 %v205
    %v817 = vunpack.c.l.b16 %v206
    %v818 = vunpack.c.h.b16 %v206
    %v819 = vunpack.c.l.b16 %v207
    %v820 = vunpack.c.h.b16 %v207
    %v821 = vunpack.c.l.b16 %v208
    %v822 = vunpack.c.h.b16 %v208
    %v823 = vunpack.c.l.b16 %v209
    %v824 = vunpack.c.l.b16 %v210
    %v825 = vunpack.c.h.b16 %v210
    %v826 = vunpack.c.l.b16 %v211
    %v827 = vunpack.c.h.b16 %v211
    %v828 = vunpack.c.l.b16 %v212
    %v829 = vunpack.c.h.b16 %v212
    %v830 = vunpack.c.l.b16 %v213
    %v831 = vunpack.c.h.b16 %v213
    %v832 = vunpack.c.l.b16 %v214
    %v833 = vunpack.c.l.b16 %v215
    %v834 = vunpack.c.h.b16 %v215
    %v835 = vunpack.c.l.b16 %v216
    %v836 = vunpack.c.h.b16 %v216
    %v837 = vunpack.c.l.b16 %v217
    %v838 = vunpack.c.h.b16 %v217
    %v839 = vunpack.c.l.b16 %v218
    %v840 = vunpack.c.h.b16 %v218
    %v841 = vunpack.c.l.b16 %v219
    %v842 = vunpack.c.l.b16 %v220
    %v843 = vunpack.c.h.b16 %v220
    %v844 = vunpack.c.l.b16 %v221
    %v845 = vunpack.c.h.b16 %v221
    %v846 = vunpack.c.l.b16 %v222
    %v847 = vunpack.c.h.b16 %v222
    %v848 = vunpack.c.l.b16 %v223
    %v849 = vunpack.c.h.b16 %v223
    %v850 = vunpack.c.l.b16 %v224
    %v851 = vunpack.c.l.b16 %v225
    %v852 = vunpack.c.h.b16 %v225
    %v853 = vunpack.c.l.b16 %v226
    %v854 = vunpack.c.h.b16 %v226
    %v855 = vunpack.c.l.b16 %v227
    %v856 = vunpack.c.h.b16 %v227
    %v857 = vunpack.c.l.b16 %v228
    %v858 = vunpack.c.h.b16 %v228
    %v859 = vunpack.c.l.b16 %v229
    %v860 = vunpack.c.l.b16 %v230
    %v861 = vunpack.c.h.b16 %v230
    %v862 = vunpack.c.l.b16 %v231
    %v863 = vunpack.c.h.b16 %v231
    %v864 = vunpack.c.l.b16 %v232
    %v865 = vunpack.c.h.b16 %v232
    %v866 = vunpack.c.l.b16 %v233
    %v867 = vunpack.c.h.b16 %v233
    %v868 = vunpack.c.l.b16 %v234
    %v869 = vunpack.c.l.b16 %v235
    %v870 = vunpack.c.h.b16 %v235
    %v871 = vunpack.c.l.b16 %v236
    %v872 = vunpack.c.h.b16 %v236
    %v873 = vunpack.c.l.b16 %v237
    %v874 = vunpack.c.h.b16 %v237
    %v875 = vunpack.c.l.b16 %v238
    %v876 = vunpack.c.h.b16 %v238
    %v877 = vunpack.c.l.b16 %v239
    %v878 = vunpack.c.l.b16 %v240
    %v879 = vunpack.c.h.b16 %v240
    %v880 = vunpack.c.l.b16 %v241
    %v881 = vunpack.c.h.b16 %v241
    %v882 = vunpack.c.l.b16 %v242
    %v883 = vunpack.c.h.b16 %v242
    %v884 = vunpack.c.l.b16 %v243
    %v885 = vunpack.c.h.b16 %v243
    %v886 = vunpack.c.l.b16 %v244
    %v887 = vunpack.c.l.b16 %v245
    %v888 = vunpack.c.h.b16 %v245
    %v889 = vunpack.c.l.b16 %v246
    %v890 = vunpack.c.h.b16 %v246
    %v891 = vunpack.c.l.b16 %v247
    %v892 = vunpack.c.h.b16 %v247
    %v893 = vunpack.c.l.b16 %v248
    %v894 = vunpack.c.h.b16 %v248
    %v895 = vunpack.c.l.b16 %v249
    %v896 = vunpack.c.l.b16 %v250
    %v897 = vunpack.c.h.b16 %v250
    %v898 = vunpack.c.l.b16 %v251
    %v899 = vunpack.c.h.b16 %v251
    %v900 = vunpack.c.l.b16 %v252
    %v901 = vunpack.c.h.b16 %v252
    %v902 = vunpack.c.l.b16 %v253
    %v903 = vunpack.c.h.b16 %v253
    %v904 = vunpack.c.l.b16 %v254
    %v905 = vunpack.c.l.b16 %v255
    %v906 = vunpack.c.h.b16 %v255
    %v907 = vunpack.c.l.b16 %v256
    %v908 = vunpack.c.h.b16 %v256
    %v909 = vunpack.c.l.b16 %v257
    %v910 = vunpack.c.h.b16 %v257
    %v911 = vunpack.c.l.b16 %v258
    %v912 = vunpack.c.h.b16 %v258
    %v913 = vunpack.c.l.b16 %v259
    %v914 = vunpack.c.l.b16 %v260
    %v915 = vunpack.c.h.b16 %v260
    %v916 = vunpack.c.l.b16 %v261
    %v917 = vunpack.c.h.b16 %v261
    %v918 = vunpack.c.l.b16 %v262
    %v919 = vunpack.c.h.b16 %v262
    %v920 = vunpack.c.l.b16 %v263
    %v921 = vunpack.c.h.b16 %v263
    %v922 = vunpack.c.l.b16 %v264
    %v923 = vunpack.c.l.b16 %v265
    %v924 = vunpack.c.h.b16 %v265
    %v925 = vunpack.c.l.b16 %v266
    %v926 = vunpack.c.h.b16 %v266
    %v927 = vunpack.c.l.b16 %v267
    %v928 = vunpack.c.h.b16 %v267
    %v929 = vunpack.c.l.b16 %v268
    %v930 = vunpack.c.h.b16 %v268
    %v931 = vunpack.c.l.b16 %v269
    %v932 = vunpack.c.l.b16 %v270
    %v933 = vunpack.c.h.b16 %v270
    %v934 = vunpack.c.l.b16 %v271
    %v935 = vunpack.c.h.b16 %v271
    %v936 = vunpack.c.l.b16 %v272
    %v937 = vunpack.c.h.b16 %v272
    %v938 = vunpack.c.l.b16 %v273
    %v939 = vunpack.c.h.b16 %v273
    %v940 = vunpack.c.l.b16 %v274
    %v941 = vunpack.c.l.b16 %v275
    %v942 = vunpack.c.h.b16 %v275
    %v943 = vunpack.c.l.b16 %v276
    %v944 = vunpack.c.h.b16 %v276
    %v945 = vunpack.c.l.b16 %v277
    %v946 = vunpack.c.h.b16 %v277
    %v947 = vunpack.c.l.b16 %v278
    %v948 = vunpack.c.h.b16 %v278
    %v949 = vunpack.c.l.b16 %v279
    %v950 = vunpack.c.l.b16 %v280
    %v951 = vunpack.c.h.b16 %v280
    %v952 = vunpack.c.l.b16 %v281
    %v953 = vunpack.c.h.b16 %v281
    %v954 = vunpack.c.l.b16 %v282
    %v955 = vunpack.c.h.b16 %v282
    %v956 = vunpack.c.l.b16 %v283
    %v957 = vunpack.c.h.b16 %v283
    %v958 = vunpack.c.l.b16 %v284
    %v959 = vunpack.c.l.b16 %v285
    %v960 = vunpack.c.h.b16 %v285
    %v961 = vunpack.c.l.b16 %v286
    %v962 = vunpack.c.h.b16 %v286
    %v963 = vunpack.c.l.b16 %v287
    %v964 = vunpack.c.h.b16 %v287
    %v965 = vunpack.c.l.b16 %v288
    %v966 = vunpack.c.h.b16 %v288
    %v967 = vunpack.c.l.b16 %v289
    %v968 = vunpack.c.l.b16 %v290
    %v969 = vunpack.c.h.b16 %v290
    %v970 = vunpack.c.l.b16 %v291
    %v971 = vunpack.c.h.b16 %v291
    %v972 = vunpack.c.l.b16 %v292
    %v973 = vunpack.c.h.b16 %v292
    %v974 = vunpack.c.l.b16 %v293
    %v975 = vunpack.c.h.b16 %v293
    %v976 = vunpack.c.l.b16 %v294
    %v977 = vunpack.c.l.b16 %v295
    %v978 = vunpack.c.h.b16 %v295
    %v979 = vunpack.c.l.b16 %v296
    %v980 = vunpack.c.h.b16 %v296
    %v981 = vunpack.c.l.b16 %v297
    %v982 = vunpack.c.h.b16 %v297
    %v983 = vunpack.c.l.b16 %v298
    %v984 = vunpack.c.h.b16 %v298
    %v985 = vunpack.c.l.b16 %v299
    %v986 = vunpack.c.l.b16 %v300
    %v987 = vunpack.c.h.b16 %v300
    %v988 = vunpack.c.l.b16 %v301
    %v989 = vunpack.c.h.b16 %v301
    %v990 = vunpack.c.l.b16 %v302
    %v991 = vunpack.c.h.b16 %v302
    %v992 = vunpack.c.l.b16 %v303
    %v993 = vunpack.c.h.b16 %v303
    %v994 = vunpack.c.l.b16 %v304
    %v995 = vunpack.c.l.b16 %v305
    %v996 = vunpack.c.h.b16 %v305
    %v997 = vunpack.c.l.b16 %v306
    %v998 = vunpack.c.h.b16 %v306
    %v999 = vunpack.c.l.b16 %v307
    %v1000 = vunpack.c.h.b16 %v307
    %v1001 = vunpack.c.l.b16 %v308
    %v1002 = vunpack.c.h.b16 %v308
    %v1003 = vunpack.c.l.b16 %v309
    %v1004 = vpack.c.b16 %v581, %v572
    %v1005 = vpack.c.b16 %v582, %v573
    %v1006 = vpack.c.b16 %v583, %v574
    %v1007 = vpack.c.b16 %v584, %v575
    %v1008 = vpack.c.b16 %v585, %v576
    %v1009 = vpack.c.b16 %v586, %v577
    %v1010 = vpack.c.b16 %v587, %v578
    %v1011 = vpack.c.b16 %v588, %v579
    %v1012 = vpack.c.b16 %v589, %v580
    %v1013 = vpack.c.b16 %v599, %v590
    %v1014 = vpack.c.b16 %v600, %v591
    %v1015 = vpack.c.b16 %v601, %v592
    %v1016 = vpack.c.b16 %v602, %v593
    %v1017 = vpack.c.b16 %v603, %v594
    %v1018 = vpack.c.b16 %v604, %v595
    %v1019 = vpack.c.b16 %v605, %v596
    %v1020 = vpack.c.b16 %v606, %v597
    %v1021 = vpack.c.b16 %v607, %v598
    %v1022 = vpack.c.b16 %v617, %v608
    %v1023 = vpack.c.b16 %v618, %v609
    %v1024 = vpack.c.b16 %v619, %v610
    %v1025 = vpack.c.b16 %v620, %v611
    %v1026 = vpack.c.b16 %v621, %v612
    %v1027 = vpack.c.b16 %v622, %v613
    %v1028 = vpack.c.b16 %v623, %v614
    %v1029 = vpack.c.b16 %v624, %v615
    %v1030 = vpack.c.b16 %v625, %v616
    %v1031 = vpack.c.b16 %v635, %v626
    %v1032 = vpack.c.b16 %v636, %v627
    %v1033 = vpack.c.b16 %v637, %v628
    %v1034 = vpack.c.b16 %v638, %v629
    %v1035 = vpack.c.b16 %v639, %v630
    %v1036 = vpack.c.b16 %v640, %v631
    %v1037 = vpack.c.b16 %v641, %v632
    %v1038 = vpack.c.b16 %v642, %v633
    %v1039 = vpack.c.b16 %v643, %v634
    %v1040 = vpack.c.b16 %v653, %v644
    %v1041 = vpack.c.b16 %v654, %v645
    %v1042 = vpack.c.b16 %v655, %v646
    %v1043 = vpack.c.b16 %v656, %v647
    %v1044 = vpack.c.b16 %v657, %v648
    %v1045 = vpack.c.b16 %v658, %v649
    %v1046 = vpack.c.b16 %v659, %v650
    %v1047 = vpack.c.b16 %v660, %v651
    %v1048 = vpack.c.b16 %v661, %v652
    %v1049 = vpack.c.b16 %v671, %v662
    %v1050 = vpack.c.b16 %v672, %v663
    %v1051 = vpack.c.b16 %v673, %v664
    %v1052 = vpack.c.b16 %v674, %v665
    %v1053 = vpack.c.b16 %v675, %v666
    %v1054 = vpack.c.b16 %v676, %v667
    %v1055 = vpack.c.b16 %v677, %v668
    %v1056 = vpack.c.b16 %v678, %v669
    %v1057 = vpack.c.b16 %v679, %v670
    %v1058 = vpack.c.b16 %v689, %v680
    %v1059 = vpack.c.b16 %v690, %v681
    %v1060 = vpack.c.b16 %v691, %v682
    %v1061 = vpack.c.b16 %v692, %v683
    %v1062 = vpack.c.b16 %v693, %v684
    %v1063 = vpack.c.b16 %v694, %v685
    %v1064 = vpack.c.b16 %v695, %v686
    %v1065 = vpack.c.b16 %v696, %v687
    %v1066 = vpack.c.b16 %v697, %v688
    %v1067 = vpack.c.b16 %v707, %v698
    %v1068 = vpack.c.b16 %v708, %v699
    %v1069 = vpack.c.b16 %v709, %v700
    %v1070 = vpack.c.b16 %v710, %v701
    %v1071 = vpack.c.b16 %v711, %v702
    %v1072 = vpack.c.b16 %v712, %v703
    %v1073 = vpack.c.b16 %v713, %v704
    %v1074 = vpack.c.b16 %v714, %v705
    %v1075 = vpack.c.b16 %v715, %v706
    %v1076 = vpack.c.b16 %v725, %v716
    %v1077 = vpack.c.b16 %v726, %v717
    %v1078 = vpack.c.b16 %v727, %v718
    %v1079 = vpack.c.b16 %v728, %v719
    %v1080 = vpack.c.b16 %v729, %v720
    %v1081 = vpack.c.b16 %v730, %v721
    %v1082 = vpack.c.b16 %v731, %v722
    %v1083 = vpack.c.b16 %v732, %v723
    %v1084 = vpack.c.b16 %v733, %v724
    %v1085 = vpack.c.b16 %v743, %v734
    %v1086 = vpack.c.b16 %v744, %v735
    %v1087 = vpack.c.b16 %v745, %v736
    %v1088 = vpack.c.b16 %v746, %v737
    %v1089 = vpack.c.b16 %v747, %v738
    %v1090 = vpack.c.b16 %v748, %v739
    %v1091 = vpack.c.b16 %v749, %v740
    %v1092 = vpack.c.b16 %v750, %v741
    %v1093 = vpack.c.b16 %v751, %v742
    %v1094 = vpack.c.b16 %v761, %v752
    %v1095 = vpack.c.b16 %v762, %v753
    %v1096 = vpack.c.b16 %v763, %v754
    %v1097 = vpack.c.b16 %v764, %v755
    %v1098 = vpack.c.b16 %v765, %v756
    %v1099 = vpack.c.b16 %v766, %v757
    %v1100 = vpack.c.b16 %v767, %v758
    %v1101 = vpack.c.b16 %v768, %v759
    %v1102 = vpack.c.b16 %v769, %v760
    %v1103 = vpack.c.b16 %v779, %v770
    %v1104 = vpack.c.b16 %v780, %v771
    %v1105 = vpack.c.b16 %v781, %v772
    %v1106 = vpack.c.b16 %v782, %v773
    %v1107 = vpack.c.b16 %v783, %v774
    %v1108 = vpack.c.b16 %v784, %v775
    %v1109 = vpack.c.b16 %v785, %v776
    %v1110 = vpack.c.b16 %v786, %v777
    %v1111 = vpack.c.b16 %v787, %v778
    %v1112 = vpack.c.b16 %v797, %v788
    %v1113 = vpack.c.b16 %v798, %v789
    %v1114 = vpack.c.b16 %v799, %v790
    %v1115 = vpack.c.b16 %v800, %v791
    %v1116 = vpack.c.b16 %v801, %v792
    %v1117 = vpack.c.b16 %v802, %v793
    %v1118 = vpack.c.b16 %v803, %v794
    %v1119 = vpack.c.b16 %v804, %v795
    %v1120 = vpack.c.b16 %v805, %v796
    %v1121 = vpack.c.b16 %v815, %v806
    %v1122 = vpack.c.b16 %v816, %v807
    %v1123 = vpack.c.b16 %v817, %v808
    %v1124 = vpack.c.b16 %v818, %v809
    %v1125 = vpack.c.b16 %v819, %v810
    %v1126 = vpack.c.b16 %v820, %v811
    %v1127 = vpack.c.b16 %v821, %v812
    %v1128 = vpack.c.b16 %v822, %v813
    %v1129 = vpack.c.b16 %v823, %v814
    %v1130 = vpack.c.b16 %v833, %v824
    %v1131 = vpack.c.b16 %v834, %v825
    %v1132 = vpack.c.b16 %v835, %v826
    %v1133 = vpack.c.b16 %v836, %v827
    %v1134 = vpack.c.b16 %v837, %v828
    %v1135 = vpack.c.b16 %v838, %v829
    %v1136 = vpack.c.b16 %v839, %v830
    %v1137 = vpack.c.b16 %v840, %v831
    %v1138 = vpack.c.b16 %v841, %v832
    %v1139 = vpack.c.b16 %v851, %v842
    %v1140 = vpack.c.b16 %v852, %v843
    %v1141 = vpack.c.b16 %v853, %v844
    %v1142 = vpack.c.b16 %v854, %v845
    %v1143 = vpack.c.b16 %v855, %v846
    %v1144 = vpack.c.b16 %v856, %v847
    %v1145 = vpack.c.b16 %v857, %v848
    %v1146 = vpack.c.b16 %v858, %v849
    %v1147 = vpack.c.b16 %v859, %v850
    %v1148 = vpack.c.b16 %v869, %v860
    %v1149 = vpack.c.b16 %v870, %v861
    %v1150 = vpack.c.b16 %v871, %v862
    %v1151 = vpack.c.b16 %v872, %v863
    %v1152 = vpack.c.b16 %v873, %v864
    %v1153 = vpack.c.b16 %v874, %v865
    %v1154 = vpack.c.b16 %v875, %v866
    %v1155 = vpack.c.b16 %v876, %v867
    %v1156 = vpack.c.b16 %v877, %v868
    %v1157 = vpack.c.b16 %v887, %v878
    %v1158 = vpack.c.b16 %v888, %v879
    %v1159 = vpack.c.b16 %v889, %v880
    %v1160 = vpack.c.b16 %v890, %v881
    %v1161 = vpack.c.b16 %v891, %v882
    %v1162 = vpack.c.b16 %v892, %v883
    %v1163 = vpack.c.b16 %v893, %v884
    %v1164 = vpack.c.b16 %v894, %v885
    %v1165 = vpack.c.b16 %v895, %v886
    %v1166 = vpack.c.b16 %v905, %v896
    %v1167 = vpack.c.b16 %v906, %v897
    %v1168 = vpack.c.b16 %v907, %v898
    %v1169 = vpack.c.b16 %v908, %v899
    %v1170 = vpack.c.b16 %v909, %v900
    %v1171 = vpack.c.b16 %v910, %v901
    %v1172 = vpack.c.b16 %v911, %v902
    %v1173 = vpack.c.b16 %v912, %v903
    %v1174 = vpack.c.b16 %v913, %v904
    %v1175 = vpack.c.b16 %v923, %v914
    %v1176 = vpack.c.b16 %v924, %v915
    %v1177 = vpack.c.b16 %v925, %v916
    %v1178 = vpack.c.b16 %v926, %v917
    %v1179 = vpack.c.b16 %v927, %v918
    %v1180 = vpack.c.b16 %v928, %v919
    %v1181 = vpack.c.b16 %v929, %v920
    %v1182 = vpack.c.b16 %v930, %v921
    %v1183 = vpack.c.b16 %v931, %v922
    %v1184 = vpack.c.b16 %v941, %v932
    %v1185 = vpack.c.b16 %v942, %v933
    %v1186 = vpack.c.b16 %v943, %v934
    %v1187 = vpack.c.b16 %v944, %v935
    %v1188 = vpack.c.b16 %v945, %v936
    %v1189 = vpack.c.b16 %v946, %v937
    %v1190 = vpack.c.b16 %v947, %v938
    %v1191 = vpack.c.b16 %v948, %v939
    %v1192 = vpack.c.b16 %v949, %v940
    %v1193 = vpack.c.b16 %v959, %v950
    %v1194 = vpack.c.b16 %v960, %v951
    %v1195 = vpack.c.b16 %v961, %v952
    %v1196 = vpack.c.b16 %v962, %v953
    %v1197 = vpack.c.b16 %v963, %v954
    %v1198 = vpack.c.b16 %v964, %v955
    %v1199 = vpack.c.b16 %v965, %v956
    %v1200 = vpack.c.b16 %v966, %v957
    %v1201 = vpack.c.b16 %v967, %v958
    %v1202 = vpack.c.b16 %v977, %v968
    %v1203 = vpack.c.b16 %v978, %v969
    %v1204 = vpack.c.b16 %v979, %v970
    %v1205 = vpack.c.b16 %v980, %v971
    %v1206 = vpack.c.b16 %v981, %v972
    %v1207 = vpack.c.b16 %v982, %v973
    %v1208 = vpack.c.b16 %v983, %v974
    %v1209 = vpack.c.b16 %v984, %v975
    %v1210 = vpack.c.b16 %v985, %v976
    %v1211 = vpack.c.b16 %v995, %v986
    %v1212 = vpack.c.b16 %v996, %v987
    %v1213 = vpack.c.b16 %v997, %v988
    %v1214 = vpack.c.b16 %v998, %v989
    %v1215 = vpack.c.b16 %v999, %v990
    %v1216 = vpack.c.b16 %v1000, %v991
    %v1217 = vpack.c.b16 %v1001, %v992
    %v1218 = vpack.c.b16 %v1002, %v993
    %v1219 = vpack.c.b16 %v1003, %v994
    %1436 = vmatpush.bf16.msra.mxu0 %v1067
    %1437 = vmatpush.bf16.msra.mxu0 %v1058
    %1438 = vmatpush.bf16.msra.mxu0 %v1049
    %1439 = vmatpush.bf16.msra.mxu0 %v1040
    %1440 = vmatpush.bf16.msra.mxu0 %v1031
    %1441 = vmatpush.bf16.msra.mxu0 %v1022
    %1442 = vmatpush.bf16.msra.mxu0 %v1013
    %1443 = vmatpush.bf16.msra.mxu0 %v1004
    %1444 = vmatmul.bf16.gmra.mxu0 %v67
    %v1445 = vpop.f32.mrf.mxu0
    %v1446 = vadd.f32 %v314, %v1445
    %v1447 = vpop.f32.mrf.mxu0
    %v1448 = vadd.f32 %v314, %v1447
    %1449 = vdwg.mxu0
    %1450 = vmatpush.bf16.msra.mxu0 %v1139
    %1451 = vmatpush.bf16.msra.mxu0 %v1130
    %1452 = vmatpush.bf16.msra.mxu0 %v1121
    %1453 = vmatpush.bf16.msra.mxu0 %v1112
    %1454 = vmatpush.bf16.msra.mxu0 %v1103
    %1455 = vmatpush.bf16.msra.mxu0 %v1094
    %1456 = vmatpush.bf16.msra.mxu0 %v1085
    %1457 = vmatpush.bf16.msra.mxu0 %v1076
    %1458 = vmatmul.bf16.gmra.mxu0 %v68
    %v1459 = vpop.f32.mrf.mxu0
    %v1460 = vadd.f32 %v1446, %v1459
    %v1461 = vpop.f32.mrf.mxu0
    %v1462 = vadd.f32 %v1448, %v1461
    %1463 = vdwg.mxu0
    %1464 = vmatpush.bf16.msra.mxu0 %v1211
    %1465 = vmatpush.bf16.msra.mxu0 %v1202
    %1466 = vmatpush.bf16.msra.mxu0 %v1193
    %1467 = vmatpush.bf16.msra.mxu0 %v1184
    %1468 = vmatpush.bf16.msra.mxu0 %v1175
    %1469 = vmatpush.bf16.msra.mxu0 %v1166
    %1470 = vmatpush.bf16.msra.mxu0 %v1157
    %1471 = vmatpush.bf16.msra.mxu0 %v1148
    %1472 = vmatmul.bf16.gmra.mxu0 %v69
    %v1473 = vpop.f32.mrf.mxu0
    %v1474 = vadd.f32 %v1460, %v1473
    %v1475 = vpop.f32.mrf.mxu0
    %v1476 = vadd.f32 %v1462, %v1475
    %1477 = vdwg.mxu0
    %1478 = vmatpush.bf16.msra.mxu0 %v1068
    %1479 = vmatpush.bf16.msra.mxu0 %v1059
    %1480 = vmatpush.bf16.msra.mxu0 %v1050
    %1481 = vmatpush.bf16.msra.mxu0 %v1041
    %1482 = vmatpush.bf16.msra.mxu0 %v1032
    %1483 = vmatpush.bf16.msra.mxu0 %v1023
    %1484 = vmatpush.bf16.msra.mxu0 %v1014
    %1485 = vmatpush.bf16.msra.mxu0 %v1005
    %1486 = vmatmul.bf16.gmra.mxu0 %v67
    %v1487 = vpop.f32.mrf.mxu0
    %v1488 = vadd.f32 %v315, %v1487
    %v1489 = vpop.f32.mrf.mxu0
    %v1490 = vadd.f32 %v315, %v1489
    %1491 = vdwg.mxu0
    %1492 = vmatpush.bf16.msra.mxu0 %v1140
    %1493 = vmatpush.bf16.msra.mxu0 %v1131
    %1494 = vmatpush.bf16.msra.mxu0 %v1122
    %1495 = vmatpush.bf16.msra.mxu0 %v1113
    %1496 = vmatpush.bf16.msra.mxu0 %v1104
    %1497 = vmatpush.bf16.msra.mxu0 %v1095
    %1498 = vmatpush.bf16.msra.mxu0 %v1086
    %1499 = vmatpush.bf16.msra.mxu0 %v1077
    %1500 = vmatmul.bf16.gmra.mxu0 %v68
    %v1501 = vpop.f32.mrf.mxu0
    %v1502 = vadd.f32 %v1488, %v1501
    %v1503 = vpop.f32.mrf.mxu0
    %v1504 = vadd.f32 %v1490, %v1503
    %1505 = vdwg.mxu0
    %1506 = vmatpush.bf16.msra.mxu0 %v1212
    %1507 = vmatpush.bf16.msra.mxu0 %v1203
    %1508 = vmatpush.bf16.msra.mxu0 %v1194
    %1509 = vmatpush.bf16.msra.mxu0 %v1185
    %1510 = vmatpush.bf16.msra.mxu0 %v1176
    %1511 = vmatpush.bf16.msra.mxu0 %v1167
    %1512 = vmatpush.bf16.msra.mxu0 %v1158
    %1513 = vmatpush.bf16.msra.mxu0 %v1149
    %1514 = vmatmul.bf16.gmra.mxu0 %v69
    %v1515 = vpop.f32.mrf.mxu0
    %v1516 = vadd.f32 %v1502, %v1515
    %v1517 = vpop.f32.mrf.mxu0
    %v1518 = vadd.f32 %v1504, %v1517
    %1519 = vdwg.mxu0
    %1520 = vmatpush.bf16.msra.mxu0 %v1069
    %1521 = vmatpush.bf16.msra.mxu0 %v1060
    %1522 = vmatpush.bf16.msra.mxu0 %v1051
    %1523 = vmatpush.bf16.msra.mxu0 %v1042
    %1524 = vmatpush.bf16.msra.mxu0 %v1033
    %1525 = vmatpush.bf16.msra.mxu0 %v1024
    %1526 = vmatpush.bf16.msra.mxu0 %v1015
    %1527 = vmatpush.bf16.msra.mxu0 %v1006
    %1528 = vmatmul.bf16.gmra.mxu0 %v67
    %v1529 = vpop.f32.mrf.mxu0
    %v1530 = vadd.f32 %v316, %v1529
    %v1531 = vpop.f32.mrf.mxu0
    %v1532 = vadd.f32 %v316, %v1531
    %1533 = vdwg.mxu0
    %1534 = vmatpush.bf16.msra.mxu0 %v1141
    %1535 = vmatpush.bf16.msra.mxu0 %v1132
    %1536 = vmatpush.bf16.msra.mxu0 %v1123
    %1537 = vmatpush.bf16.msra.mxu0 %v1114
    %1538 = vmatpush.bf16.msra.mxu0 %v1105
    %1539 = vmatpush.bf16.msra.mxu0 %v1096
    %1540 = vmatpush.bf16.msra.mxu0 %v1087
    %1541 = vmatpush.bf16.msra.mxu0 %v1078
    %1542 = vmatmul.bf16.gmra.mxu0 %v68
    %v1543 = vpop.f32.mrf.mxu0
    %v1544 = vadd.f32 %v1530, %v1543
    %v1545 = vpop.f32.mrf.mxu0
    %v1546 = vadd.f32 %v1532, %v1545
    %1547 = vdwg.mxu0
    %1548 = vmatpush.bf16.msra.mxu0 %v1213
    %1549 = vmatpush.bf16.msra.mxu0 %v1204
    %1550 = vmatpush.bf16.msra.mxu0 %v1195
    %1551 = vmatpush.bf16.msra.mxu0 %v1186
    %1552 = vmatpush.bf16.msra.mxu0 %v1177
    %1553 = vmatpush.bf16.msra.mxu0 %v1168
    %1554 = vmatpush.bf16.msra.mxu0 %v1159
    %1555 = vmatpush.bf16.msra.mxu0 %v1150
    %1556 = vmatmul.bf16.gmra.mxu0 %v69
    %v1557 = vpop.f32.mrf.mxu0
    %v1558 = vadd.f32 %v1544, %v1557
    %v1559 = vpop.f32.mrf.mxu0
    %v1560 = vadd.f32 %v1546, %v1559
    %1561 = vdwg.mxu0
    %1562 = vmatpush.bf16.msra.mxu0 %v1070
    %1563 = vmatpush.bf16.msra.mxu0 %v1061
    %1564 = vmatpush.bf16.msra.mxu0 %v1052
    %1565 = vmatpush.bf16.msra.mxu0 %v1043
    %1566 = vmatpush.bf16.msra.mxu0 %v1034
    %1567 = vmatpush.bf16.msra.mxu0 %v1025
    %1568 = vmatpush.bf16.msra.mxu0 %v1016
    %1569 = vmatpush.bf16.msra.mxu0 %v1007
    %1570 = vmatmul.bf16.gmra.mxu0 %v67
    %v1571 = vpop.f32.mrf.mxu0
    %v1572 = vadd.f32 %v317, %v1571
    %v1573 = vpop.f32.mrf.mxu0
    %v1574 = vadd.f32 %v317, %v1573
    %1575 = vdwg.mxu0
    %1576 = vmatpush.bf16.msra.mxu0 %v1142
    %1577 = vmatpush.bf16.msra.mxu0 %v1133
    %1578 = vmatpush.bf16.msra.mxu0 %v1124
    %1579 = vmatpush.bf16.msra.mxu0 %v1115
    %1580 = vmatpush.bf16.msra.mxu0 %v1106
    %1581 = vmatpush.bf16.msra.mxu0 %v1097
    %1582 = vmatpush.bf16.msra.mxu0 %v1088
    %1583 = vmatpush.bf16.msra.mxu0 %v1079
    %1584 = vmatmul.bf16.gmra.mxu0 %v68
    %v1585 = vpop.f32.mrf.mxu0
    %v1586 = vadd.f32 %v1572, %v1585
    %v1587 = vpop.f32.mrf.mxu0
    %v1588 = vadd.f32 %v1574, %v1587
    %1589 = vdwg.mxu0
    %1590 = vmatpush.bf16.msra.mxu0 %v1214
    %1591 = vmatpush.bf16.msra.mxu0 %v1205
    %1592 = vmatpush.bf16.msra.mxu0 %v1196
    %1593 = vmatpush.bf16.msra.mxu0 %v1187
    %1594 = vmatpush.bf16.msra.mxu0 %v1178
    %1595 = vmatpush.bf16.msra.mxu0 %v1169
    %1596 = vmatpush.bf16.msra.mxu0 %v1160
    %1597 = vmatpush.bf16.msra.mxu0 %v1151
    %1598 = vmatmul.bf16.gmra.mxu0 %v69
    %v1599 = vpop.f32.mrf.mxu0
    %v1600 = vadd.f32 %v1586, %v1599
    %v1601 = vpop.f32.mrf.mxu0
    %v1602 = vadd.f32 %v1588, %v1601
    %1603 = vdwg.mxu0
    %1604 = vmatpush.bf16.msra.mxu0 %v1071
    %1605 = vmatpush.bf16.msra.mxu0 %v1062
    %1606 = vmatpush.bf16.msra.mxu0 %v1053
    %1607 = vmatpush.bf16.msra.mxu0 %v1044
    %1608 = vmatpush.bf16.msra.mxu0 %v1035
    %1609 = vmatpush.bf16.msra.mxu0 %v1026
    %1610 = vmatpush.bf16.msra.mxu0 %v1017
    %1611 = vmatpush.bf16.msra.mxu0 %v1008
    %1612 = vmatmul.bf16.gmra.mxu0 %v67
    %v1613 = vpop.f32.mrf.mxu0
    %v1614 = vadd.f32 %v318, %v1613
    %v1615 = vpop.f32.mrf.mxu0
    %v1616 = vadd.f32 %v318, %v1615
    %1617 = vdwg.mxu0
    %1618 = vmatpush.bf16.msra.mxu0 %v1143
    %1619 = vmatpush.bf16.msra.mxu0 %v1134
    %1620 = vmatpush.bf16.msra.mxu0 %v1125
    %1621 = vmatpush.bf16.msra.mxu0 %v1116
    %1622 = vmatpush.bf16.msra.mxu0 %v1107
    %1623 = vmatpush.bf16.msra.mxu0 %v1098
    %1624 = vmatpush.bf16.msra.mxu0 %v1089
    %1625 = vmatpush.bf16.msra.mxu0 %v1080
    %1626 = vmatmul.bf16.gmra.mxu0 %v68
    %v1627 = vpop.f32.mrf.mxu0
    %v1628 = vadd.f32 %v1614, %v1627
    %v1629 = vpop.f32.mrf.mxu0
    %v1630 = vadd.f32 %v1616, %v1629
    %1631 = vdwg.mxu0
    %1632 = vmatpush.bf16.msra.mxu0 %v1215
    %1633 = vmatpush.bf16.msra.mxu0 %v1206
    %1634 = vmatpush.bf16.msra.mxu0 %v1197
    %1635 = vmatpush.bf16.msra.mxu0 %v1188
    %1636 = vmatpush.bf16.msra.mxu0 %v1179
    %1637 = vmatpush.bf16.msra.mxu0 %v1170
    %1638 = vmatpush.bf16.msra.mxu0 %v1161
    %1639 = vmatpush.bf16.msra.mxu0 %v1152
    %1640 = vmatmul.bf16.gmra.mxu0 %v69
    %v1641 = vpop.f32.mrf.mxu0
    %v1642 = vadd.f32 %v1628, %v1641
    %v1643 = vpop.f32.mrf.mxu0
    %v1644 = vadd.f32 %v1630, %v1643
    %1645 = vdwg.mxu0
    %1646 = vmatpush.bf16.msra.mxu0 %v1072
    %1647 = vmatpush.bf16.msra.mxu0 %v1063
    %1648 = vmatpush.bf16.msra.mxu0 %v1054
    %1649 = vmatpush.bf16.msra.mxu0 %v1045
    %1650 = vmatpush.bf16.msra.mxu0 %v1036
    %1651 = vmatpush.bf16.msra.mxu0 %v1027
    %1652 = vmatpush.bf16.msra.mxu0 %v1018
    %1653 = vmatpush.bf16.msra.mxu0 %v1009
    %1654 = vmatmul.bf16.gmra.mxu0 %v67
    %v1655 = vpop.f32.mrf.mxu0
    %v1656 = vadd.f32 %v319, %v1655
    %v1657 = vpop.f32.mrf.mxu0
    %v1658 = vadd.f32 %v319, %v1657
    %1659 = vdwg.mxu0
    %1660 = vmatpush.bf16.msra.mxu0 %v1144
    %1661 = vmatpush.bf16.msra.mxu0 %v1135
    %1662 = vmatpush.bf16.msra.mxu0 %v1126
    %1663 = vmatpush.bf16.msra.mxu0 %v1117
    %1664 = vmatpush.bf16.msra.mxu0 %v1108
    %1665 = vmatpush.bf16.msra.mxu0 %v1099
    %1666 = vmatpush.bf16.msra.mxu0 %v1090
    %1667 = vmatpush.bf16.msra.mxu0 %v1081
    %1668 = vmatmul.bf16.gmra.mxu0 %v68
    %v1669 = vpop.f32.mrf.mxu0
    %v1670 = vadd.f32 %v1656, %v1669
    %v1671 = vpop.f32.mrf.mxu0
    %v1672 = vadd.f32 %v1658, %v1671
    %1673 = vdwg.mxu0
    %1674 = vmatpush.bf16.msra.mxu0 %v1216
    %1675 = vmatpush.bf16.msra.mxu0 %v1207
    %1676 = vmatpush.bf16.msra.mxu0 %v1198
    %1677 = vmatpush.bf16.msra.mxu0 %v1189
    %1678 = vmatpush.bf16.msra.mxu0 %v1180
    %1679 = vmatpush.bf16.msra.mxu0 %v1171
    %1680 = vmatpush.bf16.msra.mxu0 %v1162
    %1681 = vmatpush.bf16.msra.mxu0 %v1153
    %1682 = vmatmul.bf16.gmra.mxu0 %v69
    %v1683 = vpop.f32.mrf.mxu0
    %v1684 = vadd.f32 %v1670, %v1683
    %v1685 = vpop.f32.mrf.mxu0
    %v1686 = vadd.f32 %v1672, %v1685
    %1687 = vdwg.mxu0
    %1688 = vmatpush.bf16.msra.mxu0 %v1073
    %1689 = vmatpush.bf16.msra.mxu0 %v1064
    %1690 = vmatpush.bf16.msra.mxu0 %v1055
    %1691 = vmatpush.bf16.msra.mxu0 %v1046
    %1692 = vmatpush.bf16.msra.mxu0 %v1037
    %1693 = vmatpush.bf16.msra.mxu0 %v1028
    %1694 = vmatpush.bf16.msra.mxu0 %v1019
    %1695 = vmatpush.bf16.msra.mxu0 %v1010
    %1696 = vmatmul.bf16.gmra.mxu0 %v67
    %v1697 = vpop.f32.mrf.mxu0
    %v1698 = vadd.f32 %v320, %v1697
    %v1699 = vpop.f32.mrf.mxu0
    %v1700 = vadd.f32 %v320, %v1699
    %1701 = vdwg.mxu0
    %1702 = vmatpush.bf16.msra.mxu0 %v1145
    %1703 = vmatpush.bf16.msra.mxu0 %v1136
    %1704 = vmatpush.bf16.msra.mxu0 %v1127
    %1705 = vmatpush.bf16.msra.mxu0 %v1118
    %1706 = vmatpush.bf16.msra.mxu0 %v1109
    %1707 = vmatpush.bf16.msra.mxu0 %v1100
    %1708 = vmatpush.bf16.msra.mxu0 %v1091
    %1709 = vmatpush.bf16.msra.mxu0 %v1082
    %1710 = vmatmul.bf16.gmra.mxu0 %v68
    %v1711 = vpop.f32.mrf.mxu0
    %v1712 = vadd.f32 %v1698, %v1711
    %v1713 = vpop.f32.mrf.mxu0
    %v1714 = vadd.f32 %v1700, %v1713
    %1715 = vdwg.mxu0
    %1716 = vmatpush.bf16.msra.mxu0 %v1217
    %1717 = vmatpush.bf16.msra.mxu0 %v1208
    %1718 = vmatpush.bf16.msra.mxu0 %v1199
    %1719 = vmatpush.bf16.msra.mxu0 %v1190
    %1720 = vmatpush.bf16.msra.mxu0 %v1181
    %1721 = vmatpush.bf16.msra.mxu0 %v1172
    %1722 = vmatpush.bf16.msra.mxu0 %v1163
    %1723 = vmatpush.bf16.msra.mxu0 %v1154
    %1724 = vmatmul.bf16.gmra.mxu0 %v69
    %v1725 = vpop.f32.mrf.mxu0
    %v1726 = vadd.f32 %v1712, %v1725
    %v1727 = vpop.f32.mrf.mxu0
    %v1728 = vadd.f32 %v1714, %v1727
    %1729 = vdwg.mxu0
    %1730 = vmatpush.bf16.msra.mxu0 %v1074
    %1731 = vmatpush.bf16.msra.mxu0 %v1065
    %1732 = vmatpush.bf16.msra.mxu0 %v1056
    %1733 = vmatpush.bf16.msra.mxu0 %v1047
    %1734 = vmatpush.bf16.msra.mxu0 %v1038
    %1735 = vmatpush.bf16.msra.mxu0 %v1029
    %1736 = vmatpush.bf16.msra.mxu0 %v1020
    %1737 = vmatpush.bf16.msra.mxu0 %v1011
    %1738 = vmatmul.bf16.gmra.mxu0 %v67
    %v1739 = vpop.f32.mrf.mxu0
    %v1740 = vadd.f32 %v321, %v1739
    %v1741 = vpop.f32.mrf.mxu0
    %v1742 = vadd.f32 %v321, %v1741
    %1743 = vdwg.mxu0
    %1744 = vmatpush.bf16.msra.mxu0 %v1146
    %1745 = vmatpush.bf16.msra.mxu0 %v1137
    %1746 = vmatpush.bf16.msra.mxu0 %v1128
    %1747 = vmatpush.bf16.msra.mxu0 %v1119
    %1748 = vmatpush.bf16.msra.mxu0 %v1110
    %1749 = vmatpush.bf16.msra.mxu0 %v1101
    %1750 = vmatpush.bf16.msra.mxu0 %v1092
    %1751 = vmatpush.bf16.msra.mxu0 %v1083
    %1752 = vmatmul.bf16.gmra.mxu0 %v68
    %v1753 = vpop.f32.mrf.mxu0
    %v1754 = vadd.f32 %v1740, %v1753
    %v1755 = vpop.f32.mrf.mxu0
    %v1756 = vadd.f32 %v1742, %v1755
    %1757 = vdwg.mxu0
    %1758 = vmatpush.bf16.msra.mxu0 %v1218
    %1759 = vmatpush.bf16.msra.mxu0 %v1209
    %1760 = vmatpush.bf16.msra.mxu0 %v1200
    %1761 = vmatpush.bf16.msra.mxu0 %v1191
    %1762 = vmatpush.bf16.msra.mxu0 %v1182
    %1763 = vmatpush.bf16.msra.mxu0 %v1173
    %1764 = vmatpush.bf16.msra.mxu0 %v1164
    %1765 = vmatpush.bf16.msra.mxu0 %v1155
    %1766 = vmatmul.bf16.gmra.mxu0 %v69
    %v1767 = vpop.f32.mrf.mxu0
    %v1768 = vadd.f32 %v1754, %v1767
    %v1769 = vpop.f32.mrf.mxu0
    %v1770 = vadd.f32 %v1756, %v1769
    %1771 = vdwg.mxu0
    %1772 = vmatpush.bf16.msra.mxu0 %v1075
    %1773 = vmatpush.bf16.msra.mxu0 %v1066
    %1774 = vmatpush.bf16.msra.mxu0 %v1057
    %1775 = vmatpush.bf16.msra.mxu0 %v1048
    %1776 = vmatpush.bf16.msra.mxu0 %v1039
    %1777 = vmatpush.bf16.msra.mxu0 %v1030
    %1778 = vmatpush.bf16.msra.mxu0 %v1021
    %1779 = vmatpush.bf16.msra.mxu0 %v1012
    %1780 = vmatmul.bf16.gmra.mxu0 %v67
    %v1781 = vpop.f32.mrf.mxu0
    %v1782 = vadd.f32 %v322, %v1781
    %v1783 = vpop.f32.mrf.mxu0
    %v1784 = vadd.f32 %v322, %v1783
    %1785 = vdwg.mxu0
    %1786 = vmatpush.bf16.msra.mxu0 %v1147
    %1787 = vmatpush.bf16.msra.mxu0 %v1138
    %1788 = vmatpush.bf16.msra.mxu0 %v1129
    %1789 = vmatpush.bf16.msra.mxu0 %v1120
    %1790 = vmatpush.bf16.msra.mxu0 %v1111
    %1791 = vmatpush.bf16.msra.mxu0 %v1102
    %1792 = vmatpush.bf16.msra.mxu0 %v1093
    %1793 = vmatpush.bf16.msra.mxu0 %v1084
    %1794 = vmatmul.bf16.gmra.mxu0 %v68
    %v1795 = vpop.f32.mrf.mxu0
    %v1796 = vadd.f32 %v1782, %v1795
    %v1797 = vpop.f32.mrf.mxu0
    %v1798 = vadd.f32 %v1784, %v1797
    %1799 = vdwg.mxu0
    %1800 = vmatpush.bf16.msra.mxu0 %v1219
    %1801 = vmatpush.bf16.msra.mxu0 %v1210
    %1802 = vmatpush.bf16.msra.mxu0 %v1201
    %1803 = vmatpush.bf16.msra.mxu0 %v1192
    %1804 = vmatpush.bf16.msra.mxu0 %v1183
    %1805 = vmatpush.bf16.msra.mxu0 %v1174
    %1806 = vmatpush.bf16.msra.mxu0 %v1165
    %1807 = vmatpush.bf16.msra.mxu0 %v1156
    %1808 = vmatmul.bf16.gmra.mxu0 %v69
    %v1809 = vpop.f32.mrf.mxu0
    %v1810 = vadd.f32 %v1796, %v1809
    %v1811 = vpop.f32.mrf.mxu0
    %v1812 = vadd.f32 %v1798, %v1811
    %1813 = vdwg.mxu0
    %v1814 = vld [vmem:[%s4] sm:$0xff]
    %v1815 = vld [vmem:[%s4 + $0x8] sm:$0x1]
    %v1818 = vperm.slane %v1814, 0
    %v1819 = vperm.slane %v1814, 1
    %v1820 = vperm.slane %v1814, 2
    %v1821 = vperm.slane %v1814, 3
    %v1822 = vperm.slane %v1814, 4
    %v1823 = vperm.slane %v1814, 5
    %v1824 = vperm.slane %v1814, 6
    %v1825 = vperm.slane %v1814, 7
    %v1826 = vperm.slane %v1815, 0
    %v1836 = vmul.f32 %v1474, %v1818
    %v1837 = vmul.f32 %v1516, %v1819
    %v1838 = vmul.f32 %v1558, %v1820
    %v1839 = vmul.f32 %v1600, %v1821
    %v1840 = vmul.f32 %v1642, %v1822
    %v1841 = vmul.f32 %v1684, %v1823
    %v1842 = vmul.f32 %v1726, %v1824
    %v1843 = vmul.f32 %v1768, %v1825
    %v1844 = vmul.f32 %v1810, %v1826
    %v1845 = vmul.f32 %v1476, %v1818
    %v1846 = vmul.f32 %v1518, %v1819
    %v1847 = vmul.f32 %v1560, %v1820
    %v1848 = vmul.f32 %v1602, %v1821
    %v1849 = vmul.f32 %v1644, %v1822
    %v1850 = vmul.f32 %v1686, %v1823
    %v1851 = vmul.f32 %v1728, %v1824
    %v1852 = vmul.f32 %v1770, %v1825
    %v1853 = vmul.f32 %v1812, %v1826
    %1854 = vst [vmem:[%s5] sm:$0xff] %v1836
    %1855 = vst [vmem:[%s5 + $0x8] sm:$0xff] %v1837
    %1856 = vst [vmem:[%s5 + $0x10] sm:$0xff] %v1838
    %1857 = vst [vmem:[%s5 + $0x18] sm:$0xff] %v1839
    %1858 = vst [vmem:[%s5 + $0x20] sm:$0xff] %v1840
    %1859 = vst [vmem:[%s5 + $0x28] sm:$0xff] %v1841
    %1860 = vst [vmem:[%s5 + $0x30] sm:$0xff] %v1842
    %1861 = vst [vmem:[%s5 + $0x38] sm:$0xff] %v1843
    %1862 = vst [vmem:[%s5 + $0x40] sm:$0xff] %v1844
    %1863 = vst [vmem:[%s5 + $0x48] sm:$0xff] %v1845
    %1864 = vst [vmem:[%s5 + $0x50] sm:$0xff] %v1846
    %1865 = vst [vmem:[%s5 + $0x58] sm:$0xff] %v1847
    %1866 = vst [vmem:[%s5 + $0x60] sm:$0xff] %v1848
    %1867 = vst [vmem:[%s5 + $0x68] sm:$0xff] %v1849
    %1868 = vst [vmem:[%s5 + $0x70] sm:$0xff] %v1850
    %1869 = vst [vmem:[%s5 + $0x78] sm:$0xff] %v1851
    %1870 = vst [vmem:[%s5 + $0x80] sm:$0xff] %v1852
    %1871 = vst [vmem:[%s5 + $0x88] sm:$0xff] %v1853
    // Predicated region
    $region30: #{multi_head_attention.3} parent=1 // pred_check
      _
    $region31: #{multi_head_attention.3} parent=1 // pred_check_branch
      %1873 = sbr.rel (0) target = $region33
    $region32: #{multi_head_attention.3} parent=1 // pred_region
      _
    $region33: #{multi_head_attention.3} parent=1 // pred_fallthru
      _
    // Predicated region
    $region34: #{multi_head_attention.3} parent=1 // pred_check
      _
    $region35: #{multi_head_attention.3} parent=1 // pred_check_branch
      %1875 = sbr.rel (0) target = $region37
    $region36: #{multi_head_attention.3} parent=1 // pred_region
      _
    $region37: #{multi_head_attention.3} parent=1 // pred_fallthru
      _
    %1876 = vsyncpa [#allocation4], 1
    %1877 = vsyncpa [#allocation6], 1

</llo_original>
